<compile_context>
chip_gen: v5e
topology: v5e:2x2
jax: 0.10.0
libtpu: 0.0.40
codegen_flags: <defaults>
</compile_context>

<pallas_src>
import functools

import jax
import jax.numpy as jnp
from jax import lax
from jax.experimental import pallas as pl
from jax.experimental.pallas import tpu as pltpu

# Keep full-precision f32 matmul passes so the kernel matches the f32 reference
# at the 1e-4 tolerance (default/bf16 passes would not).
jax.config.update("jax_default_matmul_precision", "highest")


# ----------------------------------------------------------------------------
# Pallas kernel: single invocation, heads unrolled, single final store.
# ----------------------------------------------------------------------------
def _mha_kernel(x_ref,                      # (B, C, 2)       raw input
                pe_ref,                     # (B, 2)           pe[:B]
                wqkvb_ref,                  # (3, 3*H*T)       rows: w0 | w1 | bias  (K|Q|V packed)
                owbwb_ref,                  # (H*T + 1, 2)     rows 0..H*T-1: ow[h]@bw[h]; last: folded bias
                out_ref,                    # (B, C, 2)
                *, num_heads, context_len):
    B, C, _ = x_ref.shape
    H, T = num_heads, context_len

    # Fused positional encoding: (B, C, 2) + (B, 2) -> same broadcast semantics
    # as the PyTorch module (requires B == C, asserted in the wrapper).
    emb = x_ref[...] + pe_ref[...]

    # Merged K/Q/V projection for all heads on the VPU (contraction length 2).
    w0 = wqkvb_ref[0:1, :][None]            # (1, 1, 3*H*T)
    w1 = wqkvb_ref[1:2, :][None]            # (1, 1, 3*H*T)
    bb = wqkvb_ref[2:3, :][None]            # (1, 1, 3*H*T)
    qkv = emb[:, :, 0:1] * w0 + emb[:, :, 1:2] * w1 + bb     # (B, C, 3*H*T)

    # Causal mask (tril == 0 -> -inf), built once, shared by all heads.
    row = lax.broadcasted_iota(jnp.int32, (C, C), 0)
    col = lax.broadcasted_iota(jnp.int32, (C, C), 1)
    causal = row >= col
    neg_inf = jnp.float32(-jnp.inf)

    attn_heads = []
    for h in range(H):                      # H is tiny & static -> fully unrolled
        k = qkv[:, :, (0 * H + h) * T:(0 * H + h + 1) * T]   # (B, C, T)
        q = qkv[:, :, (1 * H + h) * T:(1 * H + h + 1) * T]   # (B, C, T)
        v = qkv[:, :, (2 * H + h) * T:(2 * H + h + 1) * T]   # (B, C, T)

        wei = jnp.einsum("bct,bst->bcs", q, k,
                         preferred_element_type=jnp.float32)  # (B, C, C)
        wei = jnp.where(causal, wei, neg_inf)
        wei = wei - jnp.max(wei, axis=-1, keepdims=True)
        wei = jnp.exp(wei)
        wei = wei / jnp.sum(wei, axis=-1, keepdims=True)       # softmax (f32)

        attn_heads.append(
            jnp.einsum("bcs,bst->bct", wei, v,
                       preferred_element_type=jnp.float32))    # (B, C, T)

    # Concatenate heads along lanes and project once: exact fold of
    # per-head output_layer followed by linear_both.
    attn_cat = jnp.concatenate(attn_heads, axis=-1)            # (B, C, H*T)
    proj = owbwb_ref[0:H * T, :]                               # (H*T, 2)
    bias = owbwb_ref[H * T:H * T + 1, :]                       # (1, 2)
    out_ref[...] = (jnp.einsum("bcf,fd->bcd", attn_cat, proj,
                               preferred_element_type=jnp.float32)
                    + bias)                                    # single store


# ----------------------------------------------------------------------------
# Wrapper: one pallas_call, no grid, whole arrays resident in VMEM.
# ----------------------------------------------------------------------------
def mha_forward(x, fparams, *, num_heads, context_len):
    """x: (B, C, 2) float32. Returns (B, C, 2)."""
    B, C, D = x.shape
    assert D == 2
    # pe[:B] broadcast onto (B, C, 2) -- PyTorch semantics require B == C.
    assert B == C, "pe[:B] broadcast (PyTorch semantics) requires batch == context_len"
    H, T = num_heads, context_len

    pe_b = fparams["pe"][:B]                                  # (B, 2)
    kernel = functools.partial(_mha_kernel, num_heads=H, context_len=T)

    vmem = pl.BlockSpec(memory_space=pltpu.MemorySpace.VMEM)
    return pl.pallas_call(
        kernel,
        out_shape=jax.ShapeDtypeStruct((B, C, 2), jnp.float32),
        in_specs=[vmem, vmem, vmem, vmem],
        out_specs=vmem,
    )(x, pe_b, fparams["wqkvb"], fparams["owbwb"])


# ----------------------------------------------------------------------------
# Deterministic parameter init (shapes follow the nn.Module __init__; weights
# are stored pre-transposed so y = x @ W^T + b directly).
# ----------------------------------------------------------------------------
def init_params(key, *, num_heads, context_len, head_output_dim):
    T, H, Dh = context_len, num_heads, head_output_dim
    ks = jax.random.split(key, 8)
    scale = 0.1
    params = dict(
        kw=scale * jax.random.normal(ks[0], (H, 2, T), jnp.float32),
        kb=scale * jax.random.normal(ks[1], (H, 1, T), jnp.float32),
        qw=scale * jax.random.normal(ks[2], (H, 2, T), jnp.float32),
        qb=scale * jax.random.normal(ks[3], (H, 1, T), jnp.float32),
        vw=scale * jax.random.normal(ks[4], (H, 2, T), jnp.float32),
        vb=scale * jax.random.normal(ks[5], (H, 1, T), jnp.float32),
        ow=scale * jax.random.normal(ks[6], (H, T, Dh), jnp.float32),
        ob=scale * jax.random.normal(ks[7], (H, 1, Dh), jnp.float32),
    )
    # linear_both: nn.Linear(H*Dh, 2, bias=False); store W^T reshaped per head.
    bw_full = scale * jax.random.normal(jax.random.fold_in(key, 123),
                                        (H * Dh, 2), jnp.float32)
    params["bw"] = bw_full.reshape(H, Dh, 2)
    # PositionEncoding buffer pe: d_model=2, max_len=context_len.
    pos = jnp.arange(T, dtype=jnp.float32)[:, None]
    div_term = 1.0 / (10000.0 ** (jnp.arange(0, 2, 2, dtype=jnp.float32) / 2.0))  # [1.0]
    params["pe"] = jnp.concatenate(
        [jnp.sin(pos * div_term), jnp.cos(pos * div_term)], axis=1)  # (T, 2)
    return params


# ----------------------------------------------------------------------------
# One-time algebraic folding of the module parameters for the kernel.
# ----------------------------------------------------------------------------
def fold_params(params, *, num_heads, context_len, head_output_dim):
    H, T, Dh = num_heads, context_len, head_output_dim

    def _cat_w(w):   # (H, 2, T) -> (2, H*T)
        return w.transpose(1, 0, 2).reshape(2, H * T)

    def _cat_b(b):   # (H, 1, T) -> (1, H*T)
        return b.transpose(1, 0, 2).reshape(1, H * T)

    # Merged projection: columns ordered [K heads | Q heads | V heads];
    # biases packed as a third row of the same slab.
    wqkv = jnp.concatenate(
        [_cat_w(params["kw"]), _cat_w(params["qw"]), _cat_w(params["vw"])], axis=-1)
    bqkv = jnp.concatenate(
        [_cat_b(params["kb"]), _cat_b(params["qb"]), _cat_b(params["vb"])], axis=-1)
    wqkvb = jnp.concatenate([wqkv, bqkv], axis=0)                   # (3, 3*H*T)

    # output_layer followed by linear_both = composition of linear maps:
    # per-head (T, 2) weight (rows h-major) and one folded (1, 2) bias row. Exact.
    owbw = jnp.einsum("htd,hde->hte", params["ow"], params["bw"])   # (H, T, 2)
    obias = jnp.einsum("hod,hde->oe", params["ob"], params["bw"])   # (1, 2)
    owbwb = jnp.concatenate([owbw.reshape(H * T, 2), obias], axis=0)  # (H*T+1, 2)

    return dict(pe=params["pe"], wqkvb=wqkvb, owbwb=owbwb)


# ----------------------------------------------------------------------------
# Pure-JAX reference (mirrors the PyTorch forward exactly, unfolded params).
# ----------------------------------------------------------------------------
def reference_forward(x, params, *, num_heads):
    B, C, _ = x.shape
    emb = x + params["pe"][:B]
    tril = jnp.tril(jnp.ones((C, C), jnp.float32))
    outs = []
    for h in range(num_heads):
        k = emb @ params["kw"][h] + params["kb"][h]
        q = emb @ params["qw"][h] + params["qb"][h]
        v = emb @ params["vw"][h] + params["vb"][h]
        wei = jnp.einsum("bct,bst->bcs", q, k)
        wei = jnp.where(tril == 0, -jnp.inf, wei)
        wei = jax.nn.softmax(wei, axis=-1)
        out = jnp.einsum("bcs,bst->bct", wei, v)
        outs.append(out @ params["ow"][h] + params["ob"][h])
    concat = jnp.concatenate(outs, axis=-1)                          # (B, C, H*Dh)
    H, Dh, _ = params["bw"].shape
    return concat @ params["bw"].reshape(H * Dh, 2)                  # (B, C, 2)


if __name__ == "__main__":
    num_heads = 2
    context_len = 8
    head_output_dim = 4
    batch_size = 8          # must equal the sequence dim C (pe broadcasting quirk)
    # TODO(synk): dropout=0.1 / pos_to_enc_layer / enc_layer are defined in the
    # module __init__ but never used in forward() -> intentionally omitted.

    key = jax.random.PRNGKey(0)
    pkey, xkey = jax.random.split(key)
    params = init_params(pkey, num_heads=num_heads, context_len=context_len,
                         head_output_dim=head_output_dim)
    fparams = fold_params(params, num_heads=num_heads, context_len=context_len,
                          head_output_dim=head_output_dim)
    x = jax.random.normal(xkey, (batch_size, context_len, 2), jnp.float32)

    out = mha_forward(x, fparams, num_heads=num_heads, context_len=context_len)
    out = jax.block_until_ready(out)

    ref = reference_forward(x, params, num_heads=num_heads)
    assert out.shape == (batch_size, context_len, 2)
    if not jnp.allclose(out, ref, atol=1e-4, rtol=1e-4):
        raise AssertionError(
            f"Pallas kernel mismatch vs JAX reference; max abs err = "
            f"{float(jnp.max(jnp.abs(out - ref)))}")
    print("KERNEL_OK")
</pallas_src>

<mosaic_0001>
module attributes {stable_mosaic.version = 11 : i64} {
  func.func @_mha_kernel(%arg0: memref<8x8x2xf32, #tpu.memory_space<vmem>>, %arg1: memref<8x2xf32, #tpu.memory_space<vmem>>, %arg2: memref<3x48xf32, #tpu.memory_space<vmem>>, %arg3: memref<17x2xf32, #tpu.memory_space<vmem>>, %arg4: memref<8x8x2xf32, #tpu.memory_space<vmem>>) attributes {dimension_semantics = [], scalar_prefetch = 0 : i64, scratch_operands = 0 : i64, tpu.core_type = #tpu.core_type<tc>} {
    %c0 = arith.constant 0 : index
    %c0_0 = arith.constant 0 : index
    %c0_1 = arith.constant 0 : index
    %0 = vector.load %arg0[%c0, %c0_0, %c0_1] : memref<8x8x2xf32, #tpu.memory_space<vmem>>, vector<8x8x2xf32>
    %c0_2 = arith.constant 0 : index
    %c0_3 = arith.constant 0 : index
    %1 = vector.load %arg1[%c0_2, %c0_3] : memref<8x2xf32, #tpu.memory_space<vmem>>, vector<8x2xf32>
    %2 = vector.shape_cast %1 : vector<8x2xf32> to vector<1x8x2xf32>
    %3 = vector.broadcast %2 : vector<1x8x2xf32> to vector<8x8x2xf32>
    %4 = arith.addf %0, %3 : vector<8x8x2xf32>
    %c0_4 = arith.constant 0 : index
    %c0_5 = arith.constant 0 : index
    %5 = vector.load %arg2[%c0_4, %c0_5] : memref<3x48xf32, #tpu.memory_space<vmem>>, vector<1x48xf32>
    %6 = vector.shape_cast %5 : vector<1x48xf32> to vector<1x1x48xf32>
    %c1 = arith.constant 1 : index
    %c0_6 = arith.constant 0 : index
    %7 = vector.load %arg2[%c1, %c0_6] : memref<3x48xf32, #tpu.memory_space<vmem>>, vector<1x48xf32>
    %8 = vector.shape_cast %7 : vector<1x48xf32> to vector<1x1x48xf32>
    %c2 = arith.constant 2 : index
    %c0_7 = arith.constant 0 : index
    %9 = vector.load %arg2[%c2, %c0_7] : memref<3x48xf32, #tpu.memory_space<vmem>>, vector<1x48xf32>
    %10 = vector.shape_cast %9 : vector<1x48xf32> to vector<1x1x48xf32>
    %11 = vector.extract_strided_slice %4 {offsets = [0, 0, 0], sizes = [8, 8, 1], strides = [1, 1, 1]} : vector<8x8x2xf32> to vector<8x8x1xf32>
    %12 = vector.broadcast %11 : vector<8x8x1xf32> to vector<8x8x48xf32>
    %13 = vector.broadcast %6 : vector<1x1x48xf32> to vector<8x8x48xf32>
    %14 = arith.mulf %12, %13 : vector<8x8x48xf32>
    %15 = vector.extract_strided_slice %4 {offsets = [0, 0, 1], sizes = [8, 8, 1], strides = [1, 1, 1]} : vector<8x8x2xf32> to vector<8x8x1xf32>
    %16 = vector.broadcast %15 : vector<8x8x1xf32> to vector<8x8x48xf32>
    %17 = vector.broadcast %8 : vector<1x1x48xf32> to vector<8x8x48xf32>
    %18 = arith.mulf %16, %17 : vector<8x8x48xf32>
    %19 = arith.addf %14, %18 : vector<8x8x48xf32>
    %20 = vector.broadcast %10 : vector<1x1x48xf32> to vector<8x8x48xf32>
    %21 = arith.addf %19, %20 : vector<8x8x48xf32>
    %22 = tpu.iota {dimensions = array<i32: 0>} : vector<8x8xi32>
    %23 = tpu.iota {dimensions = array<i32: 1>} : vector<8x8xi32>
    %24 = arith.cmpi sge, %22, %23 : vector<8x8xi32>
    %25 = vector.extract_strided_slice %21 {offsets = [0, 0, 0], sizes = [8, 8, 8], strides = [1, 1, 1]} : vector<8x8x48xf32> to vector<8x8x8xf32>
    %26 = vector.extract_strided_slice %21 {offsets = [0, 0, 16], sizes = [8, 8, 8], strides = [1, 1, 1]} : vector<8x8x48xf32> to vector<8x8x8xf32>
    %27 = vector.extract_strided_slice %21 {offsets = [0, 0, 32], sizes = [8, 8, 8], strides = [1, 1, 1]} : vector<8x8x48xf32> to vector<8x8x8xf32>
    "tpu.trace_start"() <{level = 10 : i32, message = "bct,bst->bcs"}> : () -> ()
    %cst = arith.constant dense<0.000000e+00> : vector<8x8x8xf32>
    %28 = tpu.matmul %26, %25, %cst {dimension_numbers = #tpu.dot_dimension_numbers<[2], [2], [1], [1], [0, 0, 0, 1, 1, 1], [0], [0]>, precision = #tpu.contract_precision<fp32>} : vector<8x8x8xf32>, vector<8x8x8xf32>, vector<8x8x8xf32> -> vector<8x8x8xf32>
    %cst_8 = arith.constant 0xFF800000 : f32
    "tpu.trace_stop"() : () -> ()
    %29 = vector.shape_cast %24 : vector<8x8xi1> to vector<1x8x8xi1>
    %30 = vector.broadcast %29 : vector<1x8x8xi1> to vector<8x8x8xi1>
    %31 = vector.broadcast %cst_8 : f32 to vector<8x8x8xf32>
    %32 = arith.select %30, %28, %31 : vector<8x8x8xi1>, vector<8x8x8xf32>
    %cst_9 = arith.constant dense<0xFF800000> : vector<8x8xf32>
    %33 = vector.multi_reduction <maximumf>, %32, %cst_9 [2] : vector<8x8x8xf32> to vector<8x8xf32>
    %34 = vector.shape_cast %33 : vector<8x8xf32> to vector<8x8x1xf32>
    %35 = vector.broadcast %34 : vector<8x8x1xf32> to vector<8x8x8xf32>
    %36 = arith.subf %32, %35 : vector<8x8x8xf32>
    %37 = math.exp %36 : vector<8x8x8xf32>
    %cst_10 = arith.constant dense<0.000000e+00> : vector<8x8xf32>
    %38 = vector.multi_reduction <add>, %37, %cst_10 [2] : vector<8x8x8xf32> to vector<8x8xf32>
    %39 = vector.shape_cast %38 : vector<8x8xf32> to vector<8x8x1xf32>
    %40 = vector.broadcast %39 : vector<8x8x1xf32> to vector<8x8x8xf32>
    %41 = arith.divf %37, %40 : vector<8x8x8xf32>
    "tpu.trace_start"() <{level = 10 : i32, message = "bcs,bst->bct"}> : () -> ()
    %cst_11 = arith.constant dense<0.000000e+00> : vector<8x8x8xf32>
    %42 = tpu.matmul %41, %27, %cst_11 {dimension_numbers = #tpu.dot_dimension_numbers<[2], [1], [1], [2], [0, 0, 0, 1, 1, 2], [0], [0]>, precision = #tpu.contract_precision<fp32>} : vector<8x8x8xf32>, vector<8x8x8xf32>, vector<8x8x8xf32> -> vector<8x8x8xf32>
    "tpu.trace_stop"() : () -> ()
    %43 = vector.extract_strided_slice %21 {offsets = [0, 0, 8], sizes = [8, 8, 8], strides = [1, 1, 1]} : vector<8x8x48xf32> to vector<8x8x8xf32>
    %44 = vector.extract_strided_slice %21 {offsets = [0, 0, 24], sizes = [8, 8, 8], strides = [1, 1, 1]} : vector<8x8x48xf32> to vector<8x8x8xf32>
    %45 = vector.extract_strided_slice %21 {offsets = [0, 0, 40], sizes = [8, 8, 8], strides = [1, 1, 1]} : vector<8x8x48xf32> to vector<8x8x8xf32>
    "tpu.trace_start"() <{level = 10 : i32, message = "bct,bst->bcs"}> : () -> ()
    %cst_12 = arith.constant dense<0.000000e+00> : vector<8x8x8xf32>
    %46 = tpu.matmul %44, %43, %cst_12 {dimension_numbers = #tpu.dot_dimension_numbers<[2], [2], [1], [1], [0, 0, 0, 1, 1, 1], [0], [0]>, precision = #tpu.contract_precision<fp32>} : vector<8x8x8xf32>, vector<8x8x8xf32>, vector<8x8x8xf32> -> vector<8x8x8xf32>
    %cst_13 = arith.constant 0xFF800000 : f32
    "tpu.trace_stop"() : () -> ()
    %47 = vector.shape_cast %24 : vector<8x8xi1> to vector<1x8x8xi1>
    %48 = vector.broadcast %47 : vector<1x8x8xi1> to vector<8x8x8xi1>
    %49 = vector.broadcast %cst_13 : f32 to vector<8x8x8xf32>
    %50 = arith.select %48, %46, %49 : vector<8x8x8xi1>, vector<8x8x8xf32>
    %cst_14 = arith.constant dense<0xFF800000> : vector<8x8xf32>
    %51 = vector.multi_reduction <maximumf>, %50, %cst_14 [2] : vector<8x8x8xf32> to vector<8x8xf32>
    %52 = vector.shape_cast %51 : vector<8x8xf32> to vector<8x8x1xf32>
    %53 = vector.broadcast %52 : vector<8x8x1xf32> to vector<8x8x8xf32>
    %54 = arith.subf %50, %53 : vector<8x8x8xf32>
    %55 = math.exp %54 : vector<8x8x8xf32>
    %cst_15 = arith.constant dense<0.000000e+00> : vector<8x8xf32>
    %56 = vector.multi_reduction <add>, %55, %cst_15 [2] : vector<8x8x8xf32> to vector<8x8xf32>
    %57 = vector.shape_cast %56 : vector<8x8xf32> to vector<8x8x1xf32>
    %58 = vector.broadcast %57 : vector<8x8x1xf32> to vector<8x8x8xf32>
    %59 = arith.divf %55, %58 : vector<8x8x8xf32>
    "tpu.trace_start"() <{level = 10 : i32, message = "bcs,bst->bct"}> : () -> ()
    %cst_16 = arith.constant dense<0.000000e+00> : vector<8x8x8xf32>
    %60 = tpu.matmul %59, %45, %cst_16 {dimension_numbers = #tpu.dot_dimension_numbers<[2], [1], [1], [2], [0, 0, 0, 1, 1, 2], [0], [0]>, precision = #tpu.contract_precision<fp32>} : vector<8x8x8xf32>, vector<8x8x8xf32>, vector<8x8x8xf32> -> vector<8x8x8xf32>
    "tpu.trace_stop"() : () -> ()
    %61 = tpu.concatenate %42, %60 in 2 : vector<8x8x8xf32>, vector<8x8x8xf32> -> vector<8x8x16xf32>
    %c0_17 = arith.constant 0 : index
    %c0_18 = arith.constant 0 : index
    %62 = vector.load %arg3[%c0_17, %c0_18] : memref<17x2xf32, #tpu.memory_space<vmem>>, vector<16x2xf32>
    %c16 = arith.constant 16 : index
    %c0_19 = arith.constant 0 : index
    %63 = vector.load %arg3[%c16, %c0_19] : memref<17x2xf32, #tpu.memory_space<vmem>>, vector<1x2xf32>
    "tpu.trace_start"() <{level = 10 : i32, message = "bcf,fd->bcd"}> : () -> ()
    %cst_20 = arith.constant dense<0.000000e+00> : vector<8x8x2xf32>
    %64 = tpu.matmul %61, %62, %cst_20 {dimension_numbers = #tpu.dot_dimension_numbers<[2], [0], [0, 1], [1], [0, 0, 0, 1, 1, 1], [], []>, precision = #tpu.contract_precision<fp32>} : vector<8x8x16xf32>, vector<16x2xf32>, vector<8x8x2xf32> -> vector<8x8x2xf32>
    "tpu.trace_stop"() : () -> ()
    %65 = vector.shape_cast %63 : vector<1x2xf32> to vector<1x1x2xf32>
    %66 = vector.broadcast %65 : vector<1x1x2xf32> to vector<8x8x2xf32>
    %67 = arith.addf %64, %66 : vector<8x8x2xf32>
    %c0_21 = arith.constant 0 : index
    %c0_22 = arith.constant 0 : index
    %c0_23 = arith.constant 0 : index
    %68 = vector.load %arg4[%c0_21, %c0_22, %c0_23] : memref<8x8x2xf32, #tpu.memory_space<vmem>>, vector<8x8x2xf32>
    tpu.vector_store %arg4[%c0_21, %c0_22, %c0_23], %67 {strides = array<i32>} : memref<8x8x2xf32, #tpu.memory_space<vmem>>, vector<8x8x2xf32>,
    return
  }
}

</mosaic_0001>

<llo_original>
// kernel: tpu_custom_call.1
$region0: #{tpu_custom_call.1}
  #allocation0 [shape = 'u32[]', space=smem, size = 0x4, offset = 0x4, fixed_abs, tag = 'smem constant byte address 0x4 - core index']
  #allocation1 [shape = 'u32[72,128]{1,0:T(1,128)}', space=vmem, size = 0x9000, scoped, tag = 'internal scratch']
  %s0 = inlined_call_operand.vmem [shape: f32[8,8,2], index: 0, kind: input, shape index: {}]
  %s1 = inlined_call_operand.vmem [shape: f32[8,2], index: 1, kind: input, shape index: {}]
  %s2 = inlined_call_operand.vmem [shape: f32[3,48], index: 2, kind: input, shape index: {}]
  %s3 = inlined_call_operand.vmem [shape: f32[17,2], index: 3, kind: input, shape index: {}]
  %s4 = inlined_call_operand.vmem [shape: f32[8,8,2], index: 4, kind: output, shape index: {}]
  %s5 = sld [smem:[#allocation0]]
  $region26: #{tpu_custom_call.1} parent=0
    _
  %s7 = ssub.s32 1, %s5
  %s8 = scalar_select 0, %s7, %s5
  // Predicated region
  $region2: #{tpu_custom_call.1} parent=0 // pred_check
    _
  $region3: #{tpu_custom_call.1} parent=0 // pred_check_branch
    %10 = sbr.rel (0) target = $region5
  $region4: #{tpu_custom_call.1} parent=0 // pred_region
    _
  $region5: #{tpu_custom_call.1} parent=0 // pred_fallthru
    _
  // Predicated region
  $region6: #{tpu_custom_call.1} parent=0 // pred_check
    _
  $region7: #{tpu_custom_call.1} parent=0 // pred_check_branch
    %12 = sbr.rel (0) target = $region9
  $region8: #{tpu_custom_call.1} parent=0 // pred_region
    _
  $region9: #{tpu_custom_call.1} parent=0 // pred_fallthru
    _
  // Predicated region
  $region10: #{tpu_custom_call.1} parent=0 // pred_check
    _
  $region11: #{tpu_custom_call.1} parent=0 // pred_check_branch
    %14 = sbr.rel (0) target = $region13
  $region12: #{tpu_custom_call.1} parent=0 // pred_region
    _
  $region13: #{tpu_custom_call.1} parent=0 // pred_fallthru
    _
  // Predicated region
  $region14: #{tpu_custom_call.1} parent=0 // pred_check
    _
  $region15: #{tpu_custom_call.1} parent=0 // pred_check_branch
    %16 = sbr.rel (0) target = $region17
  $region16: #{tpu_custom_call.1} parent=0 // pred_region
    _
  $region17: #{tpu_custom_call.1} parent=0 // pred_fallthru
    _
  %v17 = vld [vmem:[%s0] sm:$0xff]
  %v18 = vld [vmem:[%s0 + $0x8] sm:$0xff]
  %v19 = vld [vmem:[%s0 + $0x10] sm:$0xff]
  %v20 = vld [vmem:[%s0 + $0x18] sm:$0xff]
  %v21 = vld [vmem:[%s0 + $0x20] sm:$0xff]
  %v22 = vld [vmem:[%s0 + $0x28] sm:$0xff]
  %v23 = vld [vmem:[%s0 + $0x30] sm:$0xff]
  %v24 = vld [vmem:[%s0 + $0x38] sm:$0xff]
  %v25 = vld [vmem:[%s1] sm:$0xff]
  %v26 = vadd.f32 %v17, %v25
  %v27 = vadd.f32 %v18, %v25
  %v28 = vadd.f32 %v19, %v25
  %v29 = vadd.f32 %v20, %v25
  %v30 = vadd.f32 %v21, %v25
  %v31 = vadd.f32 %v22, %v25
  %v32 = vadd.f32 %v23, %v25
  %v33 = vadd.f32 %v24, %v25
  %v34 = vld [vmem:[%s2] sm:$0x1]
  %v35 = vld [vmem:[%s2 + $0x1] sm:$0x1]
  %v36 = vld [vmem:[%s2 + $0x2] sm:$0x1]
  %38 = vset.pattern.permute.xlu0 0
  %39 = vperm.xlu0 %38, %v26
  %v40 = vpop.permute.xlu0 %39
  %43 = vset.pattern.permute.xlu0 0
  %44 = vperm.xlu0 %43, %v27
  %v45 = vpop.permute.xlu0 %44
  %48 = vset.pattern.permute.xlu0 0
  %49 = vperm.xlu0 %48, %v28
  %v50 = vpop.permute.xlu0 %49
  %53 = vset.pattern.permute.xlu0 0
  %54 = vperm.xlu0 %53, %v29
  %v55 = vpop.permute.xlu0 %54
  %58 = vset.pattern.permute.xlu0 0
  %59 = vperm.xlu0 %58, %v30
  %v60 = vpop.permute.xlu0 %59
  %63 = vset.pattern.permute.xlu0 0
  %64 = vperm.xlu0 %63, %v31
  %v65 = vpop.permute.xlu0 %64
  %68 = vset.pattern.permute.xlu0 0
  %69 = vperm.xlu0 %68, %v32
  %v70 = vpop.permute.xlu0 %69
  %73 = vset.pattern.permute.xlu0 0
  %74 = vperm.xlu0 %73, %v33
  %v75 = vpop.permute.xlu0 %74
  %v77 = vperm.slane %v34, 0
  %v78 = vmul.f32 %v40, %v77
  %v79 = vmul.f32 %v45, %v77
  %v80 = vmul.f32 %v50, %v77
  %v81 = vmul.f32 %v55, %v77
  %v82 = vmul.f32 %v60, %v77
  %v83 = vmul.f32 %v65, %v77
  %v84 = vmul.f32 %v70, %v77
  %v85 = vmul.f32 %v75, %v77
  %86 = vset.pattern.permute.xlu0 1
  %87 = vperm.xlu0 %86, %v26
  %v88 = vpop.permute.xlu0 %87
  %90 = vset.pattern.permute.xlu0 1
  %91 = vperm.xlu0 %90, %v27
  %v92 = vpop.permute.xlu0 %91
  %94 = vset.pattern.permute.xlu0 1
  %95 = vperm.xlu0 %94, %v28
  %v96 = vpop.permute.xlu0 %95
  %98 = vset.pattern.permute.xlu0 1
  %99 = vperm.xlu0 %98, %v29
  %v100 = vpop.permute.xlu0 %99
  %102 = vset.pattern.permute.xlu0 1
  %103 = vperm.xlu0 %102, %v30
  %v104 = vpop.permute.xlu0 %103
  %106 = vset.pattern.permute.xlu0 1
  %107 = vperm.xlu0 %106, %v31
  %v108 = vpop.permute.xlu0 %107
  %110 = vset.pattern.permute.xlu0 1
  %111 = vperm.xlu0 %110, %v32
  %v112 = vpop.permute.xlu0 %111
  %114 = vset.pattern.permute.xlu0 1
  %115 = vperm.xlu0 %114, %v33
  %v116 = vpop.permute.xlu0 %115
  %v118 = vperm.slane %v35, 0
  %v119 = vmul.f32 %v88, %v118
  %v120 = vmul.f32 %v92, %v118
  %v121 = vmul.f32 %v96, %v118
  %v122 = vmul.f32 %v100, %v118
  %v123 = vmul.f32 %v104, %v118
  %v124 = vmul.f32 %v108, %v118
  %v125 = vmul.f32 %v112, %v118
  %v126 = vmul.f32 %v116, %v118
  %v127 = vadd.f32 %v78, %v119
  %v128 = vadd.f32 %v79, %v120
  %v129 = vadd.f32 %v80, %v121
  %v130 = vadd.f32 %v81, %v122
  %v131 = vadd.f32 %v82, %v123
  %v132 = vadd.f32 %v83, %v124
  %v133 = vadd.f32 %v84, %v125
  %v134 = vadd.f32 %v85, %v126
  %v135 = vperm.slane %v36, 0
  %v136 = vadd.f32 %v127, %v135
  %v137 = vadd.f32 %v128, %v135
  %v138 = vadd.f32 %v129, %v135
  %v139 = vadd.f32 %v130, %v135
  %v140 = vadd.f32 %v131, %v135
  %v141 = vadd.f32 %v132, %v135
  %v142 = vadd.f32 %v133, %v135
  %v143 = vadd.f32 %v134, %v135
  %v144 = vlaneseq
  %v145 = vshrl.u32 %v144, 7
  %v146 = vlaneseq
  %v147 = vand.u32 %v146, 127
  %vm148 = vcmp.ge.s32.totalorder %v145, %v147
  %150 = vrot.lane.b32.xlu0 %v136, 112
  %v151 = vpop.permute.xlu0 %150
  %vm152 = vcmask 64512
  %v153 = vsel %vm152, %v151, 0
  %v155 = vsel %vm152, %v136, 0
  %157 = vmatpush.xpose.msra.mxu0 0.0
  %158 = vmatpush.xpose.msra.mxu0 0.0
  %159 = vmatpush.xpose.msra.mxu0 0.0
  %160 = vmatpush.xpose.msra.mxu0 0.0
  %161 = vmatpush.xpose.msra.mxu0 0.0
  %162 = vmatpush.xpose.msra.mxu0 0.0
  %163 = vmatpush.xpose.msra.mxu0 0.0
  %164 = vmatpush.xpose.msra.mxu0 0.0
  %165 = vmatpush.xpose.msra.mxu0 0.0
  %166 = vmatpush.xpose.msra.mxu0 0.0
  %167 = vmatpush.xpose.msra.mxu0 0.0
  %168 = vmatpush.xpose.msra.mxu0 0.0
  %169 = vmatpush.xpose.msra.mxu0 0.0
  %170 = vmatpush.xpose.msra.mxu0 0.0
  %171 = vmatpush.xpose.msra.mxu0 0.0
  %v172 = vand.u32 %v155, 4294901760
  %173 = vmatpush.xpose.msra.mxu0 %v172
  %v174 = vand.u32 %v153, 4294901760
  %v175 = vsub.f32 %v153, %v174
  %v176 = vand.u32 %v175, 4294901760
  %v177 = vsub.f32 %v175, %v176
  %v178 = vand.u32 %v177, 4294901760
  %179 = vmatmul.f32.gmra.mxu0 %v178
  %v180 = vpop.f32.mrf.mxu0
  %v181 = vadd.f32 0.0, %v180
  %182 = vdwg.mxu0
  %183 = vmatpush.xpose.msra.mxu0 0.0
  %184 = vmatpush.xpose.msra.mxu0 0.0
  %185 = vmatpush.xpose.msra.mxu0 0.0
  %186 = vmatpush.xpose.msra.mxu0 0.0
  %187 = vmatpush.xpose.msra.mxu0 0.0
  %188 = vmatpush.xpose.msra.mxu0 0.0
  %189 = vmatpush.xpose.msra.mxu0 0.0
  %190 = vmatpush.xpose.msra.mxu0 0.0
  %191 = vmatpush.xpose.msra.mxu0 0.0
  %192 = vmatpush.xpose.msra.mxu0 0.0
  %193 = vmatpush.xpose.msra.mxu0 0.0
  %194 = vmatpush.xpose.msra.mxu0 0.0
  %195 = vmatpush.xpose.msra.mxu0 0.0
  %196 = vmatpush.xpose.msra.mxu0 0.0
  %197 = vmatpush.xpose.msra.mxu0 0.0
  %v198 = vand.u32 %v155, 4294901760
  %v199 = vsub.f32 %v155, %v198
  %v200 = vand.u32 %v199, 4294901760
  %v201 = vsub.f32 %v199, %v200
  %v202 = vand.u32 %v201, 4294901760
  %203 = vmatpush.xpose.msra.mxu0 %v202
  %v204 = vand.u32 %v153, 4294901760
  %205 = vmatmul.f32.gmra.mxu0 %v204
  %v206 = vpop.f32.mrf.mxu0
  %v207 = vadd.f32 %v181, %v206
  %208 = vdwg.mxu0
  %209 = vmatpush.xpose.msra.mxu0 0.0
  %210 = vmatpush.xpose.msra.mxu0 0.0
  %211 = vmatpush.xpose.msra.mxu0 0.0
  %212 = vmatpush.xpose.msra.mxu0 0.0
  %213 = vmatpush.xpose.msra.mxu0 0.0
  %214 = vmatpush.xpose.msra.mxu0 0.0
  %215 = vmatpush.xpose.msra.mxu0 0.0
  %216 = vmatpush.xpose.msra.mxu0 0.0
  %217 = vmatpush.xpose.msra.mxu0 0.0
  %218 = vmatpush.xpose.msra.mxu0 0.0
  %219 = vmatpush.xpose.msra.mxu0 0.0
  %220 = vmatpush.xpose.msra.mxu0 0.0
  %221 = vmatpush.xpose.msra.mxu0 0.0
  %222 = vmatpush.xpose.msra.mxu0 0.0
  %223 = vmatpush.xpose.msra.mxu0 0.0
  %v224 = vand.u32 %v155, 4294901760
  %v225 = vsub.f32 %v155, %v224
  %226 = vmatpush.xpose.msra.mxu0 %v225
  %v227 = vand.u32 %v153, 4294901760
  %v228 = vsub.f32 %v153, %v227
  %229 = vmatmul.f32.gmra.mxu0 %v228
  %v230 = vpop.f32.mrf.mxu0
  %v231 = vadd.f32 %v207, %v230
  %232 = vdwg.mxu0
  %233 = vmatpush.xpose.msra.mxu0 0.0
  %234 = vmatpush.xpose.msra.mxu0 0.0
  %235 = vmatpush.xpose.msra.mxu0 0.0
  %236 = vmatpush.xpose.msra.mxu0 0.0
  %237 = vmatpush.xpose.msra.mxu0 0.0
  %238 = vmatpush.xpose.msra.mxu0 0.0
  %239 = vmatpush.xpose.msra.mxu0 0.0
  %240 = vmatpush.xpose.msra.mxu0 0.0
  %241 = vmatpush.xpose.msra.mxu0 0.0
  %242 = vmatpush.xpose.msra.mxu0 0.0
  %243 = vmatpush.xpose.msra.mxu0 0.0
  %244 = vmatpush.xpose.msra.mxu0 0.0
  %245 = vmatpush.xpose.msra.mxu0 0.0
  %246 = vmatpush.xpose.msra.mxu0 0.0
  %247 = vmatpush.xpose.msra.mxu0 0.0
  %v248 = vand.u32 %v155, 4294901760
  %249 = vmatpush.xpose.msra.mxu0 %v248
  %v250 = vand.u32 %v153, 4294901760
  %v251 = vsub.f32 %v153, %v250
  %v252 = vand.u32 %v251, 4294901760
  %253 = vmatmul.f32.gmra.mxu0 %v252
  %v254 = vpop.f32.mrf.mxu0
  %v255 = vadd.f32 %v231, %v254
  %256 = vdwg.mxu0
  %257 = vmatpush.xpose.msra.mxu0 0.0
  %258 = vmatpush.xpose.msra.mxu0 0.0
  %259 = vmatpush.xpose.msra.mxu0 0.0
  %260 = vmatpush.xpose.msra.mxu0 0.0
  %261 = vmatpush.xpose.msra.mxu0 0.0
  %262 = vmatpush.xpose.msra.mxu0 0.0
  %263 = vmatpush.xpose.msra.mxu0 0.0
  %264 = vmatpush.xpose.msra.mxu0 0.0
  %265 = vmatpush.xpose.msra.mxu0 0.0
  %266 = vmatpush.xpose.msra.mxu0 0.0
  %267 = vmatpush.xpose.msra.mxu0 0.0
  %268 = vmatpush.xpose.msra.mxu0 0.0
  %269 = vmatpush.xpose.msra.mxu0 0.0
  %270 = vmatpush.xpose.msra.mxu0 0.0
  %271 = vmatpush.xpose.msra.mxu0 0.0
  %v272 = vand.u32 %v155, 4294901760
  %v273 = vsub.f32 %v155, %v272
  %v274 = vand.u32 %v273, 4294901760
  %275 = vmatpush.xpose.msra.mxu0 %v274
  %v276 = vand.u32 %v153, 4294901760
  %277 = vmatmul.f32.gmra.mxu0 %v276
  %v278 = vpop.f32.mrf.mxu0
  %v279 = vadd.f32 %v255, %v278
  %280 = vdwg.mxu0
  %281 = vmatpush.xpose.msra.mxu0 0.0
  %282 = vmatpush.xpose.msra.mxu0 0.0
  %283 = vmatpush.xpose.msra.mxu0 0.0
  %284 = vmatpush.xpose.msra.mxu0 0.0
  %285 = vmatpush.xpose.msra.mxu0 0.0
  %286 = vmatpush.xpose.msra.mxu0 0.0
  %287 = vmatpush.xpose.msra.mxu0 0.0
  %288 = vmatpush.xpose.msra.mxu0 0.0
  %289 = vmatpush.xpose.msra.mxu0 0.0
  %290 = vmatpush.xpose.msra.mxu0 0.0
  %291 = vmatpush.xpose.msra.mxu0 0.0
  %292 = vmatpush.xpose.msra.mxu0 0.0
  %293 = vmatpush.xpose.msra.mxu0 0.0
  %294 = vmatpush.xpose.msra.mxu0 0.0
  %295 = vmatpush.xpose.msra.mxu0 0.0
  %v296 = vand.u32 %v155, 4294901760
  %297 = vmatpush.xpose.msra.mxu0 %v296
  %v298 = vand.u32 %v153, 4294901760
  %299 = vmatmul.f32.gmra.mxu0 %v298
  %v300 = vpop.f32.mrf.mxu0
  %v301 = vadd.f32 %v279, %v300
  %302 = vdwg.mxu0
  %304 = vrot.lane.b32.xlu0 %v137, 112
  %v305 = vpop.permute.xlu0 %304
  %v306 = vsel %vm152, %v305, 0
  %v308 = vsel %vm152, %v137, 0
  %310 = vmatpush.xpose.msra.mxu0 0.0
  %311 = vmatpush.xpose.msra.mxu0 0.0
  %312 = vmatpush.xpose.msra.mxu0 0.0
  %313 = vmatpush.xpose.msra.mxu0 0.0
  %314 = vmatpush.xpose.msra.mxu0 0.0
  %315 = vmatpush.xpose.msra.mxu0 0.0
  %316 = vmatpush.xpose.msra.mxu0 0.0
  %317 = vmatpush.xpose.msra.mxu0 0.0
  %318 = vmatpush.xpose.msra.mxu0 0.0
  %319 = vmatpush.xpose.msra.mxu0 0.0
  %320 = vmatpush.xpose.msra.mxu0 0.0
  %321 = vmatpush.xpose.msra.mxu0 0.0
  %322 = vmatpush.xpose.msra.mxu0 0.0
  %323 = vmatpush.xpose.msra.mxu0 0.0
  %324 = vmatpush.xpose.msra.mxu0 0.0
  %v325 = vand.u32 %v308, 4294901760
  %326 = vmatpush.xpose.msra.mxu0 %v325
  %v327 = vand.u32 %v306, 4294901760
  %v328 = vsub.f32 %v306, %v327
  %v329 = vand.u32 %v328, 4294901760
  %v330 = vsub.f32 %v328, %v329
  %v331 = vand.u32 %v330, 4294901760
  %332 = vmatmul.f32.gmra.mxu0 %v331
  %v333 = vpop.f32.mrf.mxu0
  %v334 = vadd.f32 0.0, %v333
  %335 = vdwg.mxu0
  %336 = vmatpush.xpose.msra.mxu0 0.0
  %337 = vmatpush.xpose.msra.mxu0 0.0
  %338 = vmatpush.xpose.msra.mxu0 0.0
  %339 = vmatpush.xpose.msra.mxu0 0.0
  %340 = vmatpush.xpose.msra.mxu0 0.0
  %341 = vmatpush.xpose.msra.mxu0 0.0
  %342 = vmatpush.xpose.msra.mxu0 0.0
  %343 = vmatpush.xpose.msra.mxu0 0.0
  %344 = vmatpush.xpose.msra.mxu0 0.0
  %345 = vmatpush.xpose.msra.mxu0 0.0
  %346 = vmatpush.xpose.msra.mxu0 0.0
  %347 = vmatpush.xpose.msra.mxu0 0.0
  %348 = vmatpush.xpose.msra.mxu0 0.0
  %349 = vmatpush.xpose.msra.mxu0 0.0
  %350 = vmatpush.xpose.msra.mxu0 0.0
  %v351 = vand.u32 %v308, 4294901760
  %v352 = vsub.f32 %v308, %v351
  %v353 = vand.u32 %v352, 4294901760
  %v354 = vsub.f32 %v352, %v353
  %v355 = vand.u32 %v354, 4294901760
  %356 = vmatpush.xpose.msra.mxu0 %v355
  %v357 = vand.u32 %v306, 4294901760
  %358 = vmatmul.f32.gmra.mxu0 %v357
  %v359 = vpop.f32.mrf.mxu0
  %v360 = vadd.f32 %v334, %v359
  %361 = vdwg.mxu0
  %362 = vmatpush.xpose.msra.mxu0 0.0
  %363 = vmatpush.xpose.msra.mxu0 0.0
  %364 = vmatpush.xpose.msra.mxu0 0.0
  %365 = vmatpush.xpose.msra.mxu0 0.0
  %366 = vmatpush.xpose.msra.mxu0 0.0
  %367 = vmatpush.xpose.msra.mxu0 0.0
  %368 = vmatpush.xpose.msra.mxu0 0.0
  %369 = vmatpush.xpose.msra.mxu0 0.0
  %370 = vmatpush.xpose.msra.mxu0 0.0
  %371 = vmatpush.xpose.msra.mxu0 0.0
  %372 = vmatpush.xpose.msra.mxu0 0.0
  %373 = vmatpush.xpose.msra.mxu0 0.0
  %374 = vmatpush.xpose.msra.mxu0 0.0
  %375 = vmatpush.xpose.msra.mxu0 0.0
  %376 = vmatpush.xpose.msra.mxu0 0.0
  %v377 = vand.u32 %v308, 4294901760
  %v378 = vsub.f32 %v308, %v377
  %379 = vmatpush.xpose.msra.mxu0 %v378
  %v380 = vand.u32 %v306, 4294901760
  %v381 = vsub.f32 %v306, %v380
  %382 = vmatmul.f32.gmra.mxu0 %v381
  %v383 = vpop.f32.mrf.mxu0
  %v384 = vadd.f32 %v360, %v383
  %385 = vdwg.mxu0
  %386 = vmatpush.xpose.msra.mxu0 0.0
  %387 = vmatpush.xpose.msra.mxu0 0.0
  %388 = vmatpush.xpose.msra.mxu0 0.0
  %389 = vmatpush.xpose.msra.mxu0 0.0
  %390 = vmatpush.xpose.msra.mxu0 0.0
  %391 = vmatpush.xpose.msra.mxu0 0.0
  %392 = vmatpush.xpose.msra.mxu0 0.0
  %393 = vmatpush.xpose.msra.mxu0 0.0
  %394 = vmatpush.xpose.msra.mxu0 0.0
  %395 = vmatpush.xpose.msra.mxu0 0.0
  %396 = vmatpush.xpose.msra.mxu0 0.0
  %397 = vmatpush.xpose.msra.mxu0 0.0
  %398 = vmatpush.xpose.msra.mxu0 0.0
  %399 = vmatpush.xpose.msra.mxu0 0.0
  %400 = vmatpush.xpose.msra.mxu0 0.0
  %v401 = vand.u32 %v308, 4294901760
  %402 = vmatpush.xpose.msra.mxu0 %v401
  %v403 = vand.u32 %v306, 4294901760
  %v404 = vsub.f32 %v306, %v403
  %v405 = vand.u32 %v404, 4294901760
  %406 = vmatmul.f32.gmra.mxu0 %v405
  %v407 = vpop.f32.mrf.mxu0
  %v408 = vadd.f32 %v384, %v407
  %409 = vdwg.mxu0
  %410 = vmatpush.xpose.msra.mxu0 0.0
  %411 = vmatpush.xpose.msra.mxu0 0.0
  %412 = vmatpush.xpose.msra.mxu0 0.0
  %413 = vmatpush.xpose.msra.mxu0 0.0
  %414 = vmatpush.xpose.msra.mxu0 0.0
  %415 = vmatpush.xpose.msra.mxu0 0.0
  %416 = vmatpush.xpose.msra.mxu0 0.0
  %417 = vmatpush.xpose.msra.mxu0 0.0
  %418 = vmatpush.xpose.msra.mxu0 0.0
  %419 = vmatpush.xpose.msra.mxu0 0.0
  %420 = vmatpush.xpose.msra.mxu0 0.0
  %421 = vmatpush.xpose.msra.mxu0 0.0
  %422 = vmatpush.xpose.msra.mxu0 0.0
  %423 = vmatpush.xpose.msra.mxu0 0.0
  %424 = vmatpush.xpose.msra.mxu0 0.0
  %v425 = vand.u32 %v308, 4294901760
  %v426 = vsub.f32 %v308, %v425
  %v427 = vand.u32 %v426, 4294901760
  %428 = vmatpush.xpose.msra.mxu0 %v427
  %v429 = vand.u32 %v306, 4294901760
  %430 = vmatmul.f32.gmra.mxu0 %v429
  %v431 = vpop.f32.mrf.mxu0
  %v432 = vadd.f32 %v408, %v431
  %433 = vdwg.mxu0
  %434 = vmatpush.xpose.msra.mxu0 0.0
  %435 = vmatpush.xpose.msra.mxu0 0.0
  %436 = vmatpush.xpose.msra.mxu0 0.0
  %437 = vmatpush.xpose.msra.mxu0 0.0
  %438 = vmatpush.xpose.msra.mxu0 0.0
  %439 = vmatpush.xpose.msra.mxu0 0.0
  %440 = vmatpush.xpose.msra.mxu0 0.0
  %441 = vmatpush.xpose.msra.mxu0 0.0
  %442 = vmatpush.xpose.msra.mxu0 0.0
  %443 = vmatpush.xpose.msra.mxu0 0.0
  %444 = vmatpush.xpose.msra.mxu0 0.0
  %445 = vmatpush.xpose.msra.mxu0 0.0
  %446 = vmatpush.xpose.msra.mxu0 0.0
  %447 = vmatpush.xpose.msra.mxu0 0.0
  %448 = vmatpush.xpose.msra.mxu0 0.0
  %v449 = vand.u32 %v308, 4294901760
  %450 = vmatpush.xpose.msra.mxu0 %v449
  %v451 = vand.u32 %v306, 4294901760
  %452 = vmatmul.f32.gmra.mxu0 %v451
  %v453 = vpop.f32.mrf.mxu0
  %v454 = vadd.f32 %v432, %v453
  %455 = vdwg.mxu0
  %457 = vrot.lane.b32.xlu0 %v138, 112
  %v458 = vpop.permute.xlu0 %457
  %v459 = vsel %vm152, %v458, 0
  %v461 = vsel %vm152, %v138, 0
  %463 = vmatpush.xpose.msra.mxu0 0.0
  %464 = vmatpush.xpose.msra.mxu0 0.0
  %465 = vmatpush.xpose.msra.mxu0 0.0
  %466 = vmatpush.xpose.msra.mxu0 0.0
  %467 = vmatpush.xpose.msra.mxu0 0.0
  %468 = vmatpush.xpose.msra.mxu0 0.0
  %469 = vmatpush.xpose.msra.mxu0 0.0
  %470 = vmatpush.xpose.msra.mxu0 0.0
  %471 = vmatpush.xpose.msra.mxu0 0.0
  %472 = vmatpush.xpose.msra.mxu0 0.0
  %473 = vmatpush.xpose.msra.mxu0 0.0
  %474 = vmatpush.xpose.msra.mxu0 0.0
  %475 = vmatpush.xpose.msra.mxu0 0.0
  %476 = vmatpush.xpose.msra.mxu0 0.0
  %477 = vmatpush.xpose.msra.mxu0 0.0
  %v478 = vand.u32 %v461, 4294901760
  %479 = vmatpush.xpose.msra.mxu0 %v478
  %v480 = vand.u32 %v459, 4294901760
  %v481 = vsub.f32 %v459, %v480
  %v482 = vand.u32 %v481, 4294901760
  %v483 = vsub.f32 %v481, %v482
  %v484 = vand.u32 %v483, 4294901760
  %485 = vmatmul.f32.gmra.mxu0 %v484
  %v486 = vpop.f32.mrf.mxu0
  %v487 = vadd.f32 0.0, %v486
  %488 = vdwg.mxu0
  %489 = vmatpush.xpose.msra.mxu0 0.0
  %490 = vmatpush.xpose.msra.mxu0 0.0
  %491 = vmatpush.xpose.msra.mxu0 0.0
  %492 = vmatpush.xpose.msra.mxu0 0.0
  %493 = vmatpush.xpose.msra.mxu0 0.0
  %494 = vmatpush.xpose.msra.mxu0 0.0
  %495 = vmatpush.xpose.msra.mxu0 0.0
  %496 = vmatpush.xpose.msra.mxu0 0.0
  %497 = vmatpush.xpose.msra.mxu0 0.0
  %498 = vmatpush.xpose.msra.mxu0 0.0
  %499 = vmatpush.xpose.msra.mxu0 0.0
  %500 = vmatpush.xpose.msra.mxu0 0.0
  %501 = vmatpush.xpose.msra.mxu0 0.0
  %502 = vmatpush.xpose.msra.mxu0 0.0
  %503 = vmatpush.xpose.msra.mxu0 0.0
  %v504 = vand.u32 %v461, 4294901760
  %v505 = vsub.f32 %v461, %v504
  %v506 = vand.u32 %v505, 4294901760
  %v507 = vsub.f32 %v505, %v506
  %v508 = vand.u32 %v507, 4294901760
  %509 = vmatpush.xpose.msra.mxu0 %v508
  %v510 = vand.u32 %v459, 4294901760
  %511 = vmatmul.f32.gmra.mxu0 %v510
  %v512 = vpop.f32.mrf.mxu0
  %v513 = vadd.f32 %v487, %v512
  %514 = vdwg.mxu0
  %515 = vmatpush.xpose.msra.mxu0 0.0
  %516 = vmatpush.xpose.msra.mxu0 0.0
  %517 = vmatpush.xpose.msra.mxu0 0.0
  %518 = vmatpush.xpose.msra.mxu0 0.0
  %519 = vmatpush.xpose.msra.mxu0 0.0
  %520 = vmatpush.xpose.msra.mxu0 0.0
  %521 = vmatpush.xpose.msra.mxu0 0.0
  %522 = vmatpush.xpose.msra.mxu0 0.0
  %523 = vmatpush.xpose.msra.mxu0 0.0
  %524 = vmatpush.xpose.msra.mxu0 0.0
  %525 = vmatpush.xpose.msra.mxu0 0.0
  %526 = vmatpush.xpose.msra.mxu0 0.0
  %527 = vmatpush.xpose.msra.mxu0 0.0
  %528 = vmatpush.xpose.msra.mxu0 0.0
  %529 = vmatpush.xpose.msra.mxu0 0.0
  %v530 = vand.u32 %v461, 4294901760
  %v531 = vsub.f32 %v461, %v530
  %532 = vmatpush.xpose.msra.mxu0 %v531
  %v533 = vand.u32 %v459, 4294901760
  %v534 = vsub.f32 %v459, %v533
  %535 = vmatmul.f32.gmra.mxu0 %v534
  %v536 = vpop.f32.mrf.mxu0
  %v537 = vadd.f32 %v513, %v536
  %538 = vdwg.mxu0
  %539 = vmatpush.xpose.msra.mxu0 0.0
  %540 = vmatpush.xpose.msra.mxu0 0.0
  %541 = vmatpush.xpose.msra.mxu0 0.0
  %542 = vmatpush.xpose.msra.mxu0 0.0
  %543 = vmatpush.xpose.msra.mxu0 0.0
  %544 = vmatpush.xpose.msra.mxu0 0.0
  %545 = vmatpush.xpose.msra.mxu0 0.0
  %546 = vmatpush.xpose.msra.mxu0 0.0
  %547 = vmatpush.xpose.msra.mxu0 0.0
  %548 = vmatpush.xpose.msra.mxu0 0.0
  %549 = vmatpush.xpose.msra.mxu0 0.0
  %550 = vmatpush.xpose.msra.mxu0 0.0
  %551 = vmatpush.xpose.msra.mxu0 0.0
  %552 = vmatpush.xpose.msra.mxu0 0.0
  %553 = vmatpush.xpose.msra.mxu0 0.0
  %v554 = vand.u32 %v461, 4294901760
  %555 = vmatpush.xpose.msra.mxu0 %v554
  %v556 = vand.u32 %v459, 4294901760
  %v557 = vsub.f32 %v459, %v556
  %v558 = vand.u32 %v557, 4294901760
  %559 = vmatmul.f32.gmra.mxu0 %v558
  %v560 = vpop.f32.mrf.mxu0
  %v561 = vadd.f32 %v537, %v560
  %562 = vdwg.mxu0
  %563 = vmatpush.xpose.msra.mxu0 0.0
  %564 = vmatpush.xpose.msra.mxu0 0.0
  %565 = vmatpush.xpose.msra.mxu0 0.0
  %566 = vmatpush.xpose.msra.mxu0 0.0
  %567 = vmatpush.xpose.msra.mxu0 0.0
  %568 = vmatpush.xpose.msra.mxu0 0.0
  %569 = vmatpush.xpose.msra.mxu0 0.0
  %570 = vmatpush.xpose.msra.mxu0 0.0
  %571 = vmatpush.xpose.msra.mxu0 0.0
  %572 = vmatpush.xpose.msra.mxu0 0.0
  %573 = vmatpush.xpose.msra.mxu0 0.0
  %574 = vmatpush.xpose.msra.mxu0 0.0
  %575 = vmatpush.xpose.msra.mxu0 0.0
  %576 = vmatpush.xpose.msra.mxu0 0.0
  %577 = vmatpush.xpose.msra.mxu0 0.0
  %v578 = vand.u32 %v461, 4294901760
  %v579 = vsub.f32 %v461, %v578
  %v580 = vand.u32 %v579, 4294901760
  %581 = vmatpush.xpose.msra.mxu0 %v580
  %v582 = vand.u32 %v459, 4294901760
  %583 = vmatmul.f32.gmra.mxu0 %v582
  %v584 = vpop.f32.mrf.mxu0
  %v585 = vadd.f32 %v561, %v584
  %586 = vdwg.mxu0
  %587 = vmatpush.xpose.msra.mxu0 0.0
  %588 = vmatpush.xpose.msra.mxu0 0.0
  %589 = vmatpush.xpose.msra.mxu0 0.0
  %590 = vmatpush.xpose.msra.mxu0 0.0
  %591 = vmatpush.xpose.msra.mxu0 0.0
  %592 = vmatpush.xpose.msra.mxu0 0.0
  %593 = vmatpush.xpose.msra.mxu0 0.0
  %594 = vmatpush.xpose.msra.mxu0 0.0
  %595 = vmatpush.xpose.msra.mxu0 0.0
  %596 = vmatpush.xpose.msra.mxu0 0.0
  %597 = vmatpush.xpose.msra.mxu0 0.0
  %598 = vmatpush.xpose.msra.mxu0 0.0
  %599 = vmatpush.xpose.msra.mxu0 0.0
  %600 = vmatpush.xpose.msra.mxu0 0.0
  %601 = vmatpush.xpose.msra.mxu0 0.0
  %v602 = vand.u32 %v461, 4294901760
  %603 = vmatpush.xpose.msra.mxu0 %v602
  %v604 = vand.u32 %v459, 4294901760
  %605 = vmatmul.f32.gmra.mxu0 %v604
  %v606 = vpop.f32.mrf.mxu0
  %v607 = vadd.f32 %v585, %v606
  %608 = vdwg.mxu0
  %610 = vrot.lane.b32.xlu0 %v139, 112
  %v611 = vpop.permute.xlu0 %610
  %v612 = vsel %vm152, %v611, 0
  %v614 = vsel %vm152, %v139, 0
  %616 = vmatpush.xpose.msra.mxu0 0.0
  %617 = vmatpush.xpose.msra.mxu0 0.0
  %618 = vmatpush.xpose.msra.mxu0 0.0
  %619 = vmatpush.xpose.msra.mxu0 0.0
  %620 = vmatpush.xpose.msra.mxu0 0.0
  %621 = vmatpush.xpose.msra.mxu0 0.0
  %622 = vmatpush.xpose.msra.mxu0 0.0
  %623 = vmatpush.xpose.msra.mxu0 0.0
  %624 = vmatpush.xpose.msra.mxu0 0.0
  %625 = vmatpush.xpose.msra.mxu0 0.0
  %626 = vmatpush.xpose.msra.mxu0 0.0
  %627 = vmatpush.xpose.msra.mxu0 0.0
  %628 = vmatpush.xpose.msra.mxu0 0.0
  %629 = vmatpush.xpose.msra.mxu0 0.0
  %630 = vmatpush.xpose.msra.mxu0 0.0
  %v631 = vand.u32 %v614, 4294901760
  %632 = vmatpush.xpose.msra.mxu0 %v631
  %v633 = vand.u32 %v612, 4294901760
  %v634 = vsub.f32 %v612, %v633
  %v635 = vand.u32 %v634, 4294901760
  %v636 = vsub.f32 %v634, %v635
  %v637 = vand.u32 %v636, 4294901760
  %638 = vmatmul.f32.gmra.mxu0 %v637
  %v639 = vpop.f32.mrf.mxu0
  %v640 = vadd.f32 0.0, %v639
  %641 = vdwg.mxu0
  %642 = vmatpush.xpose.msra.mxu0 0.0
  %643 = vmatpush.xpose.msra.mxu0 0.0
  %644 = vmatpush.xpose.msra.mxu0 0.0
  %645 = vmatpush.xpose.msra.mxu0 0.0
  %646 = vmatpush.xpose.msra.mxu0 0.0
  %647 = vmatpush.xpose.msra.mxu0 0.0
  %648 = vmatpush.xpose.msra.mxu0 0.0
  %649 = vmatpush.xpose.msra.mxu0 0.0
  %650 = vmatpush.xpose.msra.mxu0 0.0
  %651 = vmatpush.xpose.msra.mxu0 0.0
  %652 = vmatpush.xpose.msra.mxu0 0.0
  %653 = vmatpush.xpose.msra.mxu0 0.0
  %654 = vmatpush.xpose.msra.mxu0 0.0
  %655 = vmatpush.xpose.msra.mxu0 0.0
  %656 = vmatpush.xpose.msra.mxu0 0.0
  %v657 = vand.u32 %v614, 4294901760
  %v658 = vsub.f32 %v614, %v657
  %v659 = vand.u32 %v658, 4294901760
  %v660 = vsub.f32 %v658, %v659
  %v661 = vand.u32 %v660, 4294901760
  %662 = vmatpush.xpose.msra.mxu0 %v661
  %v663 = vand.u32 %v612, 4294901760
  %664 = vmatmul.f32.gmra.mxu0 %v663
  %v665 = vpop.f32.mrf.mxu0
  %v666 = vadd.f32 %v640, %v665
  %667 = vdwg.mxu0
  %668 = vmatpush.xpose.msra.mxu0 0.0
  %669 = vmatpush.xpose.msra.mxu0 0.0
  %670 = vmatpush.xpose.msra.mxu0 0.0
  %671 = vmatpush.xpose.msra.mxu0 0.0
  %672 = vmatpush.xpose.msra.mxu0 0.0
  %673 = vmatpush.xpose.msra.mxu0 0.0
  %674 = vmatpush.xpose.msra.mxu0 0.0
  %675 = vmatpush.xpose.msra.mxu0 0.0
  %676 = vmatpush.xpose.msra.mxu0 0.0
  %677 = vmatpush.xpose.msra.mxu0 0.0
  %678 = vmatpush.xpose.msra.mxu0 0.0
  %679 = vmatpush.xpose.msra.mxu0 0.0
  %680 = vmatpush.xpose.msra.mxu0 0.0
  %681 = vmatpush.xpose.msra.mxu0 0.0
  %682 = vmatpush.xpose.msra.mxu0 0.0
  %v683 = vand.u32 %v614, 4294901760
  %v684 = vsub.f32 %v614, %v683
  %685 = vmatpush.xpose.msra.mxu0 %v684
  %v686 = vand.u32 %v612, 4294901760
  %v687 = vsub.f32 %v612, %v686
  %688 = vmatmul.f32.gmra.mxu0 %v687
  %v689 = vpop.f32.mrf.mxu0
  %v690 = vadd.f32 %v666, %v689
  %691 = vdwg.mxu0
  %692 = vmatpush.xpose.msra.mxu0 0.0
  %693 = vmatpush.xpose.msra.mxu0 0.0
  %694 = vmatpush.xpose.msra.mxu0 0.0
  %695 = vmatpush.xpose.msra.mxu0 0.0
  %696 = vmatpush.xpose.msra.mxu0 0.0
  %697 = vmatpush.xpose.msra.mxu0 0.0
  %698 = vmatpush.xpose.msra.mxu0 0.0
  %699 = vmatpush.xpose.msra.mxu0 0.0
  %700 = vmatpush.xpose.msra.mxu0 0.0
  %701 = vmatpush.xpose.msra.mxu0 0.0
  %702 = vmatpush.xpose.msra.mxu0 0.0
  %703 = vmatpush.xpose.msra.mxu0 0.0
  %704 = vmatpush.xpose.msra.mxu0 0.0
  %705 = vmatpush.xpose.msra.mxu0 0.0
  %706 = vmatpush.xpose.msra.mxu0 0.0
  %v707 = vand.u32 %v614, 4294901760
  %708 = vmatpush.xpose.msra.mxu0 %v707
  %v709 = vand.u32 %v612, 4294901760
  %v710 = vsub.f32 %v612, %v709
  %v711 = vand.u32 %v710, 4294901760
  %712 = vmatmul.f32.gmra.mxu0 %v711
  %v713 = vpop.f32.mrf.mxu0
  %v714 = vadd.f32 %v690, %v713
  %715 = vdwg.mxu0
  %716 = vmatpush.xpose.msra.mxu0 0.0
  %717 = vmatpush.xpose.msra.mxu0 0.0
  %718 = vmatpush.xpose.msra.mxu0 0.0
  %719 = vmatpush.xpose.msra.mxu0 0.0
  %720 = vmatpush.xpose.msra.mxu0 0.0
  %721 = vmatpush.xpose.msra.mxu0 0.0
  %722 = vmatpush.xpose.msra.mxu0 0.0
  %723 = vmatpush.xpose.msra.mxu0 0.0
  %724 = vmatpush.xpose.msra.mxu0 0.0
  %725 = vmatpush.xpose.msra.mxu0 0.0
  %726 = vmatpush.xpose.msra.mxu0 0.0
  %727 = vmatpush.xpose.msra.mxu0 0.0
  %728 = vmatpush.xpose.msra.mxu0 0.0
  %729 = vmatpush.xpose.msra.mxu0 0.0
  %730 = vmatpush.xpose.msra.mxu0 0.0
  %v731 = vand.u32 %v614, 4294901760
  %v732 = vsub.f32 %v614, %v731
  %v733 = vand.u32 %v732, 4294901760
  %734 = vmatpush.xpose.msra.mxu0 %v733
  %v735 = vand.u32 %v612, 4294901760
  %736 = vmatmul.f32.gmra.mxu0 %v735
  %v737 = vpop.f32.mrf.mxu0
  %v738 = vadd.f32 %v714, %v737
  %739 = vdwg.mxu0
  %740 = vmatpush.xpose.msra.mxu0 0.0
  %741 = vmatpush.xpose.msra.mxu0 0.0
  %742 = vmatpush.xpose.msra.mxu0 0.0
  %743 = vmatpush.xpose.msra.mxu0 0.0
  %744 = vmatpush.xpose.msra.mxu0 0.0
  %745 = vmatpush.xpose.msra.mxu0 0.0
  %746 = vmatpush.xpose.msra.mxu0 0.0
  %747 = vmatpush.xpose.msra.mxu0 0.0
  %748 = vmatpush.xpose.msra.mxu0 0.0
  %749 = vmatpush.xpose.msra.mxu0 0.0
  %750 = vmatpush.xpose.msra.mxu0 0.0
  %751 = vmatpush.xpose.msra.mxu0 0.0
  %752 = vmatpush.xpose.msra.mxu0 0.0
  %753 = vmatpush.xpose.msra.mxu0 0.0
  %754 = vmatpush.xpose.msra.mxu0 0.0
  %v755 = vand.u32 %v614, 4294901760
  %756 = vmatpush.xpose.msra.mxu0 %v755
  %v757 = vand.u32 %v612, 4294901760
  %758 = vmatmul.f32.gmra.mxu0 %v757
  %v759 = vpop.f32.mrf.mxu0
  %v760 = vadd.f32 %v738, %v759
  %761 = vdwg.mxu0
  %763 = vrot.lane.b32.xlu0 %v140, 112
  %v764 = vpop.permute.xlu0 %763
  %v765 = vsel %vm152, %v764, 0
  %v767 = vsel %vm152, %v140, 0
  %769 = vmatpush.xpose.msra.mxu0 0.0
  %770 = vmatpush.xpose.msra.mxu0 0.0
  %771 = vmatpush.xpose.msra.mxu0 0.0
  %772 = vmatpush.xpose.msra.mxu0 0.0
  %773 = vmatpush.xpose.msra.mxu0 0.0
  %774 = vmatpush.xpose.msra.mxu0 0.0
  %775 = vmatpush.xpose.msra.mxu0 0.0
  %776 = vmatpush.xpose.msra.mxu0 0.0
  %777 = vmatpush.xpose.msra.mxu0 0.0
  %778 = vmatpush.xpose.msra.mxu0 0.0
  %779 = vmatpush.xpose.msra.mxu0 0.0
  %780 = vmatpush.xpose.msra.mxu0 0.0
  %781 = vmatpush.xpose.msra.mxu0 0.0
  %782 = vmatpush.xpose.msra.mxu0 0.0
  %783 = vmatpush.xpose.msra.mxu0 0.0
  %v784 = vand.u32 %v767, 4294901760
  %785 = vmatpush.xpose.msra.mxu0 %v784
  %v786 = vand.u32 %v765, 4294901760
  %v787 = vsub.f32 %v765, %v786
  %v788 = vand.u32 %v787, 4294901760
  %v789 = vsub.f32 %v787, %v788
  %v790 = vand.u32 %v789, 4294901760
  %791 = vmatmul.f32.gmra.mxu0 %v790
  %v792 = vpop.f32.mrf.mxu0
  %v793 = vadd.f32 0.0, %v792
  %794 = vdwg.mxu0
  %795 = vmatpush.xpose.msra.mxu0 0.0
  %796 = vmatpush.xpose.msra.mxu0 0.0
  %797 = vmatpush.xpose.msra.mxu0 0.0
  %798 = vmatpush.xpose.msra.mxu0 0.0
  %799 = vmatpush.xpose.msra.mxu0 0.0
  %800 = vmatpush.xpose.msra.mxu0 0.0
  %801 = vmatpush.xpose.msra.mxu0 0.0
  %802 = vmatpush.xpose.msra.mxu0 0.0
  %803 = vmatpush.xpose.msra.mxu0 0.0
  %804 = vmatpush.xpose.msra.mxu0 0.0
  %805 = vmatpush.xpose.msra.mxu0 0.0
  %806 = vmatpush.xpose.msra.mxu0 0.0
  %807 = vmatpush.xpose.msra.mxu0 0.0
  %808 = vmatpush.xpose.msra.mxu0 0.0
  %809 = vmatpush.xpose.msra.mxu0 0.0
  %v810 = vand.u32 %v767, 4294901760
  %v811 = vsub.f32 %v767, %v810
  %v812 = vand.u32 %v811, 4294901760
  %v813 = vsub.f32 %v811, %v812
  %v814 = vand.u32 %v813, 4294901760
  %815 = vmatpush.xpose.msra.mxu0 %v814
  %v816 = vand.u32 %v765, 4294901760
  %817 = vmatmul.f32.gmra.mxu0 %v816
  %v818 = vpop.f32.mrf.mxu0
  %v819 = vadd.f32 %v793, %v818
  %820 = vdwg.mxu0
  %821 = vmatpush.xpose.msra.mxu0 0.0
  %822 = vmatpush.xpose.msra.mxu0 0.0
  %823 = vmatpush.xpose.msra.mxu0 0.0
  %824 = vmatpush.xpose.msra.mxu0 0.0
  %825 = vmatpush.xpose.msra.mxu0 0.0
  %826 = vmatpush.xpose.msra.mxu0 0.0
  %827 = vmatpush.xpose.msra.mxu0 0.0
  %828 = vmatpush.xpose.msra.mxu0 0.0
  %829 = vmatpush.xpose.msra.mxu0 0.0
  %830 = vmatpush.xpose.msra.mxu0 0.0
  %831 = vmatpush.xpose.msra.mxu0 0.0
  %832 = vmatpush.xpose.msra.mxu0 0.0
  %833 = vmatpush.xpose.msra.mxu0 0.0
  %834 = vmatpush.xpose.msra.mxu0 0.0
  %835 = vmatpush.xpose.msra.mxu0 0.0
  %v836 = vand.u32 %v767, 4294901760
  %v837 = vsub.f32 %v767, %v836
  %838 = vmatpush.xpose.msra.mxu0 %v837
  %v839 = vand.u32 %v765, 4294901760
  %v840 = vsub.f32 %v765, %v839
  %841 = vmatmul.f32.gmra.mxu0 %v840
  %v842 = vpop.f32.mrf.mxu0
  %v843 = vadd.f32 %v819, %v842
  %844 = vdwg.mxu0
  %845 = vmatpush.xpose.msra.mxu0 0.0
  %846 = vmatpush.xpose.msra.mxu0 0.0
  %847 = vmatpush.xpose.msra.mxu0 0.0
  %848 = vmatpush.xpose.msra.mxu0 0.0
  %849 = vmatpush.xpose.msra.mxu0 0.0
  %850 = vmatpush.xpose.msra.mxu0 0.0
  %851 = vmatpush.xpose.msra.mxu0 0.0
  %852 = vmatpush.xpose.msra.mxu0 0.0
  %853 = vmatpush.xpose.msra.mxu0 0.0
  %854 = vmatpush.xpose.msra.mxu0 0.0
  %855 = vmatpush.xpose.msra.mxu0 0.0
  %856 = vmatpush.xpose.msra.mxu0 0.0
  %857 = vmatpush.xpose.msra.mxu0 0.0
  %858 = vmatpush.xpose.msra.mxu0 0.0
  %859 = vmatpush.xpose.msra.mxu0 0.0
  %v860 = vand.u32 %v767, 4294901760
  %861 = vmatpush.xpose.msra.mxu0 %v860
  %v862 = vand.u32 %v765, 4294901760
  %v863 = vsub.f32 %v765, %v862
  %v864 = vand.u32 %v863, 4294901760
  %865 = vmatmul.f32.gmra.mxu0 %v864
  %v866 = vpop.f32.mrf.mxu0
  %v867 = vadd.f32 %v843, %v866
  %868 = vdwg.mxu0
  %869 = vmatpush.xpose.msra.mxu0 0.0
  %870 = vmatpush.xpose.msra.mxu0 0.0
  %871 = vmatpush.xpose.msra.mxu0 0.0
  %872 = vmatpush.xpose.msra.mxu0 0.0
  %873 = vmatpush.xpose.msra.mxu0 0.0
  %874 = vmatpush.xpose.msra.mxu0 0.0
  %875 = vmatpush.xpose.msra.mxu0 0.0
  %876 = vmatpush.xpose.msra.mxu0 0.0
  %877 = vmatpush.xpose.msra.mxu0 0.0
  %878 = vmatpush.xpose.msra.mxu0 0.0
  %879 = vmatpush.xpose.msra.mxu0 0.0
  %880 = vmatpush.xpose.msra.mxu0 0.0
  %881 = vmatpush.xpose.msra.mxu0 0.0
  %882 = vmatpush.xpose.msra.mxu0 0.0
  %883 = vmatpush.xpose.msra.mxu0 0.0
  %v884 = vand.u32 %v767, 4294901760
  %v885 = vsub.f32 %v767, %v884
  %v886 = vand.u32 %v885, 4294901760
  %887 = vmatpush.xpose.msra.mxu0 %v886
  %v888 = vand.u32 %v765, 4294901760
  %889 = vmatmul.f32.gmra.mxu0 %v888
  %v890 = vpop.f32.mrf.mxu0
  %v891 = vadd.f32 %v867, %v890
  %892 = vdwg.mxu0
  %893 = vmatpush.xpose.msra.mxu0 0.0
  %894 = vmatpush.xpose.msra.mxu0 0.0
  %895 = vmatpush.xpose.msra.mxu0 0.0
  %896 = vmatpush.xpose.msra.mxu0 0.0
  %897 = vmatpush.xpose.msra.mxu0 0.0
  %898 = vmatpush.xpose.msra.mxu0 0.0
  %899 = vmatpush.xpose.msra.mxu0 0.0
  %900 = vmatpush.xpose.msra.mxu0 0.0
  %901 = vmatpush.xpose.msra.mxu0 0.0
  %902 = vmatpush.xpose.msra.mxu0 0.0
  %903 = vmatpush.xpose.msra.mxu0 0.0
  %904 = vmatpush.xpose.msra.mxu0 0.0
  %905 = vmatpush.xpose.msra.mxu0 0.0
  %906 = vmatpush.xpose.msra.mxu0 0.0
  %907 = vmatpush.xpose.msra.mxu0 0.0
  %v908 = vand.u32 %v767, 4294901760
  %909 = vmatpush.xpose.msra.mxu0 %v908
  %v910 = vand.u32 %v765, 4294901760
  %911 = vmatmul.f32.gmra.mxu0 %v910
  %v912 = vpop.f32.mrf.mxu0
  %v913 = vadd.f32 %v891, %v912
  %914 = vdwg.mxu0
  %916 = vrot.lane.b32.xlu0 %v141, 112
  %v917 = vpop.permute.xlu0 %916
  %v918 = vsel %vm152, %v917, 0
  %v920 = vsel %vm152, %v141, 0
  %922 = vmatpush.xpose.msra.mxu0 0.0
  %923 = vmatpush.xpose.msra.mxu0 0.0
  %924 = vmatpush.xpose.msra.mxu0 0.0
  %925 = vmatpush.xpose.msra.mxu0 0.0
  %926 = vmatpush.xpose.msra.mxu0 0.0
  %927 = vmatpush.xpose.msra.mxu0 0.0
  %928 = vmatpush.xpose.msra.mxu0 0.0
  %929 = vmatpush.xpose.msra.mxu0 0.0
  %930 = vmatpush.xpose.msra.mxu0 0.0
  %931 = vmatpush.xpose.msra.mxu0 0.0
  %932 = vmatpush.xpose.msra.mxu0 0.0
  %933 = vmatpush.xpose.msra.mxu0 0.0
  %934 = vmatpush.xpose.msra.mxu0 0.0
  %935 = vmatpush.xpose.msra.mxu0 0.0
  %936 = vmatpush.xpose.msra.mxu0 0.0
  %v937 = vand.u32 %v920, 4294901760
  %938 = vmatpush.xpose.msra.mxu0 %v937
  %v939 = vand.u32 %v918, 4294901760
  %v940 = vsub.f32 %v918, %v939
  %v941 = vand.u32 %v940, 4294901760
  %v942 = vsub.f32 %v940, %v941
  %v943 = vand.u32 %v942, 4294901760
  %944 = vmatmul.f32.gmra.mxu0 %v943
  %v945 = vpop.f32.mrf.mxu0
  %v946 = vadd.f32 0.0, %v945
  %947 = vdwg.mxu0
  %948 = vmatpush.xpose.msra.mxu0 0.0
  %949 = vmatpush.xpose.msra.mxu0 0.0
  %950 = vmatpush.xpose.msra.mxu0 0.0
  %951 = vmatpush.xpose.msra.mxu0 0.0
  %952 = vmatpush.xpose.msra.mxu0 0.0
  %953 = vmatpush.xpose.msra.mxu0 0.0
  %954 = vmatpush.xpose.msra.mxu0 0.0
  %955 = vmatpush.xpose.msra.mxu0 0.0
  %956 = vmatpush.xpose.msra.mxu0 0.0
  %957 = vmatpush.xpose.msra.mxu0 0.0
  %958 = vmatpush.xpose.msra.mxu0 0.0
  %959 = vmatpush.xpose.msra.mxu0 0.0
  %960 = vmatpush.xpose.msra.mxu0 0.0
  %961 = vmatpush.xpose.msra.mxu0 0.0
  %962 = vmatpush.xpose.msra.mxu0 0.0
  %v963 = vand.u32 %v920, 4294901760
  %v964 = vsub.f32 %v920, %v963
  %v965 = vand.u32 %v964, 4294901760
  %v966 = vsub.f32 %v964, %v965
  %v967 = vand.u32 %v966, 4294901760
  %968 = vmatpush.xpose.msra.mxu0 %v967
  %v969 = vand.u32 %v918, 4294901760
  %970 = vmatmul.f32.gmra.mxu0 %v969
  %v971 = vpop.f32.mrf.mxu0
  %v972 = vadd.f32 %v946, %v971
  %973 = vdwg.mxu0
  %974 = vmatpush.xpose.msra.mxu0 0.0
  %975 = vmatpush.xpose.msra.mxu0 0.0
  %976 = vmatpush.xpose.msra.mxu0 0.0
  %977 = vmatpush.xpose.msra.mxu0 0.0
  %978 = vmatpush.xpose.msra.mxu0 0.0
  %979 = vmatpush.xpose.msra.mxu0 0.0
  %980 = vmatpush.xpose.msra.mxu0 0.0
  %981 = vmatpush.xpose.msra.mxu0 0.0
  %982 = vmatpush.xpose.msra.mxu0 0.0
  %983 = vmatpush.xpose.msra.mxu0 0.0
  %984 = vmatpush.xpose.msra.mxu0 0.0
  %985 = vmatpush.xpose.msra.mxu0 0.0
  %986 = vmatpush.xpose.msra.mxu0 0.0
  %987 = vmatpush.xpose.msra.mxu0 0.0
  %988 = vmatpush.xpose.msra.mxu0 0.0
  %v989 = vand.u32 %v920, 4294901760
  %v990 = vsub.f32 %v920, %v989
  %991 = vmatpush.xpose.msra.mxu0 %v990
  %v992 = vand.u32 %v918, 4294901760
  %v993 = vsub.f32 %v918, %v992
  %994 = vmatmul.f32.gmra.mxu0 %v993
  %v995 = vpop.f32.mrf.mxu0
  %v996 = vadd.f32 %v972, %v995
  %997 = vdwg.mxu0
  %998 = vmatpush.xpose.msra.mxu0 0.0
  %999 = vmatpush.xpose.msra.mxu0 0.0
  %1000 = vmatpush.xpose.msra.mxu0 0.0
  %1001 = vmatpush.xpose.msra.mxu0 0.0
  %1002 = vmatpush.xpose.msra.mxu0 0.0
  %1003 = vmatpush.xpose.msra.mxu0 0.0
  %1004 = vmatpush.xpose.msra.mxu0 0.0
  %1005 = vmatpush.xpose.msra.mxu0 0.0
  %1006 = vmatpush.xpose.msra.mxu0 0.0
  %1007 = vmatpush.xpose.msra.mxu0 0.0
  %1008 = vmatpush.xpose.msra.mxu0 0.0
  %1009 = vmatpush.xpose.msra.mxu0 0.0
  %1010 = vmatpush.xpose.msra.mxu0 0.0
  %1011 = vmatpush.xpose.msra.mxu0 0.0
  %1012 = vmatpush.xpose.msra.mxu0 0.0
  %v1013 = vand.u32 %v920, 4294901760
  %1014 = vmatpush.xpose.msra.mxu0 %v1013
  %v1015 = vand.u32 %v918, 4294901760
  %v1016 = vsub.f32 %v918, %v1015
  %v1017 = vand.u32 %v1016, 4294901760
  %1018 = vmatmul.f32.gmra.mxu0 %v1017
  %v1019 = vpop.f32.mrf.mxu0
  %v1020 = vadd.f32 %v996, %v1019
  %1021 = vdwg.mxu0
  %1022 = vmatpush.xpose.msra.mxu0 0.0
  %1023 = vmatpush.xpose.msra.mxu0 0.0
  %1024 = vmatpush.xpose.msra.mxu0 0.0
  %1025 = vmatpush.xpose.msra.mxu0 0.0
  %1026 = vmatpush.xpose.msra.mxu0 0.0
  %1027 = vmatpush.xpose.msra.mxu0 0.0
  %1028 = vmatpush.xpose.msra.mxu0 0.0
  %1029 = vmatpush.xpose.msra.mxu0 0.0
  %1030 = vmatpush.xpose.msra.mxu0 0.0
  %1031 = vmatpush.xpose.msra.mxu0 0.0
  %1032 = vmatpush.xpose.msra.mxu0 0.0
  %1033 = vmatpush.xpose.msra.mxu0 0.0
  %1034 = vmatpush.xpose.msra.mxu0 0.0
  %1035 = vmatpush.xpose.msra.mxu0 0.0
  %1036 = vmatpush.xpose.msra.mxu0 0.0
  %v1037 = vand.u32 %v920, 4294901760
  %v1038 = vsub.f32 %v920, %v1037
  %v1039 = vand.u32 %v1038, 4294901760
  %1040 = vmatpush.xpose.msra.mxu0 %v1039
  %v1041 = vand.u32 %v918, 4294901760
  %1042 = vmatmul.f32.gmra.mxu0 %v1041
  %v1043 = vpop.f32.mrf.mxu0
  %v1044 = vadd.f32 %v1020, %v1043
  %1045 = vdwg.mxu0
  %1046 = vmatpush.xpose.msra.mxu0 0.0
  %1047 = vmatpush.xpose.msra.mxu0 0.0
  %1048 = vmatpush.xpose.msra.mxu0 0.0
  %1049 = vmatpush.xpose.msra.mxu0 0.0
  %1050 = vmatpush.xpose.msra.mxu0 0.0
  %1051 = vmatpush.xpose.msra.mxu0 0.0
  %1052 = vmatpush.xpose.msra.mxu0 0.0
  %1053 = vmatpush.xpose.msra.mxu0 0.0
  %1054 = vmatpush.xpose.msra.mxu0 0.0
  %1055 = vmatpush.xpose.msra.mxu0 0.0
  %1056 = vmatpush.xpose.msra.mxu0 0.0
  %1057 = vmatpush.xpose.msra.mxu0 0.0
  %1058 = vmatpush.xpose.msra.mxu0 0.0
  %1059 = vmatpush.xpose.msra.mxu0 0.0
  %1060 = vmatpush.xpose.msra.mxu0 0.0
  %v1061 = vand.u32 %v920, 4294901760
  %1062 = vmatpush.xpose.msra.mxu0 %v1061
  %v1063 = vand.u32 %v918, 4294901760
  %1064 = vmatmul.f32.gmra.mxu0 %v1063
  %v1065 = vpop.f32.mrf.mxu0
  %v1066 = vadd.f32 %v1044, %v1065
  %1067 = vdwg.mxu0
  %1069 = vrot.lane.b32.xlu0 %v142, 112
  %v1070 = vpop.permute.xlu0 %1069
  %v1071 = vsel %vm152, %v1070, 0
  %v1073 = vsel %vm152, %v142, 0
  %1075 = vmatpush.xpose.msra.mxu0 0.0
  %1076 = vmatpush.xpose.msra.mxu0 0.0
  %1077 = vmatpush.xpose.msra.mxu0 0.0
  %1078 = vmatpush.xpose.msra.mxu0 0.0
  %1079 = vmatpush.xpose.msra.mxu0 0.0
  %1080 = vmatpush.xpose.msra.mxu0 0.0
  %1081 = vmatpush.xpose.msra.mxu0 0.0
  %1082 = vmatpush.xpose.msra.mxu0 0.0
  %1083 = vmatpush.xpose.msra.mxu0 0.0
  %1084 = vmatpush.xpose.msra.mxu0 0.0
  %1085 = vmatpush.xpose.msra.mxu0 0.0
  %1086 = vmatpush.xpose.msra.mxu0 0.0
  %1087 = vmatpush.xpose.msra.mxu0 0.0
  %1088 = vmatpush.xpose.msra.mxu0 0.0
  %1089 = vmatpush.xpose.msra.mxu0 0.0
  %v1090 = vand.u32 %v1073, 4294901760
  %1091 = vmatpush.xpose.msra.mxu0 %v1090
  %v1092 = vand.u32 %v1071, 4294901760
  %v1093 = vsub.f32 %v1071, %v1092
  %v1094 = vand.u32 %v1093, 4294901760
  %v1095 = vsub.f32 %v1093, %v1094
  %v1096 = vand.u32 %v1095, 4294901760
  %1097 = vmatmul.f32.gmra.mxu0 %v1096
  %v1098 = vpop.f32.mrf.mxu0
  %v1099 = vadd.f32 0.0, %v1098
  %1100 = vdwg.mxu0
  %1101 = vmatpush.xpose.msra.mxu0 0.0
  %1102 = vmatpush.xpose.msra.mxu0 0.0
  %1103 = vmatpush.xpose.msra.mxu0 0.0
  %1104 = vmatpush.xpose.msra.mxu0 0.0
  %1105 = vmatpush.xpose.msra.mxu0 0.0
  %1106 = vmatpush.xpose.msra.mxu0 0.0
  %1107 = vmatpush.xpose.msra.mxu0 0.0
  %1108 = vmatpush.xpose.msra.mxu0 0.0
  %1109 = vmatpush.xpose.msra.mxu0 0.0
  %1110 = vmatpush.xpose.msra.mxu0 0.0
  %1111 = vmatpush.xpose.msra.mxu0 0.0
  %1112 = vmatpush.xpose.msra.mxu0 0.0
  %1113 = vmatpush.xpose.msra.mxu0 0.0
  %1114 = vmatpush.xpose.msra.mxu0 0.0
  %1115 = vmatpush.xpose.msra.mxu0 0.0
  %v1116 = vand.u32 %v1073, 4294901760
  %v1117 = vsub.f32 %v1073, %v1116
  %v1118 = vand.u32 %v1117, 4294901760
  %v1119 = vsub.f32 %v1117, %v1118
  %v1120 = vand.u32 %v1119, 4294901760
  %1121 = vmatpush.xpose.msra.mxu0 %v1120
  %v1122 = vand.u32 %v1071, 4294901760
  %1123 = vmatmul.f32.gmra.mxu0 %v1122
  %v1124 = vpop.f32.mrf.mxu0
  %v1125 = vadd.f32 %v1099, %v1124
  %1126 = vdwg.mxu0
  %1127 = vmatpush.xpose.msra.mxu0 0.0
  %1128 = vmatpush.xpose.msra.mxu0 0.0
  %1129 = vmatpush.xpose.msra.mxu0 0.0
  %1130 = vmatpush.xpose.msra.mxu0 0.0
  %1131 = vmatpush.xpose.msra.mxu0 0.0
  %1132 = vmatpush.xpose.msra.mxu0 0.0
  %1133 = vmatpush.xpose.msra.mxu0 0.0
  %1134 = vmatpush.xpose.msra.mxu0 0.0
  %1135 = vmatpush.xpose.msra.mxu0 0.0
  %1136 = vmatpush.xpose.msra.mxu0 0.0
  %1137 = vmatpush.xpose.msra.mxu0 0.0
  %1138 = vmatpush.xpose.msra.mxu0 0.0
  %1139 = vmatpush.xpose.msra.mxu0 0.0
  %1140 = vmatpush.xpose.msra.mxu0 0.0
  %1141 = vmatpush.xpose.msra.mxu0 0.0
  %v1142 = vand.u32 %v1073, 4294901760
  %v1143 = vsub.f32 %v1073, %v1142
  %1144 = vmatpush.xpose.msra.mxu0 %v1143
  %v1145 = vand.u32 %v1071, 4294901760
  %v1146 = vsub.f32 %v1071, %v1145
  %1147 = vmatmul.f32.gmra.mxu0 %v1146
  %v1148 = vpop.f32.mrf.mxu0
  %v1149 = vadd.f32 %v1125, %v1148
  %1150 = vdwg.mxu0
  %1151 = vmatpush.xpose.msra.mxu0 0.0
  %1152 = vmatpush.xpose.msra.mxu0 0.0
  %1153 = vmatpush.xpose.msra.mxu0 0.0
  %1154 = vmatpush.xpose.msra.mxu0 0.0
  %1155 = vmatpush.xpose.msra.mxu0 0.0
  %1156 = vmatpush.xpose.msra.mxu0 0.0
  %1157 = vmatpush.xpose.msra.mxu0 0.0
  %1158 = vmatpush.xpose.msra.mxu0 0.0
  %1159 = vmatpush.xpose.msra.mxu0 0.0
  %1160 = vmatpush.xpose.msra.mxu0 0.0
  %1161 = vmatpush.xpose.msra.mxu0 0.0
  %1162 = vmatpush.xpose.msra.mxu0 0.0
  %1163 = vmatpush.xpose.msra.mxu0 0.0
  %1164 = vmatpush.xpose.msra.mxu0 0.0
  %1165 = vmatpush.xpose.msra.mxu0 0.0
  %v1166 = vand.u32 %v1073, 4294901760
  %1167 = vmatpush.xpose.msra.mxu0 %v1166
  %v1168 = vand.u32 %v1071, 4294901760
  %v1169 = vsub.f32 %v1071, %v1168
  %v1170 = vand.u32 %v1169, 4294901760
  %1171 = vmatmul.f32.gmra.mxu0 %v1170
  %v1172 = vpop.f32.mrf.mxu0
  %v1173 = vadd.f32 %v1149, %v1172
  %1174 = vdwg.mxu0
  %1175 = vmatpush.xpose.msra.mxu0 0.0
  %1176 = vmatpush.xpose.msra.mxu0 0.0
  %1177 = vmatpush.xpose.msra.mxu0 0.0
  %1178 = vmatpush.xpose.msra.mxu0 0.0
  %1179 = vmatpush.xpose.msra.mxu0 0.0
  %1180 = vmatpush.xpose.msra.mxu0 0.0
  %1181 = vmatpush.xpose.msra.mxu0 0.0
  %1182 = vmatpush.xpose.msra.mxu0 0.0
  %1183 = vmatpush.xpose.msra.mxu0 0.0
  %1184 = vmatpush.xpose.msra.mxu0 0.0
  %1185 = vmatpush.xpose.msra.mxu0 0.0
  %1186 = vmatpush.xpose.msra.mxu0 0.0
  %1187 = vmatpush.xpose.msra.mxu0 0.0
  %1188 = vmatpush.xpose.msra.mxu0 0.0
  %1189 = vmatpush.xpose.msra.mxu0 0.0
  %v1190 = vand.u32 %v1073, 4294901760
  %v1191 = vsub.f32 %v1073, %v1190
  %v1192 = vand.u32 %v1191, 4294901760
  %1193 = vmatpush.xpose.msra.mxu0 %v1192
  %v1194 = vand.u32 %v1071, 4294901760
  %1195 = vmatmul.f32.gmra.mxu0 %v1194
  %v1196 = vpop.f32.mrf.mxu0
  %v1197 = vadd.f32 %v1173, %v1196
  %1198 = vdwg.mxu0
  %1199 = vmatpush.xpose.msra.mxu0 0.0
  %1200 = vmatpush.xpose.msra.mxu0 0.0
  %1201 = vmatpush.xpose.msra.mxu0 0.0
  %1202 = vmatpush.xpose.msra.mxu0 0.0
  %1203 = vmatpush.xpose.msra.mxu0 0.0
  %1204 = vmatpush.xpose.msra.mxu0 0.0
  %1205 = vmatpush.xpose.msra.mxu0 0.0
  %1206 = vmatpush.xpose.msra.mxu0 0.0
  %1207 = vmatpush.xpose.msra.mxu0 0.0
  %1208 = vmatpush.xpose.msra.mxu0 0.0
  %1209 = vmatpush.xpose.msra.mxu0 0.0
  %1210 = vmatpush.xpose.msra.mxu0 0.0
  %1211 = vmatpush.xpose.msra.mxu0 0.0
  %1212 = vmatpush.xpose.msra.mxu0 0.0
  %1213 = vmatpush.xpose.msra.mxu0 0.0
  %v1214 = vand.u32 %v1073, 4294901760
  %1215 = vmatpush.xpose.msra.mxu0 %v1214
  %v1216 = vand.u32 %v1071, 4294901760
  %1217 = vmatmul.f32.gmra.mxu0 %v1216
  %v1218 = vpop.f32.mrf.mxu0
  %v1219 = vadd.f32 %v1197, %v1218
  %1220 = vdwg.mxu0
  %1222 = vrot.lane.b32.xlu0 %v143, 112
  %v1223 = vpop.permute.xlu0 %1222
  %v1224 = vsel %vm152, %v1223, 0
  %v1226 = vsel %vm152, %v143, 0
  %1228 = vmatpush.xpose.msra.mxu0 0.0
  %1229 = vmatpush.xpose.msra.mxu0 0.0
  %1230 = vmatpush.xpose.msra.mxu0 0.0
  %1231 = vmatpush.xpose.msra.mxu0 0.0
  %1232 = vmatpush.xpose.msra.mxu0 0.0
  %1233 = vmatpush.xpose.msra.mxu0 0.0
  %1234 = vmatpush.xpose.msra.mxu0 0.0
  %1235 = vmatpush.xpose.msra.mxu0 0.0
  %1236 = vmatpush.xpose.msra.mxu0 0.0
  %1237 = vmatpush.xpose.msra.mxu0 0.0
  %1238 = vmatpush.xpose.msra.mxu0 0.0
  %1239 = vmatpush.xpose.msra.mxu0 0.0
  %1240 = vmatpush.xpose.msra.mxu0 0.0
  %1241 = vmatpush.xpose.msra.mxu0 0.0
  %1242 = vmatpush.xpose.msra.mxu0 0.0
  %v1243 = vand.u32 %v1226, 4294901760
  %1244 = vmatpush.xpose.msra.mxu0 %v1243
  %v1245 = vand.u32 %v1224, 4294901760
  %v1246 = vsub.f32 %v1224, %v1245
  %v1247 = vand.u32 %v1246, 4294901760
  %v1248 = vsub.f32 %v1246, %v1247
  %v1249 = vand.u32 %v1248, 4294901760
  %1250 = vmatmul.f32.gmra.mxu0 %v1249
  %v1251 = vpop.f32.mrf.mxu0
  %v1252 = vadd.f32 0.0, %v1251
  %1253 = vdwg.mxu0
  %1254 = vmatpush.xpose.msra.mxu0 0.0
  %1255 = vmatpush.xpose.msra.mxu0 0.0
  %1256 = vmatpush.xpose.msra.mxu0 0.0
  %1257 = vmatpush.xpose.msra.mxu0 0.0
  %1258 = vmatpush.xpose.msra.mxu0 0.0
  %1259 = vmatpush.xpose.msra.mxu0 0.0
  %1260 = vmatpush.xpose.msra.mxu0 0.0
  %1261 = vmatpush.xpose.msra.mxu0 0.0
  %1262 = vmatpush.xpose.msra.mxu0 0.0
  %1263 = vmatpush.xpose.msra.mxu0 0.0
  %1264 = vmatpush.xpose.msra.mxu0 0.0
  %1265 = vmatpush.xpose.msra.mxu0 0.0
  %1266 = vmatpush.xpose.msra.mxu0 0.0
  %1267 = vmatpush.xpose.msra.mxu0 0.0
  %1268 = vmatpush.xpose.msra.mxu0 0.0
  %v1269 = vand.u32 %v1226, 4294901760
  %v1270 = vsub.f32 %v1226, %v1269
  %v1271 = vand.u32 %v1270, 4294901760
  %v1272 = vsub.f32 %v1270, %v1271
  %v1273 = vand.u32 %v1272, 4294901760
  %1274 = vmatpush.xpose.msra.mxu0 %v1273
  %v1275 = vand.u32 %v1224, 4294901760
  %1276 = vmatmul.f32.gmra.mxu0 %v1275
  %v1277 = vpop.f32.mrf.mxu0
  %v1278 = vadd.f32 %v1252, %v1277
  %1279 = vdwg.mxu0
  %1280 = vmatpush.xpose.msra.mxu0 0.0
  %1281 = vmatpush.xpose.msra.mxu0 0.0
  %1282 = vmatpush.xpose.msra.mxu0 0.0
  %1283 = vmatpush.xpose.msra.mxu0 0.0
  %1284 = vmatpush.xpose.msra.mxu0 0.0
  %1285 = vmatpush.xpose.msra.mxu0 0.0
  %1286 = vmatpush.xpose.msra.mxu0 0.0
  %1287 = vmatpush.xpose.msra.mxu0 0.0
  %1288 = vmatpush.xpose.msra.mxu0 0.0
  %1289 = vmatpush.xpose.msra.mxu0 0.0
  %1290 = vmatpush.xpose.msra.mxu0 0.0
  %1291 = vmatpush.xpose.msra.mxu0 0.0
  %1292 = vmatpush.xpose.msra.mxu0 0.0
  %1293 = vmatpush.xpose.msra.mxu0 0.0
  %1294 = vmatpush.xpose.msra.mxu0 0.0
  %v1295 = vand.u32 %v1226, 4294901760
  %v1296 = vsub.f32 %v1226, %v1295
  %1297 = vmatpush.xpose.msra.mxu0 %v1296
  %v1298 = vand.u32 %v1224, 4294901760
  %v1299 = vsub.f32 %v1224, %v1298
  %1300 = vmatmul.f32.gmra.mxu0 %v1299
  %v1301 = vpop.f32.mrf.mxu0
  %v1302 = vadd.f32 %v1278, %v1301
  %1303 = vdwg.mxu0
  %1304 = vmatpush.xpose.msra.mxu0 0.0
  %1305 = vmatpush.xpose.msra.mxu0 0.0
  %1306 = vmatpush.xpose.msra.mxu0 0.0
  %1307 = vmatpush.xpose.msra.mxu0 0.0
  %1308 = vmatpush.xpose.msra.mxu0 0.0
  %1309 = vmatpush.xpose.msra.mxu0 0.0
  %1310 = vmatpush.xpose.msra.mxu0 0.0
  %1311 = vmatpush.xpose.msra.mxu0 0.0
  %1312 = vmatpush.xpose.msra.mxu0 0.0
  %1313 = vmatpush.xpose.msra.mxu0 0.0
  %1314 = vmatpush.xpose.msra.mxu0 0.0
  %1315 = vmatpush.xpose.msra.mxu0 0.0
  %1316 = vmatpush.xpose.msra.mxu0 0.0
  %1317 = vmatpush.xpose.msra.mxu0 0.0
  %1318 = vmatpush.xpose.msra.mxu0 0.0
  %v1319 = vand.u32 %v1226, 4294901760
  %1320 = vmatpush.xpose.msra.mxu0 %v1319
  %v1321 = vand.u32 %v1224, 4294901760
  %v1322 = vsub.f32 %v1224, %v1321
  %v1323 = vand.u32 %v1322, 4294901760
  %1324 = vmatmul.f32.gmra.mxu0 %v1323
  %v1325 = vpop.f32.mrf.mxu0
  %v1326 = vadd.f32 %v1302, %v1325
  %1327 = vdwg.mxu0
  %1328 = vmatpush.xpose.msra.mxu0 0.0
  %1329 = vmatpush.xpose.msra.mxu0 0.0
  %1330 = vmatpush.xpose.msra.mxu0 0.0
  %1331 = vmatpush.xpose.msra.mxu0 0.0
  %1332 = vmatpush.xpose.msra.mxu0 0.0
  %1333 = vmatpush.xpose.msra.mxu0 0.0
  %1334 = vmatpush.xpose.msra.mxu0 0.0
  %1335 = vmatpush.xpose.msra.mxu0 0.0
  %1336 = vmatpush.xpose.msra.mxu0 0.0
  %1337 = vmatpush.xpose.msra.mxu0 0.0
  %1338 = vmatpush.xpose.msra.mxu0 0.0
  %1339 = vmatpush.xpose.msra.mxu0 0.0
  %1340 = vmatpush.xpose.msra.mxu0 0.0
  %1341 = vmatpush.xpose.msra.mxu0 0.0
  %1342 = vmatpush.xpose.msra.mxu0 0.0
  %v1343 = vand.u32 %v1226, 4294901760
  %v1344 = vsub.f32 %v1226, %v1343
  %v1345 = vand.u32 %v1344, 4294901760
  %1346 = vmatpush.xpose.msra.mxu0 %v1345
  %v1347 = vand.u32 %v1224, 4294901760
  %1348 = vmatmul.f32.gmra.mxu0 %v1347
  %v1349 = vpop.f32.mrf.mxu0
  %v1350 = vadd.f32 %v1326, %v1349
  %1351 = vdwg.mxu0
  %1352 = vmatpush.xpose.msra.mxu0 0.0
  %1353 = vmatpush.xpose.msra.mxu0 0.0
  %1354 = vmatpush.xpose.msra.mxu0 0.0
  %1355 = vmatpush.xpose.msra.mxu0 0.0
  %1356 = vmatpush.xpose.msra.mxu0 0.0
  %1357 = vmatpush.xpose.msra.mxu0 0.0
  %1358 = vmatpush.xpose.msra.mxu0 0.0
  %1359 = vmatpush.xpose.msra.mxu0 0.0
  %1360 = vmatpush.xpose.msra.mxu0 0.0
  %1361 = vmatpush.xpose.msra.mxu0 0.0
  %1362 = vmatpush.xpose.msra.mxu0 0.0
  %1363 = vmatpush.xpose.msra.mxu0 0.0
  %1364 = vmatpush.xpose.msra.mxu0 0.0
  %1365 = vmatpush.xpose.msra.mxu0 0.0
  %1366 = vmatpush.xpose.msra.mxu0 0.0
  %v1367 = vand.u32 %v1226, 4294901760
  %1368 = vmatpush.xpose.msra.mxu0 %v1367
  %v1369 = vand.u32 %v1224, 4294901760
  %1370 = vmatmul.f32.gmra.mxu0 %v1369
  %v1371 = vpop.f32.mrf.mxu0
  %v1372 = vadd.f32 %v1350, %v1371
  %1373 = vdwg.mxu0
  %v1374 = vsel %vm148, 1, 0
  %vm1375 = vcmp.eq.s32.totalorder %v1374, 1
  %v1376 = vsel %vm1375, %v301, -inf
  %v1377 = vsel %vm1375, %v454, -inf
  %v1378 = vsel %vm1375, %v607, -inf
  %v1379 = vsel %vm1375, %v760, -inf
  %v1380 = vsel %vm1375, %v913, -inf
  %v1381 = vsel %vm1375, %v1066, -inf
  %v1382 = vsel %vm1375, %v1219, -inf
  %v1383 = vsel %vm1375, %v1372, -inf
  %v1384 = vsel %vm152, %v1376, -inf
  %1385 = vmax.xlane.f32.xlu0 %v1384
  %v1386 = vpop.xlane.xlu0 %1385
  %v1387 = vsel %vm152, %v1377, -inf
  %1388 = vmax.xlane.f32.xlu0 %v1387
  %v1389 = vpop.xlane.xlu0 %1388
  %v1390 = vsel %vm152, %v1378, -inf
  %1391 = vmax.xlane.f32.xlu0 %v1390
  %v1392 = vpop.xlane.xlu0 %1391
  %v1393 = vsel %vm152, %v1379, -inf
  %1394 = vmax.xlane.f32.xlu0 %v1393
  %v1395 = vpop.xlane.xlu0 %1394
  %v1396 = vsel %vm152, %v1380, -inf
  %1397 = vmax.xlane.f32.xlu0 %v1396
  %v1398 = vpop.xlane.xlu0 %1397
  %v1399 = vsel %vm152, %v1381, -inf
  %1400 = vmax.xlane.f32.xlu0 %v1399
  %v1401 = vpop.xlane.xlu0 %1400
  %v1402 = vsel %vm152, %v1382, -inf
  %1403 = vmax.xlane.f32.xlu0 %v1402
  %v1404 = vpop.xlane.xlu0 %1403
  %v1405 = vsel %vm152, %v1383, -inf
  %1406 = vmax.xlane.f32.xlu0 %v1405
  %v1407 = vpop.xlane.xlu0 %1406
  %v1408 = vsub.f32 %v1376, %v1386
  %v1409 = vsub.f32 %v1377, %v1389
  %v1410 = vsub.f32 %v1378, %v1392
  %v1411 = vsub.f32 %v1379, %v1395
  %v1412 = vsub.f32 %v1380, %v1398
  %v1413 = vsub.f32 %v1381, %v1401
  %v1414 = vsub.f32 %v1382, %v1404
  %v1415 = vsub.f32 %v1383, %v1407
  %v1416 = vmul.f32 %v1408, 1.442695
  %v1417 = vpow.pop %v1416
  %v1418 = vmul.f32 %v1409, 1.442695
  %v1419 = vpow.pop %v1418
  %v1420 = vmul.f32 %v1410, 1.442695
  %v1421 = vpow.pop %v1420
  %v1422 = vmul.f32 %v1411, 1.442695
  %v1423 = vpow.pop %v1422
  %v1424 = vmul.f32 %v1412, 1.442695
  %v1425 = vpow.pop %v1424
  %v1426 = vmul.f32 %v1413, 1.442695
  %v1427 = vpow.pop %v1426
  %v1428 = vmul.f32 %v1414, 1.442695
  %v1429 = vpow.pop %v1428
  %v1430 = vmul.f32 %v1415, 1.442695
  %v1431 = vpow.pop %v1430
  %v1432 = vsel %vm152, %v1417, 0.0
  %1433 = vadd.xlane.f32.xlu0 %v1432
  %v1434 = vpop.xlane.xlu0 %1433
  %v1435 = vsel %vm152, %v1419, 0.0
  %1436 = vadd.xlane.f32.xlu0 %v1435
  %v1437 = vpop.xlane.xlu0 %1436
  %v1438 = vsel %vm152, %v1421, 0.0
  %1439 = vadd.xlane.f32.xlu0 %v1438
  %v1440 = vpop.xlane.xlu0 %1439
  %v1441 = vsel %vm152, %v1423, 0.0
  %1442 = vadd.xlane.f32.xlu0 %v1441
  %v1443 = vpop.xlane.xlu0 %1442
  %v1444 = vsel %vm152, %v1425, 0.0
  %1445 = vadd.xlane.f32.xlu0 %v1444
  %v1446 = vpop.xlane.xlu0 %1445
  %v1447 = vsel %vm152, %v1427, 0.0
  %1448 = vadd.xlane.f32.xlu0 %v1447
  %v1449 = vpop.xlane.xlu0 %1448
  %v1450 = vsel %vm152, %v1429, 0.0
  %1451 = vadd.xlane.f32.xlu0 %v1450
  %v1452 = vpop.xlane.xlu0 %1451
  %v1453 = vsel %vm152, %v1431, 0.0
  %1454 = vadd.xlane.f32.xlu0 %v1453
  %v1455 = vpop.xlane.xlu0 %1454
  %v1456 = vrcp.pop %v1434
  %v1457 = vmul.f32 %v1434, %v1456
  %v1458 = vsub.f32 1.0, %v1457
  %v1459 = vmul.f32 %v1456, %v1458
  %v1460 = vadd.f32 %v1456, %v1459
  %vm1461 = vweird.f32 %v1434
  %vm1462 = vweird.f32 %v1456
  %vm1463 = vmor %vm1461, %vm1462
  %v1464 = vsel %vm1463, %v1456, %v1460
  %v1465 = vand.u32 2147483647, %v1434
  %vm1466 = vcmp.eq.f32.partialorder %v1465, 8.507059e+37
  %v1467 = vand.u32 %v1434, 2147483648
  %v1468 = vor.u32 1.1754944e-38, %v1467
  %v1469 = vsel %vm1466, %v1468, %v1464
  %v1470 = vmul.f32 %v1417, %v1469
  %v1471 = vrcp.pop %v1437
  %v1472 = vmul.f32 %v1437, %v1471
  %v1473 = vsub.f32 1.0, %v1472
  %v1474 = vmul.f32 %v1471, %v1473
  %v1475 = vadd.f32 %v1471, %v1474
  %vm1476 = vweird.f32 %v1437
  %vm1477 = vweird.f32 %v1471
  %vm1478 = vmor %vm1476, %vm1477
  %v1479 = vsel %vm1478, %v1471, %v1475
  %v1480 = vand.u32 2147483647, %v1437
  %vm1481 = vcmp.eq.f32.partialorder %v1480, 8.507059e+37
  %v1482 = vand.u32 %v1437, 2147483648
  %v1483 = vor.u32 1.1754944e-38, %v1482
  %v1484 = vsel %vm1481, %v1483, %v1479
  %v1485 = vmul.f32 %v1419, %v1484
  %v1486 = vrcp.pop %v1440
  %v1487 = vmul.f32 %v1440, %v1486
  %v1488 = vsub.f32 1.0, %v1487
  %v1489 = vmul.f32 %v1486, %v1488
  %v1490 = vadd.f32 %v1486, %v1489
  %vm1491 = vweird.f32 %v1440
  %vm1492 = vweird.f32 %v1486
  %vm1493 = vmor %vm1491, %vm1492
  %v1494 = vsel %vm1493, %v1486, %v1490
  %v1495 = vand.u32 2147483647, %v1440
  %vm1496 = vcmp.eq.f32.partialorder %v1495, 8.507059e+37
  %v1497 = vand.u32 %v1440, 2147483648
  %v1498 = vor.u32 1.1754944e-38, %v1497
  %v1499 = vsel %vm1496, %v1498, %v1494
  %v1500 = vmul.f32 %v1421, %v1499
  %v1501 = vrcp.pop %v1443
  %v1502 = vmul.f32 %v1443, %v1501
  %v1503 = vsub.f32 1.0, %v1502
  %v1504 = vmul.f32 %v1501, %v1503
  %v1505 = vadd.f32 %v1501, %v1504
  %vm1506 = vweird.f32 %v1443
  %vm1507 = vweird.f32 %v1501
  %vm1508 = vmor %vm1506, %vm1507
  %v1509 = vsel %vm1508, %v1501, %v1505
  %v1510 = vand.u32 2147483647, %v1443
  %vm1511 = vcmp.eq.f32.partialorder %v1510, 8.507059e+37
  %v1512 = vand.u32 %v1443, 2147483648
  %v1513 = vor.u32 1.1754944e-38, %v1512
  %v1514 = vsel %vm1511, %v1513, %v1509
  %v1515 = vmul.f32 %v1423, %v1514
  %v1516 = vrcp.pop %v1446
  %v1517 = vmul.f32 %v1446, %v1516
  %v1518 = vsub.f32 1.0, %v1517
  %v1519 = vmul.f32 %v1516, %v1518
  %v1520 = vadd.f32 %v1516, %v1519
  %vm1521 = vweird.f32 %v1446
  %vm1522 = vweird.f32 %v1516
  %vm1523 = vmor %vm1521, %vm1522
  %v1524 = vsel %vm1523, %v1516, %v1520
  %v1525 = vand.u32 2147483647, %v1446
  %vm1526 = vcmp.eq.f32.partialorder %v1525, 8.507059e+37
  %v1527 = vand.u32 %v1446, 2147483648
  %v1528 = vor.u32 1.1754944e-38, %v1527
  %v1529 = vsel %vm1526, %v1528, %v1524
  %v1530 = vmul.f32 %v1425, %v1529
  %v1531 = vrcp.pop %v1449
  %v1532 = vmul.f32 %v1449, %v1531
  %v1533 = vsub.f32 1.0, %v1532
  %v1534 = vmul.f32 %v1531, %v1533
  %v1535 = vadd.f32 %v1531, %v1534
  %vm1536 = vweird.f32 %v1449
  %vm1537 = vweird.f32 %v1531
  %vm1538 = vmor %vm1536, %vm1537
  %v1539 = vsel %vm1538, %v1531, %v1535
  %v1540 = vand.u32 2147483647, %v1449
  %vm1541 = vcmp.eq.f32.partialorder %v1540, 8.507059e+37
  %v1542 = vand.u32 %v1449, 2147483648
  %v1543 = vor.u32 1.1754944e-38, %v1542
  %v1544 = vsel %vm1541, %v1543, %v1539
  %v1545 = vmul.f32 %v1427, %v1544
  %v1546 = vrcp.pop %v1452
  %v1547 = vmul.f32 %v1452, %v1546
  %v1548 = vsub.f32 1.0, %v1547
  %v1549 = vmul.f32 %v1546, %v1548
  %v1550 = vadd.f32 %v1546, %v1549
  %vm1551 = vweird.f32 %v1452
  %vm1552 = vweird.f32 %v1546
  %vm1553 = vmor %vm1551, %vm1552
  %v1554 = vsel %vm1553, %v1546, %v1550
  %v1555 = vand.u32 2147483647, %v1452
  %vm1556 = vcmp.eq.f32.partialorder %v1555, 8.507059e+37
  %v1557 = vand.u32 %v1452, 2147483648
  %v1558 = vor.u32 1.1754944e-38, %v1557
  %v1559 = vsel %vm1556, %v1558, %v1554
  %v1560 = vmul.f32 %v1429, %v1559
  %v1561 = vrcp.pop %v1455
  %v1562 = vmul.f32 %v1455, %v1561
  %v1563 = vsub.f32 1.0, %v1562
  %v1564 = vmul.f32 %v1561, %v1563
  %v1565 = vadd.f32 %v1561, %v1564
  %vm1566 = vweird.f32 %v1455
  %vm1567 = vweird.f32 %v1561
  %vm1568 = vmor %vm1566, %vm1567
  %v1569 = vsel %vm1568, %v1561, %v1565
  %v1570 = vand.u32 2147483647, %v1455
  %vm1571 = vcmp.eq.f32.partialorder %v1570, 8.507059e+37
  %v1572 = vand.u32 %v1455, 2147483648
  %v1573 = vor.u32 1.1754944e-38, %v1572
  %v1574 = vsel %vm1571, %v1573, %v1569
  %v1575 = vmul.f32 %v1431, %v1574
  %1576 = vrot.lane.b32.xlu0 %v136, 96
  %v1577 = vpop.permute.xlu0 %1576
  %v1580 = vsel %vm152, %v1470, 0
  %1582 = vmatpush.msra.mxu0 0.0
  %1583 = vmatpush.msra.mxu0 0.0
  %1584 = vmatpush.msra.mxu0 0.0
  %1585 = vmatpush.msra.mxu0 0.0
  %1586 = vmatpush.msra.mxu0 0.0
  %1587 = vmatpush.msra.mxu0 0.0
  %1588 = vmatpush.msra.mxu0 0.0
  %1589 = vmatpush.msra.mxu0 0.0
  %1590 = vmatpush.msra.mxu0 0.0
  %1591 = vmatpush.msra.mxu0 0.0
  %1592 = vmatpush.msra.mxu0 0.0
  %1593 = vmatpush.msra.mxu0 0.0
  %1594 = vmatpush.msra.mxu0 0.0
  %1595 = vmatpush.msra.mxu0 0.0
  %1596 = vmatpush.msra.mxu0 0.0
  %v1597 = vand.u32 %v1577, 4294901760
  %1598 = vmatpush.msra.mxu0 %v1597
  %v1599 = vand.u32 %v1580, 4294901760
  %v1600 = vsub.f32 %v1580, %v1599
  %v1601 = vand.u32 %v1600, 4294901760
  %v1602 = vsub.f32 %v1600, %v1601
  %v1603 = vand.u32 %v1602, 4294901760
  %1604 = vmatmul.f32.gmra.mxu0 %v1603
  %v1605 = vpop.f32.mrf.mxu0
  %v1606 = vadd.f32 0.0, %v1605
  %1607 = vdwg.mxu0
  %1608 = vmatpush.msra.mxu0 0.0
  %1609 = vmatpush.msra.mxu0 0.0
  %1610 = vmatpush.msra.mxu0 0.0
  %1611 = vmatpush.msra.mxu0 0.0
  %1612 = vmatpush.msra.mxu0 0.0
  %1613 = vmatpush.msra.mxu0 0.0
  %1614 = vmatpush.msra.mxu0 0.0
  %1615 = vmatpush.msra.mxu0 0.0
  %1616 = vmatpush.msra.mxu0 0.0
  %1617 = vmatpush.msra.mxu0 0.0
  %1618 = vmatpush.msra.mxu0 0.0
  %1619 = vmatpush.msra.mxu0 0.0
  %1620 = vmatpush.msra.mxu0 0.0
  %1621 = vmatpush.msra.mxu0 0.0
  %1622 = vmatpush.msra.mxu0 0.0
  %v1623 = vand.u32 %v1577, 4294901760
  %v1624 = vsub.f32 %v1577, %v1623
  %v1625 = vand.u32 %v1624, 4294901760
  %v1626 = vsub.f32 %v1624, %v1625
  %v1627 = vand.u32 %v1626, 4294901760
  %1628 = vmatpush.msra.mxu0 %v1627
  %v1629 = vand.u32 %v1580, 4294901760
  %1630 = vmatmul.f32.gmra.mxu0 %v1629
  %v1631 = vpop.f32.mrf.mxu0
  %v1632 = vadd.f32 %v1606, %v1631
  %1633 = vdwg.mxu0
  %1634 = vmatpush.msra.mxu0 0.0
  %1635 = vmatpush.msra.mxu0 0.0
  %1636 = vmatpush.msra.mxu0 0.0
  %1637 = vmatpush.msra.mxu0 0.0
  %1638 = vmatpush.msra.mxu0 0.0
  %1639 = vmatpush.msra.mxu0 0.0
  %1640 = vmatpush.msra.mxu0 0.0
  %1641 = vmatpush.msra.mxu0 0.0
  %1642 = vmatpush.msra.mxu0 0.0
  %1643 = vmatpush.msra.mxu0 0.0
  %1644 = vmatpush.msra.mxu0 0.0
  %1645 = vmatpush.msra.mxu0 0.0
  %1646 = vmatpush.msra.mxu0 0.0
  %1647 = vmatpush.msra.mxu0 0.0
  %1648 = vmatpush.msra.mxu0 0.0
  %v1649 = vand.u32 %v1577, 4294901760
  %v1650 = vsub.f32 %v1577, %v1649
  %1651 = vmatpush.msra.mxu0 %v1650
  %v1652 = vand.u32 %v1580, 4294901760
  %v1653 = vsub.f32 %v1580, %v1652
  %1654 = vmatmul.f32.gmra.mxu0 %v1653
  %v1655 = vpop.f32.mrf.mxu0
  %v1656 = vadd.f32 %v1632, %v1655
  %1657 = vdwg.mxu0
  %1658 = vmatpush.msra.mxu0 0.0
  %1659 = vmatpush.msra.mxu0 0.0
  %1660 = vmatpush.msra.mxu0 0.0
  %1661 = vmatpush.msra.mxu0 0.0
  %1662 = vmatpush.msra.mxu0 0.0
  %1663 = vmatpush.msra.mxu0 0.0
  %1664 = vmatpush.msra.mxu0 0.0
  %1665 = vmatpush.msra.mxu0 0.0
  %1666 = vmatpush.msra.mxu0 0.0
  %1667 = vmatpush.msra.mxu0 0.0
  %1668 = vmatpush.msra.mxu0 0.0
  %1669 = vmatpush.msra.mxu0 0.0
  %1670 = vmatpush.msra.mxu0 0.0
  %1671 = vmatpush.msra.mxu0 0.0
  %1672 = vmatpush.msra.mxu0 0.0
  %v1673 = vand.u32 %v1577, 4294901760
  %1674 = vmatpush.msra.mxu0 %v1673
  %v1675 = vand.u32 %v1580, 4294901760
  %v1676 = vsub.f32 %v1580, %v1675
  %v1677 = vand.u32 %v1676, 4294901760
  %1678 = vmatmul.f32.gmra.mxu0 %v1677
  %v1679 = vpop.f32.mrf.mxu0
  %v1680 = vadd.f32 %v1656, %v1679
  %1681 = vdwg.mxu0
  %1682 = vmatpush.msra.mxu0 0.0
  %1683 = vmatpush.msra.mxu0 0.0
  %1684 = vmatpush.msra.mxu0 0.0
  %1685 = vmatpush.msra.mxu0 0.0
  %1686 = vmatpush.msra.mxu0 0.0
  %1687 = vmatpush.msra.mxu0 0.0
  %1688 = vmatpush.msra.mxu0 0.0
  %1689 = vmatpush.msra.mxu0 0.0
  %1690 = vmatpush.msra.mxu0 0.0
  %1691 = vmatpush.msra.mxu0 0.0
  %1692 = vmatpush.msra.mxu0 0.0
  %1693 = vmatpush.msra.mxu0 0.0
  %1694 = vmatpush.msra.mxu0 0.0
  %1695 = vmatpush.msra.mxu0 0.0
  %1696 = vmatpush.msra.mxu0 0.0
  %v1697 = vand.u32 %v1577, 4294901760
  %v1698 = vsub.f32 %v1577, %v1697
  %v1699 = vand.u32 %v1698, 4294901760
  %1700 = vmatpush.msra.mxu0 %v1699
  %v1701 = vand.u32 %v1580, 4294901760
  %1702 = vmatmul.f32.gmra.mxu0 %v1701
  %v1703 = vpop.f32.mrf.mxu0
  %v1704 = vadd.f32 %v1680, %v1703
  %1705 = vdwg.mxu0
  %1706 = vmatpush.msra.mxu0 0.0
  %1707 = vmatpush.msra.mxu0 0.0
  %1708 = vmatpush.msra.mxu0 0.0
  %1709 = vmatpush.msra.mxu0 0.0
  %1710 = vmatpush.msra.mxu0 0.0
  %1711 = vmatpush.msra.mxu0 0.0
  %1712 = vmatpush.msra.mxu0 0.0
  %1713 = vmatpush.msra.mxu0 0.0
  %1714 = vmatpush.msra.mxu0 0.0
  %1715 = vmatpush.msra.mxu0 0.0
  %1716 = vmatpush.msra.mxu0 0.0
  %1717 = vmatpush.msra.mxu0 0.0
  %1718 = vmatpush.msra.mxu0 0.0
  %1719 = vmatpush.msra.mxu0 0.0
  %1720 = vmatpush.msra.mxu0 0.0
  %v1721 = vand.u32 %v1577, 4294901760
  %1722 = vmatpush.msra.mxu0 %v1721
  %v1723 = vand.u32 %v1580, 4294901760
  %1724 = vmatmul.f32.gmra.mxu0 %v1723
  %v1725 = vpop.f32.mrf.mxu0
  %v1726 = vadd.f32 %v1704, %v1725
  %1727 = vdwg.mxu0
  %1728 = vrot.lane.b32.xlu0 %v137, 96
  %v1729 = vpop.permute.xlu0 %1728
  %v1732 = vsel %vm152, %v1485, 0
  %1734 = vmatpush.msra.mxu0 0.0
  %1735 = vmatpush.msra.mxu0 0.0
  %1736 = vmatpush.msra.mxu0 0.0
  %1737 = vmatpush.msra.mxu0 0.0
  %1738 = vmatpush.msra.mxu0 0.0
  %1739 = vmatpush.msra.mxu0 0.0
  %1740 = vmatpush.msra.mxu0 0.0
  %1741 = vmatpush.msra.mxu0 0.0
  %1742 = vmatpush.msra.mxu0 0.0
  %1743 = vmatpush.msra.mxu0 0.0
  %1744 = vmatpush.msra.mxu0 0.0
  %1745 = vmatpush.msra.mxu0 0.0
  %1746 = vmatpush.msra.mxu0 0.0
  %1747 = vmatpush.msra.mxu0 0.0
  %1748 = vmatpush.msra.mxu0 0.0
  %v1749 = vand.u32 %v1729, 4294901760
  %1750 = vmatpush.msra.mxu0 %v1749
  %v1751 = vand.u32 %v1732, 4294901760
  %v1752 = vsub.f32 %v1732, %v1751
  %v1753 = vand.u32 %v1752, 4294901760
  %v1754 = vsub.f32 %v1752, %v1753
  %v1755 = vand.u32 %v1754, 4294901760
  %1756 = vmatmul.f32.gmra.mxu0 %v1755
  %v1757 = vpop.f32.mrf.mxu0
  %v1758 = vadd.f32 0.0, %v1757
  %1759 = vdwg.mxu0
  %1760 = vmatpush.msra.mxu0 0.0
  %1761 = vmatpush.msra.mxu0 0.0
  %1762 = vmatpush.msra.mxu0 0.0
  %1763 = vmatpush.msra.mxu0 0.0
  %1764 = vmatpush.msra.mxu0 0.0
  %1765 = vmatpush.msra.mxu0 0.0
  %1766 = vmatpush.msra.mxu0 0.0
  %1767 = vmatpush.msra.mxu0 0.0
  %1768 = vmatpush.msra.mxu0 0.0
  %1769 = vmatpush.msra.mxu0 0.0
  %1770 = vmatpush.msra.mxu0 0.0
  %1771 = vmatpush.msra.mxu0 0.0
  %1772 = vmatpush.msra.mxu0 0.0
  %1773 = vmatpush.msra.mxu0 0.0
  %1774 = vmatpush.msra.mxu0 0.0
  %v1775 = vand.u32 %v1729, 4294901760
  %v1776 = vsub.f32 %v1729, %v1775
  %v1777 = vand.u32 %v1776, 4294901760
  %v1778 = vsub.f32 %v1776, %v1777
  %v1779 = vand.u32 %v1778, 4294901760
  %1780 = vmatpush.msra.mxu0 %v1779
  %v1781 = vand.u32 %v1732, 4294901760
  %1782 = vmatmul.f32.gmra.mxu0 %v1781
  %v1783 = vpop.f32.mrf.mxu0
  %v1784 = vadd.f32 %v1758, %v1783
  %1785 = vdwg.mxu0
  %1786 = vmatpush.msra.mxu0 0.0
  %1787 = vmatpush.msra.mxu0 0.0
  %1788 = vmatpush.msra.mxu0 0.0
  %1789 = vmatpush.msra.mxu0 0.0
  %1790 = vmatpush.msra.mxu0 0.0
  %1791 = vmatpush.msra.mxu0 0.0
  %1792 = vmatpush.msra.mxu0 0.0
  %1793 = vmatpush.msra.mxu0 0.0
  %1794 = vmatpush.msra.mxu0 0.0
  %1795 = vmatpush.msra.mxu0 0.0
  %1796 = vmatpush.msra.mxu0 0.0
  %1797 = vmatpush.msra.mxu0 0.0
  %1798 = vmatpush.msra.mxu0 0.0
  %1799 = vmatpush.msra.mxu0 0.0
  %1800 = vmatpush.msra.mxu0 0.0
  %v1801 = vand.u32 %v1729, 4294901760
  %v1802 = vsub.f32 %v1729, %v1801
  %1803 = vmatpush.msra.mxu0 %v1802
  %v1804 = vand.u32 %v1732, 4294901760
  %v1805 = vsub.f32 %v1732, %v1804
  %1806 = vmatmul.f32.gmra.mxu0 %v1805
  %v1807 = vpop.f32.mrf.mxu0
  %v1808 = vadd.f32 %v1784, %v1807
  %1809 = vdwg.mxu0
  %1810 = vmatpush.msra.mxu0 0.0
  %1811 = vmatpush.msra.mxu0 0.0
  %1812 = vmatpush.msra.mxu0 0.0
  %1813 = vmatpush.msra.mxu0 0.0
  %1814 = vmatpush.msra.mxu0 0.0
  %1815 = vmatpush.msra.mxu0 0.0
  %1816 = vmatpush.msra.mxu0 0.0
  %1817 = vmatpush.msra.mxu0 0.0
  %1818 = vmatpush.msra.mxu0 0.0
  %1819 = vmatpush.msra.mxu0 0.0
  %1820 = vmatpush.msra.mxu0 0.0
  %1821 = vmatpush.msra.mxu0 0.0
  %1822 = vmatpush.msra.mxu0 0.0
  %1823 = vmatpush.msra.mxu0 0.0
  %1824 = vmatpush.msra.mxu0 0.0
  %v1825 = vand.u32 %v1729, 4294901760
  %1826 = vmatpush.msra.mxu0 %v1825
  %v1827 = vand.u32 %v1732, 4294901760
  %v1828 = vsub.f32 %v1732, %v1827
  %v1829 = vand.u32 %v1828, 4294901760
  %1830 = vmatmul.f32.gmra.mxu0 %v1829
  %v1831 = vpop.f32.mrf.mxu0
  %v1832 = vadd.f32 %v1808, %v1831
  %1833 = vdwg.mxu0
  %1834 = vmatpush.msra.mxu0 0.0
  %1835 = vmatpush.msra.mxu0 0.0
  %1836 = vmatpush.msra.mxu0 0.0
  %1837 = vmatpush.msra.mxu0 0.0
  %1838 = vmatpush.msra.mxu0 0.0
  %1839 = vmatpush.msra.mxu0 0.0
  %1840 = vmatpush.msra.mxu0 0.0
  %1841 = vmatpush.msra.mxu0 0.0
  %1842 = vmatpush.msra.mxu0 0.0
  %1843 = vmatpush.msra.mxu0 0.0
  %1844 = vmatpush.msra.mxu0 0.0
  %1845 = vmatpush.msra.mxu0 0.0
  %1846 = vmatpush.msra.mxu0 0.0
  %1847 = vmatpush.msra.mxu0 0.0
  %1848 = vmatpush.msra.mxu0 0.0
  %v1849 = vand.u32 %v1729, 4294901760
  %v1850 = vsub.f32 %v1729, %v1849
  %v1851 = vand.u32 %v1850, 4294901760
  %1852 = vmatpush.msra.mxu0 %v1851
  %v1853 = vand.u32 %v1732, 4294901760
  %1854 = vmatmul.f32.gmra.mxu0 %v1853
  %v1855 = vpop.f32.mrf.mxu0
  %v1856 = vadd.f32 %v1832, %v1855
  %1857 = vdwg.mxu0
  %1858 = vmatpush.msra.mxu0 0.0
  %1859 = vmatpush.msra.mxu0 0.0
  %1860 = vmatpush.msra.mxu0 0.0
  %1861 = vmatpush.msra.mxu0 0.0
  %1862 = vmatpush.msra.mxu0 0.0
  %1863 = vmatpush.msra.mxu0 0.0
  %1864 = vmatpush.msra.mxu0 0.0
  %1865 = vmatpush.msra.mxu0 0.0
  %1866 = vmatpush.msra.mxu0 0.0
  %1867 = vmatpush.msra.mxu0 0.0
  %1868 = vmatpush.msra.mxu0 0.0
  %1869 = vmatpush.msra.mxu0 0.0
  %1870 = vmatpush.msra.mxu0 0.0
  %1871 = vmatpush.msra.mxu0 0.0
  %1872 = vmatpush.msra.mxu0 0.0
  %v1873 = vand.u32 %v1729, 4294901760
  %1874 = vmatpush.msra.mxu0 %v1873
  %v1875 = vand.u32 %v1732, 4294901760
  %1876 = vmatmul.f32.gmra.mxu0 %v1875
  %v1877 = vpop.f32.mrf.mxu0
  %v1878 = vadd.f32 %v1856, %v1877
  %1879 = vdwg.mxu0
  %1880 = vrot.lane.b32.xlu0 %v138, 96
  %v1881 = vpop.permute.xlu0 %1880
  %v1884 = vsel %vm152, %v1500, 0
  %1886 = vmatpush.msra.mxu0 0.0
  %1887 = vmatpush.msra.mxu0 0.0
  %1888 = vmatpush.msra.mxu0 0.0
  %1889 = vmatpush.msra.mxu0 0.0
  %1890 = vmatpush.msra.mxu0 0.0
  %1891 = vmatpush.msra.mxu0 0.0
  %1892 = vmatpush.msra.mxu0 0.0
  %1893 = vmatpush.msra.mxu0 0.0
  %1894 = vmatpush.msra.mxu0 0.0
  %1895 = vmatpush.msra.mxu0 0.0
  %1896 = vmatpush.msra.mxu0 0.0
  %1897 = vmatpush.msra.mxu0 0.0
  %1898 = vmatpush.msra.mxu0 0.0
  %1899 = vmatpush.msra.mxu0 0.0
  %1900 = vmatpush.msra.mxu0 0.0
  %v1901 = vand.u32 %v1881, 4294901760
  %1902 = vmatpush.msra.mxu0 %v1901
  %v1903 = vand.u32 %v1884, 4294901760
  %v1904 = vsub.f32 %v1884, %v1903
  %v1905 = vand.u32 %v1904, 4294901760
  %v1906 = vsub.f32 %v1904, %v1905
  %v1907 = vand.u32 %v1906, 4294901760
  %1908 = vmatmul.f32.gmra.mxu0 %v1907
  %v1909 = vpop.f32.mrf.mxu0
  %v1910 = vadd.f32 0.0, %v1909
  %1911 = vdwg.mxu0
  %1912 = vmatpush.msra.mxu0 0.0
  %1913 = vmatpush.msra.mxu0 0.0
  %1914 = vmatpush.msra.mxu0 0.0
  %1915 = vmatpush.msra.mxu0 0.0
  %1916 = vmatpush.msra.mxu0 0.0
  %1917 = vmatpush.msra.mxu0 0.0
  %1918 = vmatpush.msra.mxu0 0.0
  %1919 = vmatpush.msra.mxu0 0.0
  %1920 = vmatpush.msra.mxu0 0.0
  %1921 = vmatpush.msra.mxu0 0.0
  %1922 = vmatpush.msra.mxu0 0.0
  %1923 = vmatpush.msra.mxu0 0.0
  %1924 = vmatpush.msra.mxu0 0.0
  %1925 = vmatpush.msra.mxu0 0.0
  %1926 = vmatpush.msra.mxu0 0.0
  %v1927 = vand.u32 %v1881, 4294901760
  %v1928 = vsub.f32 %v1881, %v1927
  %v1929 = vand.u32 %v1928, 4294901760
  %v1930 = vsub.f32 %v1928, %v1929
  %v1931 = vand.u32 %v1930, 4294901760
  %1932 = vmatpush.msra.mxu0 %v1931
  %v1933 = vand.u32 %v1884, 4294901760
  %1934 = vmatmul.f32.gmra.mxu0 %v1933
  %v1935 = vpop.f32.mrf.mxu0
  %v1936 = vadd.f32 %v1910, %v1935
  %1937 = vdwg.mxu0
  %1938 = vmatpush.msra.mxu0 0.0
  %1939 = vmatpush.msra.mxu0 0.0
  %1940 = vmatpush.msra.mxu0 0.0
  %1941 = vmatpush.msra.mxu0 0.0
  %1942 = vmatpush.msra.mxu0 0.0
  %1943 = vmatpush.msra.mxu0 0.0
  %1944 = vmatpush.msra.mxu0 0.0
  %1945 = vmatpush.msra.mxu0 0.0
  %1946 = vmatpush.msra.mxu0 0.0
  %1947 = vmatpush.msra.mxu0 0.0
  %1948 = vmatpush.msra.mxu0 0.0
  %1949 = vmatpush.msra.mxu0 0.0
  %1950 = vmatpush.msra.mxu0 0.0
  %1951 = vmatpush.msra.mxu0 0.0
  %1952 = vmatpush.msra.mxu0 0.0
  %v1953 = vand.u32 %v1881, 4294901760
  %v1954 = vsub.f32 %v1881, %v1953
  %1955 = vmatpush.msra.mxu0 %v1954
  %v1956 = vand.u32 %v1884, 4294901760
  %v1957 = vsub.f32 %v1884, %v1956
  %1958 = vmatmul.f32.gmra.mxu0 %v1957
  %v1959 = vpop.f32.mrf.mxu0
  %v1960 = vadd.f32 %v1936, %v1959
  %1961 = vdwg.mxu0
  %1962 = vmatpush.msra.mxu0 0.0
  %1963 = vmatpush.msra.mxu0 0.0
  %1964 = vmatpush.msra.mxu0 0.0
  %1965 = vmatpush.msra.mxu0 0.0
  %1966 = vmatpush.msra.mxu0 0.0
  %1967 = vmatpush.msra.mxu0 0.0
  %1968 = vmatpush.msra.mxu0 0.0
  %1969 = vmatpush.msra.mxu0 0.0
  %1970 = vmatpush.msra.mxu0 0.0
  %1971 = vmatpush.msra.mxu0 0.0
  %1972 = vmatpush.msra.mxu0 0.0
  %1973 = vmatpush.msra.mxu0 0.0
  %1974 = vmatpush.msra.mxu0 0.0
  %1975 = vmatpush.msra.mxu0 0.0
  %1976 = vmatpush.msra.mxu0 0.0
  %v1977 = vand.u32 %v1881, 4294901760
  %1978 = vmatpush.msra.mxu0 %v1977
  %v1979 = vand.u32 %v1884, 4294901760
  %v1980 = vsub.f32 %v1884, %v1979
  %v1981 = vand.u32 %v1980, 4294901760
  %1982 = vmatmul.f32.gmra.mxu0 %v1981
  %v1983 = vpop.f32.mrf.mxu0
  %v1984 = vadd.f32 %v1960, %v1983
  %1985 = vdwg.mxu0
  %1986 = vmatpush.msra.mxu0 0.0
  %1987 = vmatpush.msra.mxu0 0.0
  %1988 = vmatpush.msra.mxu0 0.0
  %1989 = vmatpush.msra.mxu0 0.0
  %1990 = vmatpush.msra.mxu0 0.0
  %1991 = vmatpush.msra.mxu0 0.0
  %1992 = vmatpush.msra.mxu0 0.0
  %1993 = vmatpush.msra.mxu0 0.0
  %1994 = vmatpush.msra.mxu0 0.0
  %1995 = vmatpush.msra.mxu0 0.0
  %1996 = vmatpush.msra.mxu0 0.0
  %1997 = vmatpush.msra.mxu0 0.0
  %1998 = vmatpush.msra.mxu0 0.0
  %1999 = vmatpush.msra.mxu0 0.0
  %2000 = vmatpush.msra.mxu0 0.0
  %v2001 = vand.u32 %v1881, 4294901760
  %v2002 = vsub.f32 %v1881, %v2001
  %v2003 = vand.u32 %v2002, 4294901760
  %2004 = vmatpush.msra.mxu0 %v2003
  %v2005 = vand.u32 %v1884, 4294901760
  %2006 = vmatmul.f32.gmra.mxu0 %v2005
  %v2007 = vpop.f32.mrf.mxu0
  %v2008 = vadd.f32 %v1984, %v2007
  %2009 = vdwg.mxu0
  %2010 = vmatpush.msra.mxu0 0.0
  %2011 = vmatpush.msra.mxu0 0.0
  %2012 = vmatpush.msra.mxu0 0.0
  %2013 = vmatpush.msra.mxu0 0.0
  %2014 = vmatpush.msra.mxu0 0.0
  %2015 = vmatpush.msra.mxu0 0.0
  %2016 = vmatpush.msra.mxu0 0.0
  %2017 = vmatpush.msra.mxu0 0.0
  %2018 = vmatpush.msra.mxu0 0.0
  %2019 = vmatpush.msra.mxu0 0.0
  %2020 = vmatpush.msra.mxu0 0.0
  %2021 = vmatpush.msra.mxu0 0.0
  %2022 = vmatpush.msra.mxu0 0.0
  %2023 = vmatpush.msra.mxu0 0.0
  %2024 = vmatpush.msra.mxu0 0.0
  %v2025 = vand.u32 %v1881, 4294901760
  %2026 = vmatpush.msra.mxu0 %v2025
  %v2027 = vand.u32 %v1884, 4294901760
  %2028 = vmatmul.f32.gmra.mxu0 %v2027
  %v2029 = vpop.f32.mrf.mxu0
  %v2030 = vadd.f32 %v2008, %v2029
  %2031 = vdwg.mxu0
  %2032 = vrot.lane.b32.xlu0 %v139, 96
  %v2033 = vpop.permute.xlu0 %2032
  %v2036 = vsel %vm152, %v1515, 0
  %2038 = vmatpush.msra.mxu0 0.0
  %2039 = vmatpush.msra.mxu0 0.0
  %2040 = vmatpush.msra.mxu0 0.0
  %2041 = vmatpush.msra.mxu0 0.0
  %2042 = vmatpush.msra.mxu0 0.0
  %2043 = vmatpush.msra.mxu0 0.0
  %2044 = vmatpush.msra.mxu0 0.0
  %2045 = vmatpush.msra.mxu0 0.0
  %2046 = vmatpush.msra.mxu0 0.0
  %2047 = vmatpush.msra.mxu0 0.0
  %2048 = vmatpush.msra.mxu0 0.0
  %2049 = vmatpush.msra.mxu0 0.0
  %2050 = vmatpush.msra.mxu0 0.0
  %2051 = vmatpush.msra.mxu0 0.0
  %2052 = vmatpush.msra.mxu0 0.0
  %v2053 = vand.u32 %v2033, 4294901760
  %2054 = vmatpush.msra.mxu0 %v2053
  %v2055 = vand.u32 %v2036, 4294901760
  %v2056 = vsub.f32 %v2036, %v2055
  %v2057 = vand.u32 %v2056, 4294901760
  %v2058 = vsub.f32 %v2056, %v2057
  %v2059 = vand.u32 %v2058, 4294901760
  %2060 = vmatmul.f32.gmra.mxu0 %v2059
  %v2061 = vpop.f32.mrf.mxu0
  %v2062 = vadd.f32 0.0, %v2061
  %2063 = vdwg.mxu0
  %2064 = vmatpush.msra.mxu0 0.0
  %2065 = vmatpush.msra.mxu0 0.0
  %2066 = vmatpush.msra.mxu0 0.0
  %2067 = vmatpush.msra.mxu0 0.0
  %2068 = vmatpush.msra.mxu0 0.0
  %2069 = vmatpush.msra.mxu0 0.0
  %2070 = vmatpush.msra.mxu0 0.0
  %2071 = vmatpush.msra.mxu0 0.0
  %2072 = vmatpush.msra.mxu0 0.0
  %2073 = vmatpush.msra.mxu0 0.0
  %2074 = vmatpush.msra.mxu0 0.0
  %2075 = vmatpush.msra.mxu0 0.0
  %2076 = vmatpush.msra.mxu0 0.0
  %2077 = vmatpush.msra.mxu0 0.0
  %2078 = vmatpush.msra.mxu0 0.0
  %v2079 = vand.u32 %v2033, 4294901760
  %v2080 = vsub.f32 %v2033, %v2079
  %v2081 = vand.u32 %v2080, 4294901760
  %v2082 = vsub.f32 %v2080, %v2081
  %v2083 = vand.u32 %v2082, 4294901760
  %2084 = vmatpush.msra.mxu0 %v2083
  %v2085 = vand.u32 %v2036, 4294901760
  %2086 = vmatmul.f32.gmra.mxu0 %v2085
  %v2087 = vpop.f32.mrf.mxu0
  %v2088 = vadd.f32 %v2062, %v2087
  %2089 = vdwg.mxu0
  %2090 = vmatpush.msra.mxu0 0.0
  %2091 = vmatpush.msra.mxu0 0.0
  %2092 = vmatpush.msra.mxu0 0.0
  %2093 = vmatpush.msra.mxu0 0.0
  %2094 = vmatpush.msra.mxu0 0.0
  %2095 = vmatpush.msra.mxu0 0.0
  %2096 = vmatpush.msra.mxu0 0.0
  %2097 = vmatpush.msra.mxu0 0.0
  %2098 = vmatpush.msra.mxu0 0.0
  %2099 = vmatpush.msra.mxu0 0.0
  %2100 = vmatpush.msra.mxu0 0.0
  %2101 = vmatpush.msra.mxu0 0.0
  %2102 = vmatpush.msra.mxu0 0.0
  %2103 = vmatpush.msra.mxu0 0.0
  %2104 = vmatpush.msra.mxu0 0.0
  %v2105 = vand.u32 %v2033, 4294901760
  %v2106 = vsub.f32 %v2033, %v2105
  %2107 = vmatpush.msra.mxu0 %v2106
  %v2108 = vand.u32 %v2036, 4294901760
  %v2109 = vsub.f32 %v2036, %v2108
  %2110 = vmatmul.f32.gmra.mxu0 %v2109
  %v2111 = vpop.f32.mrf.mxu0
  %v2112 = vadd.f32 %v2088, %v2111
  %2113 = vdwg.mxu0
  %2114 = vmatpush.msra.mxu0 0.0
  %2115 = vmatpush.msra.mxu0 0.0
  %2116 = vmatpush.msra.mxu0 0.0
  %2117 = vmatpush.msra.mxu0 0.0
  %2118 = vmatpush.msra.mxu0 0.0
  %2119 = vmatpush.msra.mxu0 0.0
  %2120 = vmatpush.msra.mxu0 0.0
  %2121 = vmatpush.msra.mxu0 0.0
  %2122 = vmatpush.msra.mxu0 0.0
  %2123 = vmatpush.msra.mxu0 0.0
  %2124 = vmatpush.msra.mxu0 0.0
  %2125 = vmatpush.msra.mxu0 0.0
  %2126 = vmatpush.msra.mxu0 0.0
  %2127 = vmatpush.msra.mxu0 0.0
  %2128 = vmatpush.msra.mxu0 0.0
  %v2129 = vand.u32 %v2033, 4294901760
  %2130 = vmatpush.msra.mxu0 %v2129
  %v2131 = vand.u32 %v2036, 4294901760
  %v2132 = vsub.f32 %v2036, %v2131
  %v2133 = vand.u32 %v2132, 4294901760
  %2134 = vmatmul.f32.gmra.mxu0 %v2133
  %v2135 = vpop.f32.mrf.mxu0
  %v2136 = vadd.f32 %v2112, %v2135
  %2137 = vdwg.mxu0
  %2138 = vmatpush.msra.mxu0 0.0
  %2139 = vmatpush.msra.mxu0 0.0
  %2140 = vmatpush.msra.mxu0 0.0
  %2141 = vmatpush.msra.mxu0 0.0
  %2142 = vmatpush.msra.mxu0 0.0
  %2143 = vmatpush.msra.mxu0 0.0
  %2144 = vmatpush.msra.mxu0 0.0
  %2145 = vmatpush.msra.mxu0 0.0
  %2146 = vmatpush.msra.mxu0 0.0
  %2147 = vmatpush.msra.mxu0 0.0
  %2148 = vmatpush.msra.mxu0 0.0
  %2149 = vmatpush.msra.mxu0 0.0
  %2150 = vmatpush.msra.mxu0 0.0
  %2151 = vmatpush.msra.mxu0 0.0
  %2152 = vmatpush.msra.mxu0 0.0
  %v2153 = vand.u32 %v2033, 4294901760
  %v2154 = vsub.f32 %v2033, %v2153
  %v2155 = vand.u32 %v2154, 4294901760
  %2156 = vmatpush.msra.mxu0 %v2155
  %v2157 = vand.u32 %v2036, 4294901760
  %2158 = vmatmul.f32.gmra.mxu0 %v2157
  %v2159 = vpop.f32.mrf.mxu0
  %v2160 = vadd.f32 %v2136, %v2159
  %2161 = vdwg.mxu0
  %2162 = vmatpush.msra.mxu0 0.0
  %2163 = vmatpush.msra.mxu0 0.0
  %2164 = vmatpush.msra.mxu0 0.0
  %2165 = vmatpush.msra.mxu0 0.0
  %2166 = vmatpush.msra.mxu0 0.0
  %2167 = vmatpush.msra.mxu0 0.0
  %2168 = vmatpush.msra.mxu0 0.0
  %2169 = vmatpush.msra.mxu0 0.0
  %2170 = vmatpush.msra.mxu0 0.0
  %2171 = vmatpush.msra.mxu0 0.0
  %2172 = vmatpush.msra.mxu0 0.0
  %2173 = vmatpush.msra.mxu0 0.0
  %2174 = vmatpush.msra.mxu0 0.0
  %2175 = vmatpush.msra.mxu0 0.0
  %2176 = vmatpush.msra.mxu0 0.0
  %v2177 = vand.u32 %v2033, 4294901760
  %2178 = vmatpush.msra.mxu0 %v2177
  %v2179 = vand.u32 %v2036, 4294901760
  %2180 = vmatmul.f32.gmra.mxu0 %v2179
  %v2181 = vpop.f32.mrf.mxu0
  %v2182 = vadd.f32 %v2160, %v2181
  %2183 = vdwg.mxu0
  %2184 = vrot.lane.b32.xlu0 %v140, 96
  %v2185 = vpop.permute.xlu0 %2184
  %v2188 = vsel %vm152, %v1530, 0
  %2190 = vmatpush.msra.mxu0 0.0
  %2191 = vmatpush.msra.mxu0 0.0
  %2192 = vmatpush.msra.mxu0 0.0
  %2193 = vmatpush.msra.mxu0 0.0
  %2194 = vmatpush.msra.mxu0 0.0
  %2195 = vmatpush.msra.mxu0 0.0
  %2196 = vmatpush.msra.mxu0 0.0
  %2197 = vmatpush.msra.mxu0 0.0
  %2198 = vmatpush.msra.mxu0 0.0
  %2199 = vmatpush.msra.mxu0 0.0
  %2200 = vmatpush.msra.mxu0 0.0
  %2201 = vmatpush.msra.mxu0 0.0
  %2202 = vmatpush.msra.mxu0 0.0
  %2203 = vmatpush.msra.mxu0 0.0
  %2204 = vmatpush.msra.mxu0 0.0
  %v2205 = vand.u32 %v2185, 4294901760
  %2206 = vmatpush.msra.mxu0 %v2205
  %v2207 = vand.u32 %v2188, 4294901760
  %v2208 = vsub.f32 %v2188, %v2207
  %v2209 = vand.u32 %v2208, 4294901760
  %v2210 = vsub.f32 %v2208, %v2209
  %v2211 = vand.u32 %v2210, 4294901760
  %2212 = vmatmul.f32.gmra.mxu0 %v2211
  %v2213 = vpop.f32.mrf.mxu0
  %v2214 = vadd.f32 0.0, %v2213
  %2215 = vdwg.mxu0
  %2216 = vmatpush.msra.mxu0 0.0
  %2217 = vmatpush.msra.mxu0 0.0
  %2218 = vmatpush.msra.mxu0 0.0
  %2219 = vmatpush.msra.mxu0 0.0
  %2220 = vmatpush.msra.mxu0 0.0
  %2221 = vmatpush.msra.mxu0 0.0
  %2222 = vmatpush.msra.mxu0 0.0
  %2223 = vmatpush.msra.mxu0 0.0
  %2224 = vmatpush.msra.mxu0 0.0
  %2225 = vmatpush.msra.mxu0 0.0
  %2226 = vmatpush.msra.mxu0 0.0
  %2227 = vmatpush.msra.mxu0 0.0
  %2228 = vmatpush.msra.mxu0 0.0
  %2229 = vmatpush.msra.mxu0 0.0
  %2230 = vmatpush.msra.mxu0 0.0
  %v2231 = vand.u32 %v2185, 4294901760
  %v2232 = vsub.f32 %v2185, %v2231
  %v2233 = vand.u32 %v2232, 4294901760
  %v2234 = vsub.f32 %v2232, %v2233
  %v2235 = vand.u32 %v2234, 4294901760
  %2236 = vmatpush.msra.mxu0 %v2235
  %v2237 = vand.u32 %v2188, 4294901760
  %2238 = vmatmul.f32.gmra.mxu0 %v2237
  %v2239 = vpop.f32.mrf.mxu0
  %v2240 = vadd.f32 %v2214, %v2239
  %2241 = vdwg.mxu0
  %2242 = vmatpush.msra.mxu0 0.0
  %2243 = vmatpush.msra.mxu0 0.0
  %2244 = vmatpush.msra.mxu0 0.0
  %2245 = vmatpush.msra.mxu0 0.0
  %2246 = vmatpush.msra.mxu0 0.0
  %2247 = vmatpush.msra.mxu0 0.0
  %2248 = vmatpush.msra.mxu0 0.0
  %2249 = vmatpush.msra.mxu0 0.0
  %2250 = vmatpush.msra.mxu0 0.0
  %2251 = vmatpush.msra.mxu0 0.0
  %2252 = vmatpush.msra.mxu0 0.0
  %2253 = vmatpush.msra.mxu0 0.0
  %2254 = vmatpush.msra.mxu0 0.0
  %2255 = vmatpush.msra.mxu0 0.0
  %2256 = vmatpush.msra.mxu0 0.0
  %v2257 = vand.u32 %v2185, 4294901760
  %v2258 = vsub.f32 %v2185, %v2257
  %2259 = vmatpush.msra.mxu0 %v2258
  %v2260 = vand.u32 %v2188, 4294901760
  %v2261 = vsub.f32 %v2188, %v2260
  %2262 = vmatmul.f32.gmra.mxu0 %v2261
  %v2263 = vpop.f32.mrf.mxu0
  %v2264 = vadd.f32 %v2240, %v2263
  %2265 = vdwg.mxu0
  %2266 = vmatpush.msra.mxu0 0.0
  %2267 = vmatpush.msra.mxu0 0.0
  %2268 = vmatpush.msra.mxu0 0.0
  %2269 = vmatpush.msra.mxu0 0.0
  %2270 = vmatpush.msra.mxu0 0.0
  %2271 = vmatpush.msra.mxu0 0.0
  %2272 = vmatpush.msra.mxu0 0.0
  %2273 = vmatpush.msra.mxu0 0.0
  %2274 = vmatpush.msra.mxu0 0.0
  %2275 = vmatpush.msra.mxu0 0.0
  %2276 = vmatpush.msra.mxu0 0.0
  %2277 = vmatpush.msra.mxu0 0.0
  %2278 = vmatpush.msra.mxu0 0.0
  %2279 = vmatpush.msra.mxu0 0.0
  %2280 = vmatpush.msra.mxu0 0.0
  %v2281 = vand.u32 %v2185, 4294901760
  %2282 = vmatpush.msra.mxu0 %v2281
  %v2283 = vand.u32 %v2188, 4294901760
  %v2284 = vsub.f32 %v2188, %v2283
  %v2285 = vand.u32 %v2284, 4294901760
  %2286 = vmatmul.f32.gmra.mxu0 %v2285
  %v2287 = vpop.f32.mrf.mxu0
  %v2288 = vadd.f32 %v2264, %v2287
  %2289 = vdwg.mxu0
  %2290 = vmatpush.msra.mxu0 0.0
  %2291 = vmatpush.msra.mxu0 0.0
  %2292 = vmatpush.msra.mxu0 0.0
  %2293 = vmatpush.msra.mxu0 0.0
  %2294 = vmatpush.msra.mxu0 0.0
  %2295 = vmatpush.msra.mxu0 0.0
  %2296 = vmatpush.msra.mxu0 0.0
  %2297 = vmatpush.msra.mxu0 0.0
  %2298 = vmatpush.msra.mxu0 0.0
  %2299 = vmatpush.msra.mxu0 0.0
  %2300 = vmatpush.msra.mxu0 0.0
  %2301 = vmatpush.msra.mxu0 0.0
  %2302 = vmatpush.msra.mxu0 0.0
  %2303 = vmatpush.msra.mxu0 0.0
  %2304 = vmatpush.msra.mxu0 0.0
  %v2305 = vand.u32 %v2185, 4294901760
  %v2306 = vsub.f32 %v2185, %v2305
  %v2307 = vand.u32 %v2306, 4294901760
  %2308 = vmatpush.msra.mxu0 %v2307
  %v2309 = vand.u32 %v2188, 4294901760
  %2310 = vmatmul.f32.gmra.mxu0 %v2309
  %v2311 = vpop.f32.mrf.mxu0
  %v2312 = vadd.f32 %v2288, %v2311
  %2313 = vdwg.mxu0
  %2314 = vmatpush.msra.mxu0 0.0
  %2315 = vmatpush.msra.mxu0 0.0
  %2316 = vmatpush.msra.mxu0 0.0
  %2317 = vmatpush.msra.mxu0 0.0
  %2318 = vmatpush.msra.mxu0 0.0
  %2319 = vmatpush.msra.mxu0 0.0
  %2320 = vmatpush.msra.mxu0 0.0
  %2321 = vmatpush.msra.mxu0 0.0
  %2322 = vmatpush.msra.mxu0 0.0
  %2323 = vmatpush.msra.mxu0 0.0
  %2324 = vmatpush.msra.mxu0 0.0
  %2325 = vmatpush.msra.mxu0 0.0
  %2326 = vmatpush.msra.mxu0 0.0
  %2327 = vmatpush.msra.mxu0 0.0
  %2328 = vmatpush.msra.mxu0 0.0
  %v2329 = vand.u32 %v2185, 4294901760
  %2330 = vmatpush.msra.mxu0 %v2329
  %v2331 = vand.u32 %v2188, 4294901760
  %2332 = vmatmul.f32.gmra.mxu0 %v2331
  %v2333 = vpop.f32.mrf.mxu0
  %v2334 = vadd.f32 %v2312, %v2333
  %2335 = vdwg.mxu0
  %2336 = vrot.lane.b32.xlu0 %v141, 96
  %v2337 = vpop.permute.xlu0 %2336
  %v2340 = vsel %vm152, %v1545, 0
  %2342 = vmatpush.msra.mxu0 0.0
  %2343 = vmatpush.msra.mxu0 0.0
  %2344 = vmatpush.msra.mxu0 0.0
  %2345 = vmatpush.msra.mxu0 0.0
  %2346 = vmatpush.msra.mxu0 0.0
  %2347 = vmatpush.msra.mxu0 0.0
  %2348 = vmatpush.msra.mxu0 0.0
  %2349 = vmatpush.msra.mxu0 0.0
  %2350 = vmatpush.msra.mxu0 0.0
  %2351 = vmatpush.msra.mxu0 0.0
  %2352 = vmatpush.msra.mxu0 0.0
  %2353 = vmatpush.msra.mxu0 0.0
  %2354 = vmatpush.msra.mxu0 0.0
  %2355 = vmatpush.msra.mxu0 0.0
  %2356 = vmatpush.msra.mxu0 0.0
  %v2357 = vand.u32 %v2337, 4294901760
  %2358 = vmatpush.msra.mxu0 %v2357
  %v2359 = vand.u32 %v2340, 4294901760
  %v2360 = vsub.f32 %v2340, %v2359
  %v2361 = vand.u32 %v2360, 4294901760
  %v2362 = vsub.f32 %v2360, %v2361
  %v2363 = vand.u32 %v2362, 4294901760
  %2364 = vmatmul.f32.gmra.mxu0 %v2363
  %v2365 = vpop.f32.mrf.mxu0
  %v2366 = vadd.f32 0.0, %v2365
  %2367 = vdwg.mxu0
  %2368 = vmatpush.msra.mxu0 0.0
  %2369 = vmatpush.msra.mxu0 0.0
  %2370 = vmatpush.msra.mxu0 0.0
  %2371 = vmatpush.msra.mxu0 0.0
  %2372 = vmatpush.msra.mxu0 0.0
  %2373 = vmatpush.msra.mxu0 0.0
  %2374 = vmatpush.msra.mxu0 0.0
  %2375 = vmatpush.msra.mxu0 0.0
  %2376 = vmatpush.msra.mxu0 0.0
  %2377 = vmatpush.msra.mxu0 0.0
  %2378 = vmatpush.msra.mxu0 0.0
  %2379 = vmatpush.msra.mxu0 0.0
  %2380 = vmatpush.msra.mxu0 0.0
  %2381 = vmatpush.msra.mxu0 0.0
  %2382 = vmatpush.msra.mxu0 0.0
  %v2383 = vand.u32 %v2337, 4294901760
  %v2384 = vsub.f32 %v2337, %v2383
  %v2385 = vand.u32 %v2384, 4294901760
  %v2386 = vsub.f32 %v2384, %v2385
  %v2387 = vand.u32 %v2386, 4294901760
  %2388 = vmatpush.msra.mxu0 %v2387
  %v2389 = vand.u32 %v2340, 4294901760
  %2390 = vmatmul.f32.gmra.mxu0 %v2389
  %v2391 = vpop.f32.mrf.mxu0
  %v2392 = vadd.f32 %v2366, %v2391
  %2393 = vdwg.mxu0
  %2394 = vmatpush.msra.mxu0 0.0
  %2395 = vmatpush.msra.mxu0 0.0
  %2396 = vmatpush.msra.mxu0 0.0
  %2397 = vmatpush.msra.mxu0 0.0
  %2398 = vmatpush.msra.mxu0 0.0
  %2399 = vmatpush.msra.mxu0 0.0
  %2400 = vmatpush.msra.mxu0 0.0
  %2401 = vmatpush.msra.mxu0 0.0
  %2402 = vmatpush.msra.mxu0 0.0
  %2403 = vmatpush.msra.mxu0 0.0
  %2404 = vmatpush.msra.mxu0 0.0
  %2405 = vmatpush.msra.mxu0 0.0
  %2406 = vmatpush.msra.mxu0 0.0
  %2407 = vmatpush.msra.mxu0 0.0
  %2408 = vmatpush.msra.mxu0 0.0
  %v2409 = vand.u32 %v2337, 4294901760
  %v2410 = vsub.f32 %v2337, %v2409
  %2411 = vmatpush.msra.mxu0 %v2410
  %v2412 = vand.u32 %v2340, 4294901760
  %v2413 = vsub.f32 %v2340, %v2412
  %2414 = vmatmul.f32.gmra.mxu0 %v2413
  %v2415 = vpop.f32.mrf.mxu0
  %v2416 = vadd.f32 %v2392, %v2415
  %2417 = vdwg.mxu0
  %2418 = vmatpush.msra.mxu0 0.0
  %2419 = vmatpush.msra.mxu0 0.0
  %2420 = vmatpush.msra.mxu0 0.0
  %2421 = vmatpush.msra.mxu0 0.0
  %2422 = vmatpush.msra.mxu0 0.0
  %2423 = vmatpush.msra.mxu0 0.0
  %2424 = vmatpush.msra.mxu0 0.0
  %2425 = vmatpush.msra.mxu0 0.0
  %2426 = vmatpush.msra.mxu0 0.0
  %2427 = vmatpush.msra.mxu0 0.0
  %2428 = vmatpush.msra.mxu0 0.0
  %2429 = vmatpush.msra.mxu0 0.0
  %2430 = vmatpush.msra.mxu0 0.0
  %2431 = vmatpush.msra.mxu0 0.0
  %2432 = vmatpush.msra.mxu0 0.0
  %v2433 = vand.u32 %v2337, 4294901760
  %2434 = vmatpush.msra.mxu0 %v2433
  %v2435 = vand.u32 %v2340, 4294901760
  %v2436 = vsub.f32 %v2340, %v2435
  %v2437 = vand.u32 %v2436, 4294901760
  %2438 = vmatmul.f32.gmra.mxu0 %v2437
  %v2439 = vpop.f32.mrf.mxu0
  %v2440 = vadd.f32 %v2416, %v2439
  %2441 = vdwg.mxu0
  %2442 = vmatpush.msra.mxu0 0.0
  %2443 = vmatpush.msra.mxu0 0.0
  %2444 = vmatpush.msra.mxu0 0.0
  %2445 = vmatpush.msra.mxu0 0.0
  %2446 = vmatpush.msra.mxu0 0.0
  %2447 = vmatpush.msra.mxu0 0.0
  %2448 = vmatpush.msra.mxu0 0.0
  %2449 = vmatpush.msra.mxu0 0.0
  %2450 = vmatpush.msra.mxu0 0.0
  %2451 = vmatpush.msra.mxu0 0.0
  %2452 = vmatpush.msra.mxu0 0.0
  %2453 = vmatpush.msra.mxu0 0.0
  %2454 = vmatpush.msra.mxu0 0.0
  %2455 = vmatpush.msra.mxu0 0.0
  %2456 = vmatpush.msra.mxu0 0.0
  %v2457 = vand.u32 %v2337, 4294901760
  %v2458 = vsub.f32 %v2337, %v2457
  %v2459 = vand.u32 %v2458, 4294901760
  %2460 = vmatpush.msra.mxu0 %v2459
  %v2461 = vand.u32 %v2340, 4294901760
  %2462 = vmatmul.f32.gmra.mxu0 %v2461
  %v2463 = vpop.f32.mrf.mxu0
  %v2464 = vadd.f32 %v2440, %v2463
  %2465 = vdwg.mxu0
  %2466 = vmatpush.msra.mxu0 0.0
  %2467 = vmatpush.msra.mxu0 0.0
  %2468 = vmatpush.msra.mxu0 0.0
  %2469 = vmatpush.msra.mxu0 0.0
  %2470 = vmatpush.msra.mxu0 0.0
  %2471 = vmatpush.msra.mxu0 0.0
  %2472 = vmatpush.msra.mxu0 0.0
  %2473 = vmatpush.msra.mxu0 0.0
  %2474 = vmatpush.msra.mxu0 0.0
  %2475 = vmatpush.msra.mxu0 0.0
  %2476 = vmatpush.msra.mxu0 0.0
  %2477 = vmatpush.msra.mxu0 0.0
  %2478 = vmatpush.msra.mxu0 0.0
  %2479 = vmatpush.msra.mxu0 0.0
  %2480 = vmatpush.msra.mxu0 0.0
  %v2481 = vand.u32 %v2337, 4294901760
  %2482 = vmatpush.msra.mxu0 %v2481
  %v2483 = vand.u32 %v2340, 4294901760
  %2484 = vmatmul.f32.gmra.mxu0 %v2483
  %v2485 = vpop.f32.mrf.mxu0
  %v2486 = vadd.f32 %v2464, %v2485
  %2487 = vdwg.mxu0
  %2488 = vrot.lane.b32.xlu0 %v142, 96
  %v2489 = vpop.permute.xlu0 %2488
  %v2492 = vsel %vm152, %v1560, 0
  %2494 = vmatpush.msra.mxu0 0.0
  %2495 = vmatpush.msra.mxu0 0.0
  %2496 = vmatpush.msra.mxu0 0.0
  %2497 = vmatpush.msra.mxu0 0.0
  %2498 = vmatpush.msra.mxu0 0.0
  %2499 = vmatpush.msra.mxu0 0.0
  %2500 = vmatpush.msra.mxu0 0.0
  %2501 = vmatpush.msra.mxu0 0.0
  %2502 = vmatpush.msra.mxu0 0.0
  %2503 = vmatpush.msra.mxu0 0.0
  %2504 = vmatpush.msra.mxu0 0.0
  %2505 = vmatpush.msra.mxu0 0.0
  %2506 = vmatpush.msra.mxu0 0.0
  %2507 = vmatpush.msra.mxu0 0.0
  %2508 = vmatpush.msra.mxu0 0.0
  %v2509 = vand.u32 %v2489, 4294901760
  %2510 = vmatpush.msra.mxu0 %v2509
  %v2511 = vand.u32 %v2492, 4294901760
  %v2512 = vsub.f32 %v2492, %v2511
  %v2513 = vand.u32 %v2512, 4294901760
  %v2514 = vsub.f32 %v2512, %v2513
  %v2515 = vand.u32 %v2514, 4294901760
  %2516 = vmatmul.f32.gmra.mxu0 %v2515
  %v2517 = vpop.f32.mrf.mxu0
  %v2518 = vadd.f32 0.0, %v2517
  %2519 = vdwg.mxu0
  %2520 = vmatpush.msra.mxu0 0.0
  %2521 = vmatpush.msra.mxu0 0.0
  %2522 = vmatpush.msra.mxu0 0.0
  %2523 = vmatpush.msra.mxu0 0.0
  %2524 = vmatpush.msra.mxu0 0.0
  %2525 = vmatpush.msra.mxu0 0.0
  %2526 = vmatpush.msra.mxu0 0.0
  %2527 = vmatpush.msra.mxu0 0.0
  %2528 = vmatpush.msra.mxu0 0.0
  %2529 = vmatpush.msra.mxu0 0.0
  %2530 = vmatpush.msra.mxu0 0.0
  %2531 = vmatpush.msra.mxu0 0.0
  %2532 = vmatpush.msra.mxu0 0.0
  %2533 = vmatpush.msra.mxu0 0.0
  %2534 = vmatpush.msra.mxu0 0.0
  %v2535 = vand.u32 %v2489, 4294901760
  %v2536 = vsub.f32 %v2489, %v2535
  %v2537 = vand.u32 %v2536, 4294901760
  %v2538 = vsub.f32 %v2536, %v2537
  %v2539 = vand.u32 %v2538, 4294901760
  %2540 = vmatpush.msra.mxu0 %v2539
  %v2541 = vand.u32 %v2492, 4294901760
  %2542 = vmatmul.f32.gmra.mxu0 %v2541
  %v2543 = vpop.f32.mrf.mxu0
  %v2544 = vadd.f32 %v2518, %v2543
  %2545 = vdwg.mxu0
  %2546 = vmatpush.msra.mxu0 0.0
  %2547 = vmatpush.msra.mxu0 0.0
  %2548 = vmatpush.msra.mxu0 0.0
  %2549 = vmatpush.msra.mxu0 0.0
  %2550 = vmatpush.msra.mxu0 0.0
  %2551 = vmatpush.msra.mxu0 0.0
  %2552 = vmatpush.msra.mxu0 0.0
  %2553 = vmatpush.msra.mxu0 0.0
  %2554 = vmatpush.msra.mxu0 0.0
  %2555 = vmatpush.msra.mxu0 0.0
  %2556 = vmatpush.msra.mxu0 0.0
  %2557 = vmatpush.msra.mxu0 0.0
  %2558 = vmatpush.msra.mxu0 0.0
  %2559 = vmatpush.msra.mxu0 0.0
  %2560 = vmatpush.msra.mxu0 0.0
  %v2561 = vand.u32 %v2489, 4294901760
  %v2562 = vsub.f32 %v2489, %v2561
  %2563 = vmatpush.msra.mxu0 %v2562
  %v2564 = vand.u32 %v2492, 4294901760
  %v2565 = vsub.f32 %v2492, %v2564
  %2566 = vmatmul.f32.gmra.mxu0 %v2565
  %v2567 = vpop.f32.mrf.mxu0
  %v2568 = vadd.f32 %v2544, %v2567
  %2569 = vdwg.mxu0
  %2570 = vmatpush.msra.mxu0 0.0
  %2571 = vmatpush.msra.mxu0 0.0
  %2572 = vmatpush.msra.mxu0 0.0
  %2573 = vmatpush.msra.mxu0 0.0
  %2574 = vmatpush.msra.mxu0 0.0
  %2575 = vmatpush.msra.mxu0 0.0
  %2576 = vmatpush.msra.mxu0 0.0
  %2577 = vmatpush.msra.mxu0 0.0
  %2578 = vmatpush.msra.mxu0 0.0
  %2579 = vmatpush.msra.mxu0 0.0
  %2580 = vmatpush.msra.mxu0 0.0
  %2581 = vmatpush.msra.mxu0 0.0
  %2582 = vmatpush.msra.mxu0 0.0
  %2583 = vmatpush.msra.mxu0 0.0
  %2584 = vmatpush.msra.mxu0 0.0
  %v2585 = vand.u32 %v2489, 4294901760
  %2586 = vmatpush.msra.mxu0 %v2585
  %v2587 = vand.u32 %v2492, 4294901760
  %v2588 = vsub.f32 %v2492, %v2587
  %v2589 = vand.u32 %v2588, 4294901760
  %2590 = vmatmul.f32.gmra.mxu0 %v2589
  %v2591 = vpop.f32.mrf.mxu0
  %v2592 = vadd.f32 %v2568, %v2591
  %2593 = vdwg.mxu0
  %2594 = vmatpush.msra.mxu0 0.0
  %2595 = vmatpush.msra.mxu0 0.0
  %2596 = vmatpush.msra.mxu0 0.0
  %2597 = vmatpush.msra.mxu0 0.0
  %2598 = vmatpush.msra.mxu0 0.0
  %2599 = vmatpush.msra.mxu0 0.0
  %2600 = vmatpush.msra.mxu0 0.0
  %2601 = vmatpush.msra.mxu0 0.0
  %2602 = vmatpush.msra.mxu0 0.0
  %2603 = vmatpush.msra.mxu0 0.0
  %2604 = vmatpush.msra.mxu0 0.0
  %2605 = vmatpush.msra.mxu0 0.0
  %2606 = vmatpush.msra.mxu0 0.0
  %2607 = vmatpush.msra.mxu0 0.0
  %2608 = vmatpush.msra.mxu0 0.0
  %v2609 = vand.u32 %v2489, 4294901760
  %v2610 = vsub.f32 %v2489, %v2609
  %v2611 = vand.u32 %v2610, 4294901760
  %2612 = vmatpush.msra.mxu0 %v2611
  %v2613 = vand.u32 %v2492, 4294901760
  %2614 = vmatmul.f32.gmra.mxu0 %v2613
  %v2615 = vpop.f32.mrf.mxu0
  %v2616 = vadd.f32 %v2592, %v2615
  %2617 = vdwg.mxu0
  %2618 = vmatpush.msra.mxu0 0.0
  %2619 = vmatpush.msra.mxu0 0.0
  %2620 = vmatpush.msra.mxu0 0.0
  %2621 = vmatpush.msra.mxu0 0.0
  %2622 = vmatpush.msra.mxu0 0.0
  %2623 = vmatpush.msra.mxu0 0.0
  %2624 = vmatpush.msra.mxu0 0.0
  %2625 = vmatpush.msra.mxu0 0.0
  %2626 = vmatpush.msra.mxu0 0.0
  %2627 = vmatpush.msra.mxu0 0.0
  %2628 = vmatpush.msra.mxu0 0.0
  %2629 = vmatpush.msra.mxu0 0.0
  %2630 = vmatpush.msra.mxu0 0.0
  %2631 = vmatpush.msra.mxu0 0.0
  %2632 = vmatpush.msra.mxu0 0.0
  %v2633 = vand.u32 %v2489, 4294901760
  %2634 = vmatpush.msra.mxu0 %v2633
  %v2635 = vand.u32 %v2492, 4294901760
  %2636 = vmatmul.f32.gmra.mxu0 %v2635
  %v2637 = vpop.f32.mrf.mxu0
  %v2638 = vadd.f32 %v2616, %v2637
  %2639 = vdwg.mxu0
  %2640 = vrot.lane.b32.xlu0 %v143, 96
  %v2641 = vpop.permute.xlu0 %2640
  %v2644 = vsel %vm152, %v1575, 0
  %2646 = vmatpush.msra.mxu0 0.0
  %2647 = vmatpush.msra.mxu0 0.0
  %2648 = vmatpush.msra.mxu0 0.0
  %2649 = vmatpush.msra.mxu0 0.0
  %2650 = vmatpush.msra.mxu0 0.0
  %2651 = vmatpush.msra.mxu0 0.0
  %2652 = vmatpush.msra.mxu0 0.0
  %2653 = vmatpush.msra.mxu0 0.0
  %2654 = vmatpush.msra.mxu0 0.0
  %2655 = vmatpush.msra.mxu0 0.0
  %2656 = vmatpush.msra.mxu0 0.0
  %2657 = vmatpush.msra.mxu0 0.0
  %2658 = vmatpush.msra.mxu0 0.0
  %2659 = vmatpush.msra.mxu0 0.0
  %2660 = vmatpush.msra.mxu0 0.0
  %v2661 = vand.u32 %v2641, 4294901760
  %2662 = vmatpush.msra.mxu0 %v2661
  %v2663 = vand.u32 %v2644, 4294901760
  %v2664 = vsub.f32 %v2644, %v2663
  %v2665 = vand.u32 %v2664, 4294901760
  %v2666 = vsub.f32 %v2664, %v2665
  %v2667 = vand.u32 %v2666, 4294901760
  %2668 = vmatmul.f32.gmra.mxu0 %v2667
  %v2669 = vpop.f32.mrf.mxu0
  %v2670 = vadd.f32 0.0, %v2669
  %2671 = vdwg.mxu0
  %2672 = vmatpush.msra.mxu0 0.0
  %2673 = vmatpush.msra.mxu0 0.0
  %2674 = vmatpush.msra.mxu0 0.0
  %2675 = vmatpush.msra.mxu0 0.0
  %2676 = vmatpush.msra.mxu0 0.0
  %2677 = vmatpush.msra.mxu0 0.0
  %2678 = vmatpush.msra.mxu0 0.0
  %2679 = vmatpush.msra.mxu0 0.0
  %2680 = vmatpush.msra.mxu0 0.0
  %2681 = vmatpush.msra.mxu0 0.0
  %2682 = vmatpush.msra.mxu0 0.0
  %2683 = vmatpush.msra.mxu0 0.0
  %2684 = vmatpush.msra.mxu0 0.0
  %2685 = vmatpush.msra.mxu0 0.0
  %2686 = vmatpush.msra.mxu0 0.0
  %v2687 = vand.u32 %v2641, 4294901760
  %v2688 = vsub.f32 %v2641, %v2687
  %v2689 = vand.u32 %v2688, 4294901760
  %v2690 = vsub.f32 %v2688, %v2689
  %v2691 = vand.u32 %v2690, 4294901760
  %2692 = vmatpush.msra.mxu0 %v2691
  %v2693 = vand.u32 %v2644, 4294901760
  %2694 = vmatmul.f32.gmra.mxu0 %v2693
  %v2695 = vpop.f32.mrf.mxu0
  %v2696 = vadd.f32 %v2670, %v2695
  %2697 = vdwg.mxu0
  %2698 = vmatpush.msra.mxu0 0.0
  %2699 = vmatpush.msra.mxu0 0.0
  %2700 = vmatpush.msra.mxu0 0.0
  %2701 = vmatpush.msra.mxu0 0.0
  %2702 = vmatpush.msra.mxu0 0.0
  %2703 = vmatpush.msra.mxu0 0.0
  %2704 = vmatpush.msra.mxu0 0.0
  %2705 = vmatpush.msra.mxu0 0.0
  %2706 = vmatpush.msra.mxu0 0.0
  %2707 = vmatpush.msra.mxu0 0.0
  %2708 = vmatpush.msra.mxu0 0.0
  %2709 = vmatpush.msra.mxu0 0.0
  %2710 = vmatpush.msra.mxu0 0.0
  %2711 = vmatpush.msra.mxu0 0.0
  %2712 = vmatpush.msra.mxu0 0.0
  %v2713 = vand.u32 %v2641, 4294901760
  %v2714 = vsub.f32 %v2641, %v2713
  %2715 = vmatpush.msra.mxu0 %v2714
  %v2716 = vand.u32 %v2644, 4294901760
  %v2717 = vsub.f32 %v2644, %v2716
  %2718 = vmatmul.f32.gmra.mxu0 %v2717
  %v2719 = vpop.f32.mrf.mxu0
  %v2720 = vadd.f32 %v2696, %v2719
  %2721 = vdwg.mxu0
  %2722 = vmatpush.msra.mxu0 0.0
  %2723 = vmatpush.msra.mxu0 0.0
  %2724 = vmatpush.msra.mxu0 0.0
  %2725 = vmatpush.msra.mxu0 0.0
  %2726 = vmatpush.msra.mxu0 0.0
  %2727 = vmatpush.msra.mxu0 0.0
  %2728 = vmatpush.msra.mxu0 0.0
  %2729 = vmatpush.msra.mxu0 0.0
  %2730 = vmatpush.msra.mxu0 0.0
  %2731 = vmatpush.msra.mxu0 0.0
  %2732 = vmatpush.msra.mxu0 0.0
  %2733 = vmatpush.msra.mxu0 0.0
  %2734 = vmatpush.msra.mxu0 0.0
  %2735 = vmatpush.msra.mxu0 0.0
  %2736 = vmatpush.msra.mxu0 0.0
  %v2737 = vand.u32 %v2641, 4294901760
  %2738 = vmatpush.msra.mxu0 %v2737
  %v2739 = vand.u32 %v2644, 4294901760
  %v2740 = vsub.f32 %v2644, %v2739
  %v2741 = vand.u32 %v2740, 4294901760
  %2742 = vmatmul.f32.gmra.mxu0 %v2741
  %v2743 = vpop.f32.mrf.mxu0
  %v2744 = vadd.f32 %v2720, %v2743
  %2745 = vdwg.mxu0
  %2746 = vmatpush.msra.mxu0 0.0
  %2747 = vmatpush.msra.mxu0 0.0
  %2748 = vmatpush.msra.mxu0 0.0
  %2749 = vmatpush.msra.mxu0 0.0
  %2750 = vmatpush.msra.mxu0 0.0
  %2751 = vmatpush.msra.mxu0 0.0
  %2752 = vmatpush.msra.mxu0 0.0
  %2753 = vmatpush.msra.mxu0 0.0
  %2754 = vmatpush.msra.mxu0 0.0
  %2755 = vmatpush.msra.mxu0 0.0
  %2756 = vmatpush.msra.mxu0 0.0
  %2757 = vmatpush.msra.mxu0 0.0
  %2758 = vmatpush.msra.mxu0 0.0
  %2759 = vmatpush.msra.mxu0 0.0
  %2760 = vmatpush.msra.mxu0 0.0
  %v2761 = vand.u32 %v2641, 4294901760
  %v2762 = vsub.f32 %v2641, %v2761
  %v2763 = vand.u32 %v2762, 4294901760
  %2764 = vmatpush.msra.mxu0 %v2763
  %v2765 = vand.u32 %v2644, 4294901760
  %2766 = vmatmul.f32.gmra.mxu0 %v2765
  %v2767 = vpop.f32.mrf.mxu0
  %v2768 = vadd.f32 %v2744, %v2767
  %2769 = vdwg.mxu0
  %2770 = vmatpush.msra.mxu0 0.0
  %2771 = vmatpush.msra.mxu0 0.0
  %2772 = vmatpush.msra.mxu0 0.0
  %2773 = vmatpush.msra.mxu0 0.0
  %2774 = vmatpush.msra.mxu0 0.0
  %2775 = vmatpush.msra.mxu0 0.0
  %2776 = vmatpush.msra.mxu0 0.0
  %2777 = vmatpush.msra.mxu0 0.0
  %2778 = vmatpush.msra.mxu0 0.0
  %2779 = vmatpush.msra.mxu0 0.0
  %2780 = vmatpush.msra.mxu0 0.0
  %2781 = vmatpush.msra.mxu0 0.0
  %2782 = vmatpush.msra.mxu0 0.0
  %2783 = vmatpush.msra.mxu0 0.0
  %2784 = vmatpush.msra.mxu0 0.0
  %v2785 = vand.u32 %v2641, 4294901760
  %2786 = vmatpush.msra.mxu0 %v2785
  %v2787 = vand.u32 %v2644, 4294901760
  %2788 = vmatmul.f32.gmra.mxu0 %v2787
  %v2789 = vpop.f32.mrf.mxu0
  %v2790 = vadd.f32 %v2768, %v2789
  %2791 = vdwg.mxu0
  %2792 = vrot.lane.b32.xlu0 %v136, 104
  %v2793 = vpop.permute.xlu0 %2792
  %2794 = vrot.lane.b32.xlu0 %v136, 120
  %v2795 = vpop.permute.xlu0 %2794
  %v2796 = vsel %vm152, %v2793, 0
  %v2798 = vsel %vm152, %v2795, 0
  %2800 = vmatpush.xpose.msra.mxu0 0.0
  %2801 = vmatpush.xpose.msra.mxu0 0.0
  %2802 = vmatpush.xpose.msra.mxu0 0.0
  %2803 = vmatpush.xpose.msra.mxu0 0.0
  %2804 = vmatpush.xpose.msra.mxu0 0.0
  %2805 = vmatpush.xpose.msra.mxu0 0.0
  %2806 = vmatpush.xpose.msra.mxu0 0.0
  %2807 = vmatpush.xpose.msra.mxu0 0.0
  %2808 = vmatpush.xpose.msra.mxu0 0.0
  %2809 = vmatpush.xpose.msra.mxu0 0.0
  %2810 = vmatpush.xpose.msra.mxu0 0.0
  %2811 = vmatpush.xpose.msra.mxu0 0.0
  %2812 = vmatpush.xpose.msra.mxu0 0.0
  %2813 = vmatpush.xpose.msra.mxu0 0.0
  %2814 = vmatpush.xpose.msra.mxu0 0.0
  %v2815 = vand.u32 %v2798, 4294901760
  %2816 = vmatpush.xpose.msra.mxu0 %v2815
  %v2817 = vand.u32 %v2796, 4294901760
  %v2818 = vsub.f32 %v2796, %v2817
  %v2819 = vand.u32 %v2818, 4294901760
  %v2820 = vsub.f32 %v2818, %v2819
  %v2821 = vand.u32 %v2820, 4294901760
  %2822 = vmatmul.f32.gmra.mxu0 %v2821
  %v2823 = vpop.f32.mrf.mxu0
  %v2824 = vadd.f32 0.0, %v2823
  %2825 = vdwg.mxu0
  %2826 = vmatpush.xpose.msra.mxu0 0.0
  %2827 = vmatpush.xpose.msra.mxu0 0.0
  %2828 = vmatpush.xpose.msra.mxu0 0.0
  %2829 = vmatpush.xpose.msra.mxu0 0.0
  %2830 = vmatpush.xpose.msra.mxu0 0.0
  %2831 = vmatpush.xpose.msra.mxu0 0.0
  %2832 = vmatpush.xpose.msra.mxu0 0.0
  %2833 = vmatpush.xpose.msra.mxu0 0.0
  %2834 = vmatpush.xpose.msra.mxu0 0.0
  %2835 = vmatpush.xpose.msra.mxu0 0.0
  %2836 = vmatpush.xpose.msra.mxu0 0.0
  %2837 = vmatpush.xpose.msra.mxu0 0.0
  %2838 = vmatpush.xpose.msra.mxu0 0.0
  %2839 = vmatpush.xpose.msra.mxu0 0.0
  %2840 = vmatpush.xpose.msra.mxu0 0.0
  %v2841 = vand.u32 %v2798, 4294901760
  %v2842 = vsub.f32 %v2798, %v2841
  %v2843 = vand.u32 %v2842, 4294901760
  %v2844 = vsub.f32 %v2842, %v2843
  %v2845 = vand.u32 %v2844, 4294901760
  %2846 = vmatpush.xpose.msra.mxu0 %v2845
  %v2847 = vand.u32 %v2796, 4294901760
  %2848 = vmatmul.f32.gmra.mxu0 %v2847
  %v2849 = vpop.f32.mrf.mxu0
  %v2850 = vadd.f32 %v2824, %v2849
  %2851 = vdwg.mxu0
  %2852 = vmatpush.xpose.msra.mxu0 0.0
  %2853 = vmatpush.xpose.msra.mxu0 0.0
  %2854 = vmatpush.xpose.msra.mxu0 0.0
  %2855 = vmatpush.xpose.msra.mxu0 0.0
  %2856 = vmatpush.xpose.msra.mxu0 0.0
  %2857 = vmatpush.xpose.msra.mxu0 0.0
  %2858 = vmatpush.xpose.msra.mxu0 0.0
  %2859 = vmatpush.xpose.msra.mxu0 0.0
  %2860 = vmatpush.xpose.msra.mxu0 0.0
  %2861 = vmatpush.xpose.msra.mxu0 0.0
  %2862 = vmatpush.xpose.msra.mxu0 0.0
  %2863 = vmatpush.xpose.msra.mxu0 0.0
  %2864 = vmatpush.xpose.msra.mxu0 0.0
  %2865 = vmatpush.xpose.msra.mxu0 0.0
  %2866 = vmatpush.xpose.msra.mxu0 0.0
  %v2867 = vand.u32 %v2798, 4294901760
  %v2868 = vsub.f32 %v2798, %v2867
  %2869 = vmatpush.xpose.msra.mxu0 %v2868
  %v2870 = vand.u32 %v2796, 4294901760
  %v2871 = vsub.f32 %v2796, %v2870
  %2872 = vmatmul.f32.gmra.mxu0 %v2871
  %v2873 = vpop.f32.mrf.mxu0
  %v2874 = vadd.f32 %v2850, %v2873
  %2875 = vdwg.mxu0
  %2876 = vmatpush.xpose.msra.mxu0 0.0
  %2877 = vmatpush.xpose.msra.mxu0 0.0
  %2878 = vmatpush.xpose.msra.mxu0 0.0
  %2879 = vmatpush.xpose.msra.mxu0 0.0
  %2880 = vmatpush.xpose.msra.mxu0 0.0
  %2881 = vmatpush.xpose.msra.mxu0 0.0
  %2882 = vmatpush.xpose.msra.mxu0 0.0
  %2883 = vmatpush.xpose.msra.mxu0 0.0
  %2884 = vmatpush.xpose.msra.mxu0 0.0
  %2885 = vmatpush.xpose.msra.mxu0 0.0
  %2886 = vmatpush.xpose.msra.mxu0 0.0
  %2887 = vmatpush.xpose.msra.mxu0 0.0
  %2888 = vmatpush.xpose.msra.mxu0 0.0
  %2889 = vmatpush.xpose.msra.mxu0 0.0
  %2890 = vmatpush.xpose.msra.mxu0 0.0
  %v2891 = vand.u32 %v2798, 4294901760
  %2892 = vmatpush.xpose.msra.mxu0 %v2891
  %v2893 = vand.u32 %v2796, 4294901760
  %v2894 = vsub.f32 %v2796, %v2893
  %v2895 = vand.u32 %v2894, 4294901760
  %2896 = vmatmul.f32.gmra.mxu0 %v2895
  %v2897 = vpop.f32.mrf.mxu0
  %v2898 = vadd.f32 %v2874, %v2897
  %2899 = vdwg.mxu0
  %2900 = vmatpush.xpose.msra.mxu0 0.0
  %2901 = vmatpush.xpose.msra.mxu0 0.0
  %2902 = vmatpush.xpose.msra.mxu0 0.0
  %2903 = vmatpush.xpose.msra.mxu0 0.0
  %2904 = vmatpush.xpose.msra.mxu0 0.0
  %2905 = vmatpush.xpose.msra.mxu0 0.0
  %2906 = vmatpush.xpose.msra.mxu0 0.0
  %2907 = vmatpush.xpose.msra.mxu0 0.0
  %2908 = vmatpush.xpose.msra.mxu0 0.0
  %2909 = vmatpush.xpose.msra.mxu0 0.0
  %2910 = vmatpush.xpose.msra.mxu0 0.0
  %2911 = vmatpush.xpose.msra.mxu0 0.0
  %2912 = vmatpush.xpose.msra.mxu0 0.0
  %2913 = vmatpush.xpose.msra.mxu0 0.0
  %2914 = vmatpush.xpose.msra.mxu0 0.0
  %v2915 = vand.u32 %v2798, 4294901760
  %v2916 = vsub.f32 %v2798, %v2915
  %v2917 = vand.u32 %v2916, 4294901760
  %2918 = vmatpush.xpose.msra.mxu0 %v2917
  %v2919 = vand.u32 %v2796, 4294901760
  %2920 = vmatmul.f32.gmra.mxu0 %v2919
  %v2921 = vpop.f32.mrf.mxu0
  %v2922 = vadd.f32 %v2898, %v2921
  %2923 = vdwg.mxu0
  %2924 = vmatpush.xpose.msra.mxu0 0.0
  %2925 = vmatpush.xpose.msra.mxu0 0.0
  %2926 = vmatpush.xpose.msra.mxu0 0.0
  %2927 = vmatpush.xpose.msra.mxu0 0.0
  %2928 = vmatpush.xpose.msra.mxu0 0.0
  %2929 = vmatpush.xpose.msra.mxu0 0.0
  %2930 = vmatpush.xpose.msra.mxu0 0.0
  %2931 = vmatpush.xpose.msra.mxu0 0.0
  %2932 = vmatpush.xpose.msra.mxu0 0.0
  %2933 = vmatpush.xpose.msra.mxu0 0.0
  %2934 = vmatpush.xpose.msra.mxu0 0.0
  %2935 = vmatpush.xpose.msra.mxu0 0.0
  %2936 = vmatpush.xpose.msra.mxu0 0.0
  %2937 = vmatpush.xpose.msra.mxu0 0.0
  %2938 = vmatpush.xpose.msra.mxu0 0.0
  %v2939 = vand.u32 %v2798, 4294901760
  %2940 = vmatpush.xpose.msra.mxu0 %v2939
  %v2941 = vand.u32 %v2796, 4294901760
  %2942 = vmatmul.f32.gmra.mxu0 %v2941
  %v2943 = vpop.f32.mrf.mxu0
  %v2944 = vadd.f32 %v2922, %v2943
  %2945 = vdwg.mxu0
  %2946 = vrot.lane.b32.xlu0 %v137, 104
  %v2947 = vpop.permute.xlu0 %2946
  %2948 = vrot.lane.b32.xlu0 %v137, 120
  %v2949 = vpop.permute.xlu0 %2948
  %v2950 = vsel %vm152, %v2947, 0
  %v2952 = vsel %vm152, %v2949, 0
  %2954 = vmatpush.xpose.msra.mxu0 0.0
  %2955 = vmatpush.xpose.msra.mxu0 0.0
  %2956 = vmatpush.xpose.msra.mxu0 0.0
  %2957 = vmatpush.xpose.msra.mxu0 0.0
  %2958 = vmatpush.xpose.msra.mxu0 0.0
  %2959 = vmatpush.xpose.msra.mxu0 0.0
  %2960 = vmatpush.xpose.msra.mxu0 0.0
  %2961 = vmatpush.xpose.msra.mxu0 0.0
  %2962 = vmatpush.xpose.msra.mxu0 0.0
  %2963 = vmatpush.xpose.msra.mxu0 0.0
  %2964 = vmatpush.xpose.msra.mxu0 0.0
  %2965 = vmatpush.xpose.msra.mxu0 0.0
  %2966 = vmatpush.xpose.msra.mxu0 0.0
  %2967 = vmatpush.xpose.msra.mxu0 0.0
  %2968 = vmatpush.xpose.msra.mxu0 0.0
  %v2969 = vand.u32 %v2952, 4294901760
  %2970 = vmatpush.xpose.msra.mxu0 %v2969
  %v2971 = vand.u32 %v2950, 4294901760
  %v2972 = vsub.f32 %v2950, %v2971
  %v2973 = vand.u32 %v2972, 4294901760
  %v2974 = vsub.f32 %v2972, %v2973
  %v2975 = vand.u32 %v2974, 4294901760
  %2976 = vmatmul.f32.gmra.mxu0 %v2975
  %v2977 = vpop.f32.mrf.mxu0
  %v2978 = vadd.f32 0.0, %v2977
  %2979 = vdwg.mxu0
  %2980 = vmatpush.xpose.msra.mxu0 0.0
  %2981 = vmatpush.xpose.msra.mxu0 0.0
  %2982 = vmatpush.xpose.msra.mxu0 0.0
  %2983 = vmatpush.xpose.msra.mxu0 0.0
  %2984 = vmatpush.xpose.msra.mxu0 0.0
  %2985 = vmatpush.xpose.msra.mxu0 0.0
  %2986 = vmatpush.xpose.msra.mxu0 0.0
  %2987 = vmatpush.xpose.msra.mxu0 0.0
  %2988 = vmatpush.xpose.msra.mxu0 0.0
  %2989 = vmatpush.xpose.msra.mxu0 0.0
  %2990 = vmatpush.xpose.msra.mxu0 0.0
  %2991 = vmatpush.xpose.msra.mxu0 0.0
  %2992 = vmatpush.xpose.msra.mxu0 0.0
  %2993 = vmatpush.xpose.msra.mxu0 0.0
  %2994 = vmatpush.xpose.msra.mxu0 0.0
  %v2995 = vand.u32 %v2952, 4294901760
  %v2996 = vsub.f32 %v2952, %v2995
  %v2997 = vand.u32 %v2996, 4294901760
  %v2998 = vsub.f32 %v2996, %v2997
  %v2999 = vand.u32 %v2998, 4294901760
  %3000 = vmatpush.xpose.msra.mxu0 %v2999
  %v3001 = vand.u32 %v2950, 4294901760
  %3002 = vmatmul.f32.gmra.mxu0 %v3001
  %v3003 = vpop.f32.mrf.mxu0
  %v3004 = vadd.f32 %v2978, %v3003
  %3005 = vdwg.mxu0
  %3006 = vmatpush.xpose.msra.mxu0 0.0
  %3007 = vmatpush.xpose.msra.mxu0 0.0
  %3008 = vmatpush.xpose.msra.mxu0 0.0
  %3009 = vmatpush.xpose.msra.mxu0 0.0
  %3010 = vmatpush.xpose.msra.mxu0 0.0
  %3011 = vmatpush.xpose.msra.mxu0 0.0
  %3012 = vmatpush.xpose.msra.mxu0 0.0
  %3013 = vmatpush.xpose.msra.mxu0 0.0
  %3014 = vmatpush.xpose.msra.mxu0 0.0
  %3015 = vmatpush.xpose.msra.mxu0 0.0
  %3016 = vmatpush.xpose.msra.mxu0 0.0
  %3017 = vmatpush.xpose.msra.mxu0 0.0
  %3018 = vmatpush.xpose.msra.mxu0 0.0
  %3019 = vmatpush.xpose.msra.mxu0 0.0
  %3020 = vmatpush.xpose.msra.mxu0 0.0
  %v3021 = vand.u32 %v2952, 4294901760
  %v3022 = vsub.f32 %v2952, %v3021
  %3023 = vmatpush.xpose.msra.mxu0 %v3022
  %v3024 = vand.u32 %v2950, 4294901760
  %v3025 = vsub.f32 %v2950, %v3024
  %3026 = vmatmul.f32.gmra.mxu0 %v3025
  %v3027 = vpop.f32.mrf.mxu0
  %v3028 = vadd.f32 %v3004, %v3027
  %3029 = vdwg.mxu0
  %3030 = vmatpush.xpose.msra.mxu0 0.0
  %3031 = vmatpush.xpose.msra.mxu0 0.0
  %3032 = vmatpush.xpose.msra.mxu0 0.0
  %3033 = vmatpush.xpose.msra.mxu0 0.0
  %3034 = vmatpush.xpose.msra.mxu0 0.0
  %3035 = vmatpush.xpose.msra.mxu0 0.0
  %3036 = vmatpush.xpose.msra.mxu0 0.0
  %3037 = vmatpush.xpose.msra.mxu0 0.0
  %3038 = vmatpush.xpose.msra.mxu0 0.0
  %3039 = vmatpush.xpose.msra.mxu0 0.0
  %3040 = vmatpush.xpose.msra.mxu0 0.0
  %3041 = vmatpush.xpose.msra.mxu0 0.0
  %3042 = vmatpush.xpose.msra.mxu0 0.0
  %3043 = vmatpush.xpose.msra.mxu0 0.0
  %3044 = vmatpush.xpose.msra.mxu0 0.0
  %v3045 = vand.u32 %v2952, 4294901760
  %3046 = vmatpush.xpose.msra.mxu0 %v3045
  %v3047 = vand.u32 %v2950, 4294901760
  %v3048 = vsub.f32 %v2950, %v3047
  %v3049 = vand.u32 %v3048, 4294901760
  %3050 = vmatmul.f32.gmra.mxu0 %v3049
  %v3051 = vpop.f32.mrf.mxu0
  %v3052 = vadd.f32 %v3028, %v3051
  %3053 = vdwg.mxu0
  %3054 = vmatpush.xpose.msra.mxu0 0.0
  %3055 = vmatpush.xpose.msra.mxu0 0.0
  %3056 = vmatpush.xpose.msra.mxu0 0.0
  %3057 = vmatpush.xpose.msra.mxu0 0.0
  %3058 = vmatpush.xpose.msra.mxu0 0.0
  %3059 = vmatpush.xpose.msra.mxu0 0.0
  %3060 = vmatpush.xpose.msra.mxu0 0.0
  %3061 = vmatpush.xpose.msra.mxu0 0.0
  %3062 = vmatpush.xpose.msra.mxu0 0.0
  %3063 = vmatpush.xpose.msra.mxu0 0.0
  %3064 = vmatpush.xpose.msra.mxu0 0.0
  %3065 = vmatpush.xpose.msra.mxu0 0.0
  %3066 = vmatpush.xpose.msra.mxu0 0.0
  %3067 = vmatpush.xpose.msra.mxu0 0.0
  %3068 = vmatpush.xpose.msra.mxu0 0.0
  %v3069 = vand.u32 %v2952, 4294901760
  %v3070 = vsub.f32 %v2952, %v3069
  %v3071 = vand.u32 %v3070, 4294901760
  %3072 = vmatpush.xpose.msra.mxu0 %v3071
  %v3073 = vand.u32 %v2950, 4294901760
  %3074 = vmatmul.f32.gmra.mxu0 %v3073
  %v3075 = vpop.f32.mrf.mxu0
  %v3076 = vadd.f32 %v3052, %v3075
  %3077 = vdwg.mxu0
  %3078 = vmatpush.xpose.msra.mxu0 0.0
  %3079 = vmatpush.xpose.msra.mxu0 0.0
  %3080 = vmatpush.xpose.msra.mxu0 0.0
  %3081 = vmatpush.xpose.msra.mxu0 0.0
  %3082 = vmatpush.xpose.msra.mxu0 0.0
  %3083 = vmatpush.xpose.msra.mxu0 0.0
  %3084 = vmatpush.xpose.msra.mxu0 0.0
  %3085 = vmatpush.xpose.msra.mxu0 0.0
  %3086 = vmatpush.xpose.msra.mxu0 0.0
  %3087 = vmatpush.xpose.msra.mxu0 0.0
  %3088 = vmatpush.xpose.msra.mxu0 0.0
  %3089 = vmatpush.xpose.msra.mxu0 0.0
  %3090 = vmatpush.xpose.msra.mxu0 0.0
  %3091 = vmatpush.xpose.msra.mxu0 0.0
  %3092 = vmatpush.xpose.msra.mxu0 0.0
  %v3093 = vand.u32 %v2952, 4294901760
  %3094 = vmatpush.xpose.msra.mxu0 %v3093
  %v3095 = vand.u32 %v2950, 4294901760
  %3096 = vmatmul.f32.gmra.mxu0 %v3095
  %v3097 = vpop.f32.mrf.mxu0
  %v3098 = vadd.f32 %v3076, %v3097
  %3099 = vdwg.mxu0
  %3100 = vrot.lane.b32.xlu0 %v138, 104
  %v3101 = vpop.permute.xlu0 %3100
  %3102 = vrot.lane.b32.xlu0 %v138, 120
  %v3103 = vpop.permute.xlu0 %3102
  %v3104 = vsel %vm152, %v3101, 0
  %v3106 = vsel %vm152, %v3103, 0
  %3108 = vmatpush.xpose.msra.mxu0 0.0
  %3109 = vmatpush.xpose.msra.mxu0 0.0
  %3110 = vmatpush.xpose.msra.mxu0 0.0
  %3111 = vmatpush.xpose.msra.mxu0 0.0
  %3112 = vmatpush.xpose.msra.mxu0 0.0
  %3113 = vmatpush.xpose.msra.mxu0 0.0
  %3114 = vmatpush.xpose.msra.mxu0 0.0
  %3115 = vmatpush.xpose.msra.mxu0 0.0
  %3116 = vmatpush.xpose.msra.mxu0 0.0
  %3117 = vmatpush.xpose.msra.mxu0 0.0
  %3118 = vmatpush.xpose.msra.mxu0 0.0
  %3119 = vmatpush.xpose.msra.mxu0 0.0
  %3120 = vmatpush.xpose.msra.mxu0 0.0
  %3121 = vmatpush.xpose.msra.mxu0 0.0
  %3122 = vmatpush.xpose.msra.mxu0 0.0
  %v3123 = vand.u32 %v3106, 4294901760
  %3124 = vmatpush.xpose.msra.mxu0 %v3123
  %v3125 = vand.u32 %v3104, 4294901760
  %v3126 = vsub.f32 %v3104, %v3125
  %v3127 = vand.u32 %v3126, 4294901760
  %v3128 = vsub.f32 %v3126, %v3127
  %v3129 = vand.u32 %v3128, 4294901760
  %3130 = vmatmul.f32.gmra.mxu0 %v3129
  %v3131 = vpop.f32.mrf.mxu0
  %v3132 = vadd.f32 0.0, %v3131
  %3133 = vdwg.mxu0
  %3134 = vmatpush.xpose.msra.mxu0 0.0
  %3135 = vmatpush.xpose.msra.mxu0 0.0
  %3136 = vmatpush.xpose.msra.mxu0 0.0
  %3137 = vmatpush.xpose.msra.mxu0 0.0
  %3138 = vmatpush.xpose.msra.mxu0 0.0
  %3139 = vmatpush.xpose.msra.mxu0 0.0
  %3140 = vmatpush.xpose.msra.mxu0 0.0
  %3141 = vmatpush.xpose.msra.mxu0 0.0
  %3142 = vmatpush.xpose.msra.mxu0 0.0
  %3143 = vmatpush.xpose.msra.mxu0 0.0
  %3144 = vmatpush.xpose.msra.mxu0 0.0
  %3145 = vmatpush.xpose.msra.mxu0 0.0
  %3146 = vmatpush.xpose.msra.mxu0 0.0
  %3147 = vmatpush.xpose.msra.mxu0 0.0
  %3148 = vmatpush.xpose.msra.mxu0 0.0
  %v3149 = vand.u32 %v3106, 4294901760
  %v3150 = vsub.f32 %v3106, %v3149
  %v3151 = vand.u32 %v3150, 4294901760
  %v3152 = vsub.f32 %v3150, %v3151
  %v3153 = vand.u32 %v3152, 4294901760
  %3154 = vmatpush.xpose.msra.mxu0 %v3153
  %v3155 = vand.u32 %v3104, 4294901760
  %3156 = vmatmul.f32.gmra.mxu0 %v3155
  %v3157 = vpop.f32.mrf.mxu0
  %v3158 = vadd.f32 %v3132, %v3157
  %3159 = vdwg.mxu0
  %3160 = vmatpush.xpose.msra.mxu0 0.0
  %3161 = vmatpush.xpose.msra.mxu0 0.0
  %3162 = vmatpush.xpose.msra.mxu0 0.0
  %3163 = vmatpush.xpose.msra.mxu0 0.0
  %3164 = vmatpush.xpose.msra.mxu0 0.0
  %3165 = vmatpush.xpose.msra.mxu0 0.0
  %3166 = vmatpush.xpose.msra.mxu0 0.0
  %3167 = vmatpush.xpose.msra.mxu0 0.0
  %3168 = vmatpush.xpose.msra.mxu0 0.0
  %3169 = vmatpush.xpose.msra.mxu0 0.0
  %3170 = vmatpush.xpose.msra.mxu0 0.0
  %3171 = vmatpush.xpose.msra.mxu0 0.0
  %3172 = vmatpush.xpose.msra.mxu0 0.0
  %3173 = vmatpush.xpose.msra.mxu0 0.0
  %3174 = vmatpush.xpose.msra.mxu0 0.0
  %v3175 = vand.u32 %v3106, 4294901760
  %v3176 = vsub.f32 %v3106, %v3175
  %3177 = vmatpush.xpose.msra.mxu0 %v3176
  %v3178 = vand.u32 %v3104, 4294901760
  %v3179 = vsub.f32 %v3104, %v3178
  %3180 = vmatmul.f32.gmra.mxu0 %v3179
  %v3181 = vpop.f32.mrf.mxu0
  %v3182 = vadd.f32 %v3158, %v3181
  %3183 = vdwg.mxu0
  %3184 = vmatpush.xpose.msra.mxu0 0.0
  %3185 = vmatpush.xpose.msra.mxu0 0.0
  %3186 = vmatpush.xpose.msra.mxu0 0.0
  %3187 = vmatpush.xpose.msra.mxu0 0.0
  %3188 = vmatpush.xpose.msra.mxu0 0.0
  %3189 = vmatpush.xpose.msra.mxu0 0.0
  %3190 = vmatpush.xpose.msra.mxu0 0.0
  %3191 = vmatpush.xpose.msra.mxu0 0.0
  %3192 = vmatpush.xpose.msra.mxu0 0.0
  %3193 = vmatpush.xpose.msra.mxu0 0.0
  %3194 = vmatpush.xpose.msra.mxu0 0.0
  %3195 = vmatpush.xpose.msra.mxu0 0.0
  %3196 = vmatpush.xpose.msra.mxu0 0.0
  %3197 = vmatpush.xpose.msra.mxu0 0.0
  %3198 = vmatpush.xpose.msra.mxu0 0.0
  %v3199 = vand.u32 %v3106, 4294901760
  %3200 = vmatpush.xpose.msra.mxu0 %v3199
  %v3201 = vand.u32 %v3104, 4294901760
  %v3202 = vsub.f32 %v3104, %v3201
  %v3203 = vand.u32 %v3202, 4294901760
  %3204 = vmatmul.f32.gmra.mxu0 %v3203
  %v3205 = vpop.f32.mrf.mxu0
  %v3206 = vadd.f32 %v3182, %v3205
  %3207 = vdwg.mxu0
  %3208 = vmatpush.xpose.msra.mxu0 0.0
  %3209 = vmatpush.xpose.msra.mxu0 0.0
  %3210 = vmatpush.xpose.msra.mxu0 0.0
  %3211 = vmatpush.xpose.msra.mxu0 0.0
  %3212 = vmatpush.xpose.msra.mxu0 0.0
  %3213 = vmatpush.xpose.msra.mxu0 0.0
  %3214 = vmatpush.xpose.msra.mxu0 0.0
  %3215 = vmatpush.xpose.msra.mxu0 0.0
  %3216 = vmatpush.xpose.msra.mxu0 0.0
  %3217 = vmatpush.xpose.msra.mxu0 0.0
  %3218 = vmatpush.xpose.msra.mxu0 0.0
  %3219 = vmatpush.xpose.msra.mxu0 0.0
  %3220 = vmatpush.xpose.msra.mxu0 0.0
  %3221 = vmatpush.xpose.msra.mxu0 0.0
  %3222 = vmatpush.xpose.msra.mxu0 0.0
  %v3223 = vand.u32 %v3106, 4294901760
  %v3224 = vsub.f32 %v3106, %v3223
  %v3225 = vand.u32 %v3224, 4294901760
  %3226 = vmatpush.xpose.msra.mxu0 %v3225
  %v3227 = vand.u32 %v3104, 4294901760
  %3228 = vmatmul.f32.gmra.mxu0 %v3227
  %v3229 = vpop.f32.mrf.mxu0
  %v3230 = vadd.f32 %v3206, %v3229
  %3231 = vdwg.mxu0
  %3232 = vmatpush.xpose.msra.mxu0 0.0
  %3233 = vmatpush.xpose.msra.mxu0 0.0
  %3234 = vmatpush.xpose.msra.mxu0 0.0
  %3235 = vmatpush.xpose.msra.mxu0 0.0
  %3236 = vmatpush.xpose.msra.mxu0 0.0
  %3237 = vmatpush.xpose.msra.mxu0 0.0
  %3238 = vmatpush.xpose.msra.mxu0 0.0
  %3239 = vmatpush.xpose.msra.mxu0 0.0
  %3240 = vmatpush.xpose.msra.mxu0 0.0
  %3241 = vmatpush.xpose.msra.mxu0 0.0
  %3242 = vmatpush.xpose.msra.mxu0 0.0
  %3243 = vmatpush.xpose.msra.mxu0 0.0
  %3244 = vmatpush.xpose.msra.mxu0 0.0
  %3245 = vmatpush.xpose.msra.mxu0 0.0
  %3246 = vmatpush.xpose.msra.mxu0 0.0
  %v3247 = vand.u32 %v3106, 4294901760
  %3248 = vmatpush.xpose.msra.mxu0 %v3247
  %v3249 = vand.u32 %v3104, 4294901760
  %3250 = vmatmul.f32.gmra.mxu0 %v3249
  %v3251 = vpop.f32.mrf.mxu0
  %v3252 = vadd.f32 %v3230, %v3251
  %3253 = vdwg.mxu0
  %3254 = vrot.lane.b32.xlu0 %v139, 104
  %v3255 = vpop.permute.xlu0 %3254
  %3256 = vrot.lane.b32.xlu0 %v139, 120
  %v3257 = vpop.permute.xlu0 %3256
  %v3258 = vsel %vm152, %v3255, 0
  %v3260 = vsel %vm152, %v3257, 0
  %3262 = vmatpush.xpose.msra.mxu0 0.0
  %3263 = vmatpush.xpose.msra.mxu0 0.0
  %3264 = vmatpush.xpose.msra.mxu0 0.0
  %3265 = vmatpush.xpose.msra.mxu0 0.0
  %3266 = vmatpush.xpose.msra.mxu0 0.0
  %3267 = vmatpush.xpose.msra.mxu0 0.0
  %3268 = vmatpush.xpose.msra.mxu0 0.0
  %3269 = vmatpush.xpose.msra.mxu0 0.0
  %3270 = vmatpush.xpose.msra.mxu0 0.0
  %3271 = vmatpush.xpose.msra.mxu0 0.0
  %3272 = vmatpush.xpose.msra.mxu0 0.0
  %3273 = vmatpush.xpose.msra.mxu0 0.0
  %3274 = vmatpush.xpose.msra.mxu0 0.0
  %3275 = vmatpush.xpose.msra.mxu0 0.0
  %3276 = vmatpush.xpose.msra.mxu0 0.0
  %v3277 = vand.u32 %v3260, 4294901760
  %3278 = vmatpush.xpose.msra.mxu0 %v3277
  %v3279 = vand.u32 %v3258, 4294901760
  %v3280 = vsub.f32 %v3258, %v3279
  %v3281 = vand.u32 %v3280, 4294901760
  %v3282 = vsub.f32 %v3280, %v3281
  %v3283 = vand.u32 %v3282, 4294901760
  %3284 = vmatmul.f32.gmra.mxu0 %v3283
  %v3285 = vpop.f32.mrf.mxu0
  %v3286 = vadd.f32 0.0, %v3285
  %3287 = vdwg.mxu0
  %3288 = vmatpush.xpose.msra.mxu0 0.0
  %3289 = vmatpush.xpose.msra.mxu0 0.0
  %3290 = vmatpush.xpose.msra.mxu0 0.0
  %3291 = vmatpush.xpose.msra.mxu0 0.0
  %3292 = vmatpush.xpose.msra.mxu0 0.0
  %3293 = vmatpush.xpose.msra.mxu0 0.0
  %3294 = vmatpush.xpose.msra.mxu0 0.0
  %3295 = vmatpush.xpose.msra.mxu0 0.0
  %3296 = vmatpush.xpose.msra.mxu0 0.0
  %3297 = vmatpush.xpose.msra.mxu0 0.0
  %3298 = vmatpush.xpose.msra.mxu0 0.0
  %3299 = vmatpush.xpose.msra.mxu0 0.0
  %3300 = vmatpush.xpose.msra.mxu0 0.0
  %3301 = vmatpush.xpose.msra.mxu0 0.0
  %3302 = vmatpush.xpose.msra.mxu0 0.0
  %v3303 = vand.u32 %v3260, 4294901760
  %v3304 = vsub.f32 %v3260, %v3303
  %v3305 = vand.u32 %v3304, 4294901760
  %v3306 = vsub.f32 %v3304, %v3305
  %v3307 = vand.u32 %v3306, 4294901760
  %3308 = vmatpush.xpose.msra.mxu0 %v3307
  %v3309 = vand.u32 %v3258, 4294901760
  %3310 = vmatmul.f32.gmra.mxu0 %v3309
  %v3311 = vpop.f32.mrf.mxu0
  %v3312 = vadd.f32 %v3286, %v3311
  %3313 = vdwg.mxu0
  %3314 = vmatpush.xpose.msra.mxu0 0.0
  %3315 = vmatpush.xpose.msra.mxu0 0.0
  %3316 = vmatpush.xpose.msra.mxu0 0.0
  %3317 = vmatpush.xpose.msra.mxu0 0.0
  %3318 = vmatpush.xpose.msra.mxu0 0.0
  %3319 = vmatpush.xpose.msra.mxu0 0.0
  %3320 = vmatpush.xpose.msra.mxu0 0.0
  %3321 = vmatpush.xpose.msra.mxu0 0.0
  %3322 = vmatpush.xpose.msra.mxu0 0.0
  %3323 = vmatpush.xpose.msra.mxu0 0.0
  %3324 = vmatpush.xpose.msra.mxu0 0.0
  %3325 = vmatpush.xpose.msra.mxu0 0.0
  %3326 = vmatpush.xpose.msra.mxu0 0.0
  %3327 = vmatpush.xpose.msra.mxu0 0.0
  %3328 = vmatpush.xpose.msra.mxu0 0.0
  %v3329 = vand.u32 %v3260, 4294901760
  %v3330 = vsub.f32 %v3260, %v3329
  %3331 = vmatpush.xpose.msra.mxu0 %v3330
  %v3332 = vand.u32 %v3258, 4294901760
  %v3333 = vsub.f32 %v3258, %v3332
  %3334 = vmatmul.f32.gmra.mxu0 %v3333
  %v3335 = vpop.f32.mrf.mxu0
  %v3336 = vadd.f32 %v3312, %v3335
  %3337 = vdwg.mxu0
  %3338 = vmatpush.xpose.msra.mxu0 0.0
  %3339 = vmatpush.xpose.msra.mxu0 0.0
  %3340 = vmatpush.xpose.msra.mxu0 0.0
  %3341 = vmatpush.xpose.msra.mxu0 0.0
  %3342 = vmatpush.xpose.msra.mxu0 0.0
  %3343 = vmatpush.xpose.msra.mxu0 0.0
  %3344 = vmatpush.xpose.msra.mxu0 0.0
  %3345 = vmatpush.xpose.msra.mxu0 0.0
  %3346 = vmatpush.xpose.msra.mxu0 0.0
  %3347 = vmatpush.xpose.msra.mxu0 0.0
  %3348 = vmatpush.xpose.msra.mxu0 0.0
  %3349 = vmatpush.xpose.msra.mxu0 0.0
  %3350 = vmatpush.xpose.msra.mxu0 0.0
  %3351 = vmatpush.xpose.msra.mxu0 0.0
  %3352 = vmatpush.xpose.msra.mxu0 0.0
  %v3353 = vand.u32 %v3260, 4294901760
  %3354 = vmatpush.xpose.msra.mxu0 %v3353
  %v3355 = vand.u32 %v3258, 4294901760
  %v3356 = vsub.f32 %v3258, %v3355
  %v3357 = vand.u32 %v3356, 4294901760
  %3358 = vmatmul.f32.gmra.mxu0 %v3357
  %v3359 = vpop.f32.mrf.mxu0
  %v3360 = vadd.f32 %v3336, %v3359
  %3361 = vdwg.mxu0
  %3362 = vmatpush.xpose.msra.mxu0 0.0
  %3363 = vmatpush.xpose.msra.mxu0 0.0
  %3364 = vmatpush.xpose.msra.mxu0 0.0
  %3365 = vmatpush.xpose.msra.mxu0 0.0
  %3366 = vmatpush.xpose.msra.mxu0 0.0
  %3367 = vmatpush.xpose.msra.mxu0 0.0
  %3368 = vmatpush.xpose.msra.mxu0 0.0
  %3369 = vmatpush.xpose.msra.mxu0 0.0
  %3370 = vmatpush.xpose.msra.mxu0 0.0
  %3371 = vmatpush.xpose.msra.mxu0 0.0
  %3372 = vmatpush.xpose.msra.mxu0 0.0
  %3373 = vmatpush.xpose.msra.mxu0 0.0
  %3374 = vmatpush.xpose.msra.mxu0 0.0
  %3375 = vmatpush.xpose.msra.mxu0 0.0
  %3376 = vmatpush.xpose.msra.mxu0 0.0
  %v3377 = vand.u32 %v3260, 4294901760
  %v3378 = vsub.f32 %v3260, %v3377
  %v3379 = vand.u32 %v3378, 4294901760
  %3380 = vmatpush.xpose.msra.mxu0 %v3379
  %v3381 = vand.u32 %v3258, 4294901760
  %3382 = vmatmul.f32.gmra.mxu0 %v3381
  %v3383 = vpop.f32.mrf.mxu0
  %v3384 = vadd.f32 %v3360, %v3383
  %3385 = vdwg.mxu0
  %3386 = vmatpush.xpose.msra.mxu0 0.0
  %3387 = vmatpush.xpose.msra.mxu0 0.0
  %3388 = vmatpush.xpose.msra.mxu0 0.0
  %3389 = vmatpush.xpose.msra.mxu0 0.0
  %3390 = vmatpush.xpose.msra.mxu0 0.0
  %3391 = vmatpush.xpose.msra.mxu0 0.0
  %3392 = vmatpush.xpose.msra.mxu0 0.0
  %3393 = vmatpush.xpose.msra.mxu0 0.0
  %3394 = vmatpush.xpose.msra.mxu0 0.0
  %3395 = vmatpush.xpose.msra.mxu0 0.0
  %3396 = vmatpush.xpose.msra.mxu0 0.0
  %3397 = vmatpush.xpose.msra.mxu0 0.0
  %3398 = vmatpush.xpose.msra.mxu0 0.0
  %3399 = vmatpush.xpose.msra.mxu0 0.0
  %3400 = vmatpush.xpose.msra.mxu0 0.0
  %v3401 = vand.u32 %v3260, 4294901760
  %3402 = vmatpush.xpose.msra.mxu0 %v3401
  %v3403 = vand.u32 %v3258, 4294901760
  %3404 = vmatmul.f32.gmra.mxu0 %v3403
  %v3405 = vpop.f32.mrf.mxu0
  %v3406 = vadd.f32 %v3384, %v3405
  %3407 = vdwg.mxu0
  %3408 = vrot.lane.b32.xlu0 %v140, 104
  %v3409 = vpop.permute.xlu0 %3408
  %3410 = vrot.lane.b32.xlu0 %v140, 120
  %v3411 = vpop.permute.xlu0 %3410
  %v3412 = vsel %vm152, %v3409, 0
  %v3414 = vsel %vm152, %v3411, 0
  %3416 = vmatpush.xpose.msra.mxu0 0.0
  %3417 = vmatpush.xpose.msra.mxu0 0.0
  %3418 = vmatpush.xpose.msra.mxu0 0.0
  %3419 = vmatpush.xpose.msra.mxu0 0.0
  %3420 = vmatpush.xpose.msra.mxu0 0.0
  %3421 = vmatpush.xpose.msra.mxu0 0.0
  %3422 = vmatpush.xpose.msra.mxu0 0.0
  %3423 = vmatpush.xpose.msra.mxu0 0.0
  %3424 = vmatpush.xpose.msra.mxu0 0.0
  %3425 = vmatpush.xpose.msra.mxu0 0.0
  %3426 = vmatpush.xpose.msra.mxu0 0.0
  %3427 = vmatpush.xpose.msra.mxu0 0.0
  %3428 = vmatpush.xpose.msra.mxu0 0.0
  %3429 = vmatpush.xpose.msra.mxu0 0.0
  %3430 = vmatpush.xpose.msra.mxu0 0.0
  %v3431 = vand.u32 %v3414, 4294901760
  %3432 = vmatpush.xpose.msra.mxu0 %v3431
  %v3433 = vand.u32 %v3412, 4294901760
  %v3434 = vsub.f32 %v3412, %v3433
  %v3435 = vand.u32 %v3434, 4294901760
  %v3436 = vsub.f32 %v3434, %v3435
  %v3437 = vand.u32 %v3436, 4294901760
  %3438 = vmatmul.f32.gmra.mxu0 %v3437
  %v3439 = vpop.f32.mrf.mxu0
  %v3440 = vadd.f32 0.0, %v3439
  %3441 = vdwg.mxu0
  %3442 = vmatpush.xpose.msra.mxu0 0.0
  %3443 = vmatpush.xpose.msra.mxu0 0.0
  %3444 = vmatpush.xpose.msra.mxu0 0.0
  %3445 = vmatpush.xpose.msra.mxu0 0.0
  %3446 = vmatpush.xpose.msra.mxu0 0.0
  %3447 = vmatpush.xpose.msra.mxu0 0.0
  %3448 = vmatpush.xpose.msra.mxu0 0.0
  %3449 = vmatpush.xpose.msra.mxu0 0.0
  %3450 = vmatpush.xpose.msra.mxu0 0.0
  %3451 = vmatpush.xpose.msra.mxu0 0.0
  %3452 = vmatpush.xpose.msra.mxu0 0.0
  %3453 = vmatpush.xpose.msra.mxu0 0.0
  %3454 = vmatpush.xpose.msra.mxu0 0.0
  %3455 = vmatpush.xpose.msra.mxu0 0.0
  %3456 = vmatpush.xpose.msra.mxu0 0.0
  %v3457 = vand.u32 %v3414, 4294901760
  %v3458 = vsub.f32 %v3414, %v3457
  %v3459 = vand.u32 %v3458, 4294901760
  %v3460 = vsub.f32 %v3458, %v3459
  %v3461 = vand.u32 %v3460, 4294901760
  %3462 = vmatpush.xpose.msra.mxu0 %v3461
  %v3463 = vand.u32 %v3412, 4294901760
  %3464 = vmatmul.f32.gmra.mxu0 %v3463
  %v3465 = vpop.f32.mrf.mxu0
  %v3466 = vadd.f32 %v3440, %v3465
  %3467 = vdwg.mxu0
  %3468 = vmatpush.xpose.msra.mxu0 0.0
  %3469 = vmatpush.xpose.msra.mxu0 0.0
  %3470 = vmatpush.xpose.msra.mxu0 0.0
  %3471 = vmatpush.xpose.msra.mxu0 0.0
  %3472 = vmatpush.xpose.msra.mxu0 0.0
  %3473 = vmatpush.xpose.msra.mxu0 0.0
  %3474 = vmatpush.xpose.msra.mxu0 0.0
  %3475 = vmatpush.xpose.msra.mxu0 0.0
  %3476 = vmatpush.xpose.msra.mxu0 0.0
  %3477 = vmatpush.xpose.msra.mxu0 0.0
  %3478 = vmatpush.xpose.msra.mxu0 0.0
  %3479 = vmatpush.xpose.msra.mxu0 0.0
  %3480 = vmatpush.xpose.msra.mxu0 0.0
  %3481 = vmatpush.xpose.msra.mxu0 0.0
  %3482 = vmatpush.xpose.msra.mxu0 0.0
  %v3483 = vand.u32 %v3414, 4294901760
  %v3484 = vsub.f32 %v3414, %v3483
  %3485 = vmatpush.xpose.msra.mxu0 %v3484
  %v3486 = vand.u32 %v3412, 4294901760
  %v3487 = vsub.f32 %v3412, %v3486
  %3488 = vmatmul.f32.gmra.mxu0 %v3487
  %v3489 = vpop.f32.mrf.mxu0
  %v3490 = vadd.f32 %v3466, %v3489
  %3491 = vdwg.mxu0
  %3492 = vmatpush.xpose.msra.mxu0 0.0
  %3493 = vmatpush.xpose.msra.mxu0 0.0
  %3494 = vmatpush.xpose.msra.mxu0 0.0
  %3495 = vmatpush.xpose.msra.mxu0 0.0
  %3496 = vmatpush.xpose.msra.mxu0 0.0
  %3497 = vmatpush.xpose.msra.mxu0 0.0
  %3498 = vmatpush.xpose.msra.mxu0 0.0
  %3499 = vmatpush.xpose.msra.mxu0 0.0
  %3500 = vmatpush.xpose.msra.mxu0 0.0
  %3501 = vmatpush.xpose.msra.mxu0 0.0
  %3502 = vmatpush.xpose.msra.mxu0 0.0
  %3503 = vmatpush.xpose.msra.mxu0 0.0
  %3504 = vmatpush.xpose.msra.mxu0 0.0
  %3505 = vmatpush.xpose.msra.mxu0 0.0
  %3506 = vmatpush.xpose.msra.mxu0 0.0
  %v3507 = vand.u32 %v3414, 4294901760
  %3508 = vmatpush.xpose.msra.mxu0 %v3507
  %v3509 = vand.u32 %v3412, 4294901760
  %v3510 = vsub.f32 %v3412, %v3509
  %v3511 = vand.u32 %v3510, 4294901760
  %3512 = vmatmul.f32.gmra.mxu0 %v3511
  %v3513 = vpop.f32.mrf.mxu0
  %v3514 = vadd.f32 %v3490, %v3513
  %3515 = vdwg.mxu0
  %3516 = vmatpush.xpose.msra.mxu0 0.0
  %3517 = vmatpush.xpose.msra.mxu0 0.0
  %3518 = vmatpush.xpose.msra.mxu0 0.0
  %3519 = vmatpush.xpose.msra.mxu0 0.0
  %3520 = vmatpush.xpose.msra.mxu0 0.0
  %3521 = vmatpush.xpose.msra.mxu0 0.0
  %3522 = vmatpush.xpose.msra.mxu0 0.0
  %3523 = vmatpush.xpose.msra.mxu0 0.0
  %3524 = vmatpush.xpose.msra.mxu0 0.0
  %3525 = vmatpush.xpose.msra.mxu0 0.0
  %3526 = vmatpush.xpose.msra.mxu0 0.0
  %3527 = vmatpush.xpose.msra.mxu0 0.0
  %3528 = vmatpush.xpose.msra.mxu0 0.0
  %3529 = vmatpush.xpose.msra.mxu0 0.0
  %3530 = vmatpush.xpose.msra.mxu0 0.0
  %v3531 = vand.u32 %v3414, 4294901760
  %v3532 = vsub.f32 %v3414, %v3531
  %v3533 = vand.u32 %v3532, 4294901760
  %3534 = vmatpush.xpose.msra.mxu0 %v3533
  %v3535 = vand.u32 %v3412, 4294901760
  %3536 = vmatmul.f32.gmra.mxu0 %v3535
  %v3537 = vpop.f32.mrf.mxu0
  %v3538 = vadd.f32 %v3514, %v3537
  %3539 = vdwg.mxu0
  %3540 = vmatpush.xpose.msra.mxu0 0.0
  %3541 = vmatpush.xpose.msra.mxu0 0.0
  %3542 = vmatpush.xpose.msra.mxu0 0.0
  %3543 = vmatpush.xpose.msra.mxu0 0.0
  %3544 = vmatpush.xpose.msra.mxu0 0.0
  %3545 = vmatpush.xpose.msra.mxu0 0.0
  %3546 = vmatpush.xpose.msra.mxu0 0.0
  %3547 = vmatpush.xpose.msra.mxu0 0.0
  %3548 = vmatpush.xpose.msra.mxu0 0.0
  %3549 = vmatpush.xpose.msra.mxu0 0.0
  %3550 = vmatpush.xpose.msra.mxu0 0.0
  %3551 = vmatpush.xpose.msra.mxu0 0.0
  %3552 = vmatpush.xpose.msra.mxu0 0.0
  %3553 = vmatpush.xpose.msra.mxu0 0.0
  %3554 = vmatpush.xpose.msra.mxu0 0.0
  %v3555 = vand.u32 %v3414, 4294901760
  %3556 = vmatpush.xpose.msra.mxu0 %v3555
  %v3557 = vand.u32 %v3412, 4294901760
  %3558 = vmatmul.f32.gmra.mxu0 %v3557
  %v3559 = vpop.f32.mrf.mxu0
  %v3560 = vadd.f32 %v3538, %v3559
  %3561 = vdwg.mxu0
  %3562 = vrot.lane.b32.xlu0 %v141, 104
  %v3563 = vpop.permute.xlu0 %3562
  %3564 = vrot.lane.b32.xlu0 %v141, 120
  %v3565 = vpop.permute.xlu0 %3564
  %v3566 = vsel %vm152, %v3563, 0
  %v3568 = vsel %vm152, %v3565, 0
  %3570 = vmatpush.xpose.msra.mxu0 0.0
  %3571 = vmatpush.xpose.msra.mxu0 0.0
  %3572 = vmatpush.xpose.msra.mxu0 0.0
  %3573 = vmatpush.xpose.msra.mxu0 0.0
  %3574 = vmatpush.xpose.msra.mxu0 0.0
  %3575 = vmatpush.xpose.msra.mxu0 0.0
  %3576 = vmatpush.xpose.msra.mxu0 0.0
  %3577 = vmatpush.xpose.msra.mxu0 0.0
  %3578 = vmatpush.xpose.msra.mxu0 0.0
  %3579 = vmatpush.xpose.msra.mxu0 0.0
  %3580 = vmatpush.xpose.msra.mxu0 0.0
  %3581 = vmatpush.xpose.msra.mxu0 0.0
  %3582 = vmatpush.xpose.msra.mxu0 0.0
  %3583 = vmatpush.xpose.msra.mxu0 0.0
  %3584 = vmatpush.xpose.msra.mxu0 0.0
  %v3585 = vand.u32 %v3568, 4294901760
  %3586 = vmatpush.xpose.msra.mxu0 %v3585
  %v3587 = vand.u32 %v3566, 4294901760
  %v3588 = vsub.f32 %v3566, %v3587
  %v3589 = vand.u32 %v3588, 4294901760
  %v3590 = vsub.f32 %v3588, %v3589
  %v3591 = vand.u32 %v3590, 4294901760
  %3592 = vmatmul.f32.gmra.mxu0 %v3591
  %v3593 = vpop.f32.mrf.mxu0
  %v3594 = vadd.f32 0.0, %v3593
  %3595 = vdwg.mxu0
  %3596 = vmatpush.xpose.msra.mxu0 0.0
  %3597 = vmatpush.xpose.msra.mxu0 0.0
  %3598 = vmatpush.xpose.msra.mxu0 0.0
  %3599 = vmatpush.xpose.msra.mxu0 0.0
  %3600 = vmatpush.xpose.msra.mxu0 0.0
  %3601 = vmatpush.xpose.msra.mxu0 0.0
  %3602 = vmatpush.xpose.msra.mxu0 0.0
  %3603 = vmatpush.xpose.msra.mxu0 0.0
  %3604 = vmatpush.xpose.msra.mxu0 0.0
  %3605 = vmatpush.xpose.msra.mxu0 0.0
  %3606 = vmatpush.xpose.msra.mxu0 0.0
  %3607 = vmatpush.xpose.msra.mxu0 0.0
  %3608 = vmatpush.xpose.msra.mxu0 0.0
  %3609 = vmatpush.xpose.msra.mxu0 0.0
  %3610 = vmatpush.xpose.msra.mxu0 0.0
  %v3611 = vand.u32 %v3568, 4294901760
  %v3612 = vsub.f32 %v3568, %v3611
  %v3613 = vand.u32 %v3612, 4294901760
  %v3614 = vsub.f32 %v3612, %v3613
  %v3615 = vand.u32 %v3614, 4294901760
  %3616 = vmatpush.xpose.msra.mxu0 %v3615
  %v3617 = vand.u32 %v3566, 4294901760
  %3618 = vmatmul.f32.gmra.mxu0 %v3617
  %v3619 = vpop.f32.mrf.mxu0
  %v3620 = vadd.f32 %v3594, %v3619
  %3621 = vdwg.mxu0
  %3622 = vmatpush.xpose.msra.mxu0 0.0
  %3623 = vmatpush.xpose.msra.mxu0 0.0
  %3624 = vmatpush.xpose.msra.mxu0 0.0
  %3625 = vmatpush.xpose.msra.mxu0 0.0
  %3626 = vmatpush.xpose.msra.mxu0 0.0
  %3627 = vmatpush.xpose.msra.mxu0 0.0
  %3628 = vmatpush.xpose.msra.mxu0 0.0
  %3629 = vmatpush.xpose.msra.mxu0 0.0
  %3630 = vmatpush.xpose.msra.mxu0 0.0
  %3631 = vmatpush.xpose.msra.mxu0 0.0
  %3632 = vmatpush.xpose.msra.mxu0 0.0
  %3633 = vmatpush.xpose.msra.mxu0 0.0
  %3634 = vmatpush.xpose.msra.mxu0 0.0
  %3635 = vmatpush.xpose.msra.mxu0 0.0
  %3636 = vmatpush.xpose.msra.mxu0 0.0
  %v3637 = vand.u32 %v3568, 4294901760
  %v3638 = vsub.f32 %v3568, %v3637
  %3639 = vmatpush.xpose.msra.mxu0 %v3638
  %v3640 = vand.u32 %v3566, 4294901760
  %v3641 = vsub.f32 %v3566, %v3640
  %3642 = vmatmul.f32.gmra.mxu0 %v3641
  %v3643 = vpop.f32.mrf.mxu0
  %v3644 = vadd.f32 %v3620, %v3643
  %3645 = vdwg.mxu0
  %3646 = vmatpush.xpose.msra.mxu0 0.0
  %3647 = vmatpush.xpose.msra.mxu0 0.0
  %3648 = vmatpush.xpose.msra.mxu0 0.0
  %3649 = vmatpush.xpose.msra.mxu0 0.0
  %3650 = vmatpush.xpose.msra.mxu0 0.0
  %3651 = vmatpush.xpose.msra.mxu0 0.0
  %3652 = vmatpush.xpose.msra.mxu0 0.0
  %3653 = vmatpush.xpose.msra.mxu0 0.0
  %3654 = vmatpush.xpose.msra.mxu0 0.0
  %3655 = vmatpush.xpose.msra.mxu0 0.0
  %3656 = vmatpush.xpose.msra.mxu0 0.0
  %3657 = vmatpush.xpose.msra.mxu0 0.0
  %3658 = vmatpush.xpose.msra.mxu0 0.0
  %3659 = vmatpush.xpose.msra.mxu0 0.0
  %3660 = vmatpush.xpose.msra.mxu0 0.0
  %v3661 = vand.u32 %v3568, 4294901760
  %3662 = vmatpush.xpose.msra.mxu0 %v3661
  %v3663 = vand.u32 %v3566, 4294901760
  %v3664 = vsub.f32 %v3566, %v3663
  %v3665 = vand.u32 %v3664, 4294901760
  %3666 = vmatmul.f32.gmra.mxu0 %v3665
  %v3667 = vpop.f32.mrf.mxu0
  %v3668 = vadd.f32 %v3644, %v3667
  %3669 = vdwg.mxu0
  %3670 = vmatpush.xpose.msra.mxu0 0.0
  %3671 = vmatpush.xpose.msra.mxu0 0.0
  %3672 = vmatpush.xpose.msra.mxu0 0.0
  %3673 = vmatpush.xpose.msra.mxu0 0.0
  %3674 = vmatpush.xpose.msra.mxu0 0.0
  %3675 = vmatpush.xpose.msra.mxu0 0.0
  %3676 = vmatpush.xpose.msra.mxu0 0.0
  %3677 = vmatpush.xpose.msra.mxu0 0.0
  %3678 = vmatpush.xpose.msra.mxu0 0.0
  %3679 = vmatpush.xpose.msra.mxu0 0.0
  %3680 = vmatpush.xpose.msra.mxu0 0.0
  %3681 = vmatpush.xpose.msra.mxu0 0.0
  %3682 = vmatpush.xpose.msra.mxu0 0.0
  %3683 = vmatpush.xpose.msra.mxu0 0.0
  %3684 = vmatpush.xpose.msra.mxu0 0.0
  %v3685 = vand.u32 %v3568, 4294901760
  %v3686 = vsub.f32 %v3568, %v3685
  %v3687 = vand.u32 %v3686, 4294901760
  %3688 = vmatpush.xpose.msra.mxu0 %v3687
  %v3689 = vand.u32 %v3566, 4294901760
  %3690 = vmatmul.f32.gmra.mxu0 %v3689
  %v3691 = vpop.f32.mrf.mxu0
  %v3692 = vadd.f32 %v3668, %v3691
  %3693 = vdwg.mxu0
  %3694 = vmatpush.xpose.msra.mxu0 0.0
  %3695 = vmatpush.xpose.msra.mxu0 0.0
  %3696 = vmatpush.xpose.msra.mxu0 0.0
  %3697 = vmatpush.xpose.msra.mxu0 0.0
  %3698 = vmatpush.xpose.msra.mxu0 0.0
  %3699 = vmatpush.xpose.msra.mxu0 0.0
  %3700 = vmatpush.xpose.msra.mxu0 0.0
  %3701 = vmatpush.xpose.msra.mxu0 0.0
  %3702 = vmatpush.xpose.msra.mxu0 0.0
  %3703 = vmatpush.xpose.msra.mxu0 0.0
  %3704 = vmatpush.xpose.msra.mxu0 0.0
  %3705 = vmatpush.xpose.msra.mxu0 0.0
  %3706 = vmatpush.xpose.msra.mxu0 0.0
  %3707 = vmatpush.xpose.msra.mxu0 0.0
  %3708 = vmatpush.xpose.msra.mxu0 0.0
  %v3709 = vand.u32 %v3568, 4294901760
  %3710 = vmatpush.xpose.msra.mxu0 %v3709
  %v3711 = vand.u32 %v3566, 4294901760
  %3712 = vmatmul.f32.gmra.mxu0 %v3711
  %v3713 = vpop.f32.mrf.mxu0
  %v3714 = vadd.f32 %v3692, %v3713
  %3715 = vdwg.mxu0
  %3716 = vrot.lane.b32.xlu0 %v142, 104
  %v3717 = vpop.permute.xlu0 %3716
  %3718 = vrot.lane.b32.xlu0 %v142, 120
  %v3719 = vpop.permute.xlu0 %3718
  %v3720 = vsel %vm152, %v3717, 0
  %v3722 = vsel %vm152, %v3719, 0
  %3724 = vmatpush.xpose.msra.mxu0 0.0
  %3725 = vmatpush.xpose.msra.mxu0 0.0
  %3726 = vmatpush.xpose.msra.mxu0 0.0
  %3727 = vmatpush.xpose.msra.mxu0 0.0
  %3728 = vmatpush.xpose.msra.mxu0 0.0
  %3729 = vmatpush.xpose.msra.mxu0 0.0
  %3730 = vmatpush.xpose.msra.mxu0 0.0
  %3731 = vmatpush.xpose.msra.mxu0 0.0
  %3732 = vmatpush.xpose.msra.mxu0 0.0
  %3733 = vmatpush.xpose.msra.mxu0 0.0
  %3734 = vmatpush.xpose.msra.mxu0 0.0
  %3735 = vmatpush.xpose.msra.mxu0 0.0
  %3736 = vmatpush.xpose.msra.mxu0 0.0
  %3737 = vmatpush.xpose.msra.mxu0 0.0
  %3738 = vmatpush.xpose.msra.mxu0 0.0
  %v3739 = vand.u32 %v3722, 4294901760
  %3740 = vmatpush.xpose.msra.mxu0 %v3739
  %v3741 = vand.u32 %v3720, 4294901760
  %v3742 = vsub.f32 %v3720, %v3741
  %v3743 = vand.u32 %v3742, 4294901760
  %v3744 = vsub.f32 %v3742, %v3743
  %v3745 = vand.u32 %v3744, 4294901760
  %3746 = vmatmul.f32.gmra.mxu0 %v3745
  %v3747 = vpop.f32.mrf.mxu0
  %v3748 = vadd.f32 0.0, %v3747
  %3749 = vdwg.mxu0
  %3750 = vmatpush.xpose.msra.mxu0 0.0
  %3751 = vmatpush.xpose.msra.mxu0 0.0
  %3752 = vmatpush.xpose.msra.mxu0 0.0
  %3753 = vmatpush.xpose.msra.mxu0 0.0
  %3754 = vmatpush.xpose.msra.mxu0 0.0
  %3755 = vmatpush.xpose.msra.mxu0 0.0
  %3756 = vmatpush.xpose.msra.mxu0 0.0
  %3757 = vmatpush.xpose.msra.mxu0 0.0
  %3758 = vmatpush.xpose.msra.mxu0 0.0
  %3759 = vmatpush.xpose.msra.mxu0 0.0
  %3760 = vmatpush.xpose.msra.mxu0 0.0
  %3761 = vmatpush.xpose.msra.mxu0 0.0
  %3762 = vmatpush.xpose.msra.mxu0 0.0
  %3763 = vmatpush.xpose.msra.mxu0 0.0
  %3764 = vmatpush.xpose.msra.mxu0 0.0
  %v3765 = vand.u32 %v3722, 4294901760
  %v3766 = vsub.f32 %v3722, %v3765
  %v3767 = vand.u32 %v3766, 4294901760
  %v3768 = vsub.f32 %v3766, %v3767
  %v3769 = vand.u32 %v3768, 4294901760
  %3770 = vmatpush.xpose.msra.mxu0 %v3769
  %v3771 = vand.u32 %v3720, 4294901760
  %3772 = vmatmul.f32.gmra.mxu0 %v3771
  %v3773 = vpop.f32.mrf.mxu0
  %v3774 = vadd.f32 %v3748, %v3773
  %3775 = vdwg.mxu0
  %3776 = vmatpush.xpose.msra.mxu0 0.0
  %3777 = vmatpush.xpose.msra.mxu0 0.0
  %3778 = vmatpush.xpose.msra.mxu0 0.0
  %3779 = vmatpush.xpose.msra.mxu0 0.0
  %3780 = vmatpush.xpose.msra.mxu0 0.0
  %3781 = vmatpush.xpose.msra.mxu0 0.0
  %3782 = vmatpush.xpose.msra.mxu0 0.0
  %3783 = vmatpush.xpose.msra.mxu0 0.0
  %3784 = vmatpush.xpose.msra.mxu0 0.0
  %3785 = vmatpush.xpose.msra.mxu0 0.0
  %3786 = vmatpush.xpose.msra.mxu0 0.0
  %3787 = vmatpush.xpose.msra.mxu0 0.0
  %3788 = vmatpush.xpose.msra.mxu0 0.0
  %3789 = vmatpush.xpose.msra.mxu0 0.0
  %3790 = vmatpush.xpose.msra.mxu0 0.0
  %v3791 = vand.u32 %v3722, 4294901760
  %v3792 = vsub.f32 %v3722, %v3791
  %3793 = vmatpush.xpose.msra.mxu0 %v3792
  %v3794 = vand.u32 %v3720, 4294901760
  %v3795 = vsub.f32 %v3720, %v3794
  %3796 = vmatmul.f32.gmra.mxu0 %v3795
  %v3797 = vpop.f32.mrf.mxu0
  %v3798 = vadd.f32 %v3774, %v3797
  %3799 = vdwg.mxu0
  %3800 = vmatpush.xpose.msra.mxu0 0.0
  %3801 = vmatpush.xpose.msra.mxu0 0.0
  %3802 = vmatpush.xpose.msra.mxu0 0.0
  %3803 = vmatpush.xpose.msra.mxu0 0.0
  %3804 = vmatpush.xpose.msra.mxu0 0.0
  %3805 = vmatpush.xpose.msra.mxu0 0.0
  %3806 = vmatpush.xpose.msra.mxu0 0.0
  %3807 = vmatpush.xpose.msra.mxu0 0.0
  %3808 = vmatpush.xpose.msra.mxu0 0.0
  %3809 = vmatpush.xpose.msra.mxu0 0.0
  %3810 = vmatpush.xpose.msra.mxu0 0.0
  %3811 = vmatpush.xpose.msra.mxu0 0.0
  %3812 = vmatpush.xpose.msra.mxu0 0.0
  %3813 = vmatpush.xpose.msra.mxu0 0.0
  %3814 = vmatpush.xpose.msra.mxu0 0.0
  %v3815 = vand.u32 %v3722, 4294901760
  %3816 = vmatpush.xpose.msra.mxu0 %v3815
  %v3817 = vand.u32 %v3720, 4294901760
  %v3818 = vsub.f32 %v3720, %v3817
  %v3819 = vand.u32 %v3818, 4294901760
  %3820 = vmatmul.f32.gmra.mxu0 %v3819
  %v3821 = vpop.f32.mrf.mxu0
  %v3822 = vadd.f32 %v3798, %v3821
  %3823 = vdwg.mxu0
  %3824 = vmatpush.xpose.msra.mxu0 0.0
  %3825 = vmatpush.xpose.msra.mxu0 0.0
  %3826 = vmatpush.xpose.msra.mxu0 0.0
  %3827 = vmatpush.xpose.msra.mxu0 0.0
  %3828 = vmatpush.xpose.msra.mxu0 0.0
  %3829 = vmatpush.xpose.msra.mxu0 0.0
  %3830 = vmatpush.xpose.msra.mxu0 0.0
  %3831 = vmatpush.xpose.msra.mxu0 0.0
  %3832 = vmatpush.xpose.msra.mxu0 0.0
  %3833 = vmatpush.xpose.msra.mxu0 0.0
  %3834 = vmatpush.xpose.msra.mxu0 0.0
  %3835 = vmatpush.xpose.msra.mxu0 0.0
  %3836 = vmatpush.xpose.msra.mxu0 0.0
  %3837 = vmatpush.xpose.msra.mxu0 0.0
  %3838 = vmatpush.xpose.msra.mxu0 0.0
  %v3839 = vand.u32 %v3722, 4294901760
  %v3840 = vsub.f32 %v3722, %v3839
  %v3841 = vand.u32 %v3840, 4294901760
  %3842 = vmatpush.xpose.msra.mxu0 %v3841
  %v3843 = vand.u32 %v3720, 4294901760
  %3844 = vmatmul.f32.gmra.mxu0 %v3843
  %v3845 = vpop.f32.mrf.mxu0
  %v3846 = vadd.f32 %v3822, %v3845
  %3847 = vdwg.mxu0
  %3848 = vmatpush.xpose.msra.mxu0 0.0
  %3849 = vmatpush.xpose.msra.mxu0 0.0
  %3850 = vmatpush.xpose.msra.mxu0 0.0
  %3851 = vmatpush.xpose.msra.mxu0 0.0
  %3852 = vmatpush.xpose.msra.mxu0 0.0
  %3853 = vmatpush.xpose.msra.mxu0 0.0
  %3854 = vmatpush.xpose.msra.mxu0 0.0
  %3855 = vmatpush.xpose.msra.mxu0 0.0
  %3856 = vmatpush.xpose.msra.mxu0 0.0
  %3857 = vmatpush.xpose.msra.mxu0 0.0
  %3858 = vmatpush.xpose.msra.mxu0 0.0
  %3859 = vmatpush.xpose.msra.mxu0 0.0
  %3860 = vmatpush.xpose.msra.mxu0 0.0
  %3861 = vmatpush.xpose.msra.mxu0 0.0
  %3862 = vmatpush.xpose.msra.mxu0 0.0
  %v3863 = vand.u32 %v3722, 4294901760
  %3864 = vmatpush.xpose.msra.mxu0 %v3863
  %v3865 = vand.u32 %v3720, 4294901760
  %3866 = vmatmul.f32.gmra.mxu0 %v3865
  %v3867 = vpop.f32.mrf.mxu0
  %v3868 = vadd.f32 %v3846, %v3867
  %3869 = vdwg.mxu0
  %3870 = vrot.lane.b32.xlu0 %v143, 104
  %v3871 = vpop.permute.xlu0 %3870
  %3872 = vrot.lane.b32.xlu0 %v143, 120
  %v3873 = vpop.permute.xlu0 %3872
  %v3874 = vsel %vm152, %v3871, 0
  %v3876 = vsel %vm152, %v3873, 0
  %3878 = vmatpush.xpose.msra.mxu0 0.0
  %3879 = vmatpush.xpose.msra.mxu0 0.0
  %3880 = vmatpush.xpose.msra.mxu0 0.0
  %3881 = vmatpush.xpose.msra.mxu0 0.0
  %3882 = vmatpush.xpose.msra.mxu0 0.0
  %3883 = vmatpush.xpose.msra.mxu0 0.0
  %3884 = vmatpush.xpose.msra.mxu0 0.0
  %3885 = vmatpush.xpose.msra.mxu0 0.0
  %3886 = vmatpush.xpose.msra.mxu0 0.0
  %3887 = vmatpush.xpose.msra.mxu0 0.0
  %3888 = vmatpush.xpose.msra.mxu0 0.0
  %3889 = vmatpush.xpose.msra.mxu0 0.0
  %3890 = vmatpush.xpose.msra.mxu0 0.0
  %3891 = vmatpush.xpose.msra.mxu0 0.0
  %3892 = vmatpush.xpose.msra.mxu0 0.0
  %v3893 = vand.u32 %v3876, 4294901760
  %3894 = vmatpush.xpose.msra.mxu0 %v3893
  %v3895 = vand.u32 %v3874, 4294901760
  %v3896 = vsub.f32 %v3874, %v3895
  %v3897 = vand.u32 %v3896, 4294901760
  %v3898 = vsub.f32 %v3896, %v3897
  %v3899 = vand.u32 %v3898, 4294901760
  %3900 = vmatmul.f32.gmra.mxu0 %v3899
  %v3901 = vpop.f32.mrf.mxu0
  %v3902 = vadd.f32 0.0, %v3901
  %3903 = vdwg.mxu0
  %3904 = vmatpush.xpose.msra.mxu0 0.0
  %3905 = vmatpush.xpose.msra.mxu0 0.0
  %3906 = vmatpush.xpose.msra.mxu0 0.0
  %3907 = vmatpush.xpose.msra.mxu0 0.0
  %3908 = vmatpush.xpose.msra.mxu0 0.0
  %3909 = vmatpush.xpose.msra.mxu0 0.0
  %3910 = vmatpush.xpose.msra.mxu0 0.0
  %3911 = vmatpush.xpose.msra.mxu0 0.0
  %3912 = vmatpush.xpose.msra.mxu0 0.0
  %3913 = vmatpush.xpose.msra.mxu0 0.0
  %3914 = vmatpush.xpose.msra.mxu0 0.0
  %3915 = vmatpush.xpose.msra.mxu0 0.0
  %3916 = vmatpush.xpose.msra.mxu0 0.0
  %3917 = vmatpush.xpose.msra.mxu0 0.0
  %3918 = vmatpush.xpose.msra.mxu0 0.0
  %v3919 = vand.u32 %v3876, 4294901760
  %v3920 = vsub.f32 %v3876, %v3919
  %v3921 = vand.u32 %v3920, 4294901760
  %v3922 = vsub.f32 %v3920, %v3921
  %v3923 = vand.u32 %v3922, 4294901760
  %3924 = vmatpush.xpose.msra.mxu0 %v3923
  %v3925 = vand.u32 %v3874, 4294901760
  %3926 = vmatmul.f32.gmra.mxu0 %v3925
  %v3927 = vpop.f32.mrf.mxu0
  %v3928 = vadd.f32 %v3902, %v3927
  %3929 = vdwg.mxu0
  %3930 = vmatpush.xpose.msra.mxu0 0.0
  %3931 = vmatpush.xpose.msra.mxu0 0.0
  %3932 = vmatpush.xpose.msra.mxu0 0.0
  %3933 = vmatpush.xpose.msra.mxu0 0.0
  %3934 = vmatpush.xpose.msra.mxu0 0.0
  %3935 = vmatpush.xpose.msra.mxu0 0.0
  %3936 = vmatpush.xpose.msra.mxu0 0.0
  %3937 = vmatpush.xpose.msra.mxu0 0.0
  %3938 = vmatpush.xpose.msra.mxu0 0.0
  %3939 = vmatpush.xpose.msra.mxu0 0.0
  %3940 = vmatpush.xpose.msra.mxu0 0.0
  %3941 = vmatpush.xpose.msra.mxu0 0.0
  %3942 = vmatpush.xpose.msra.mxu0 0.0
  %3943 = vmatpush.xpose.msra.mxu0 0.0
  %3944 = vmatpush.xpose.msra.mxu0 0.0
  %v3945 = vand.u32 %v3876, 4294901760
  %v3946 = vsub.f32 %v3876, %v3945
  %3947 = vmatpush.xpose.msra.mxu0 %v3946
  %v3948 = vand.u32 %v3874, 4294901760
  %v3949 = vsub.f32 %v3874, %v3948
  %3950 = vmatmul.f32.gmra.mxu0 %v3949
  %v3951 = vpop.f32.mrf.mxu0
  %v3952 = vadd.f32 %v3928, %v3951
  %3953 = vdwg.mxu0
  %3954 = vmatpush.xpose.msra.mxu0 0.0
  %3955 = vmatpush.xpose.msra.mxu0 0.0
  %3956 = vmatpush.xpose.msra.mxu0 0.0
  %3957 = vmatpush.xpose.msra.mxu0 0.0
  %3958 = vmatpush.xpose.msra.mxu0 0.0
  %3959 = vmatpush.xpose.msra.mxu0 0.0
  %3960 = vmatpush.xpose.msra.mxu0 0.0
  %3961 = vmatpush.xpose.msra.mxu0 0.0
  %3962 = vmatpush.xpose.msra.mxu0 0.0
  %3963 = vmatpush.xpose.msra.mxu0 0.0
  %3964 = vmatpush.xpose.msra.mxu0 0.0
  %3965 = vmatpush.xpose.msra.mxu0 0.0
  %3966 = vmatpush.xpose.msra.mxu0 0.0
  %3967 = vmatpush.xpose.msra.mxu0 0.0
  %3968 = vmatpush.xpose.msra.mxu0 0.0
  %v3969 = vand.u32 %v3876, 4294901760
  %3970 = vmatpush.xpose.msra.mxu0 %v3969
  %v3971 = vand.u32 %v3874, 4294901760
  %v3972 = vsub.f32 %v3874, %v3971
  %v3973 = vand.u32 %v3972, 4294901760
  %3974 = vmatmul.f32.gmra.mxu0 %v3973
  %v3975 = vpop.f32.mrf.mxu0
  %v3976 = vadd.f32 %v3952, %v3975
  %3977 = vdwg.mxu0
  %3978 = vmatpush.xpose.msra.mxu0 0.0
  %3979 = vmatpush.xpose.msra.mxu0 0.0
  %3980 = vmatpush.xpose.msra.mxu0 0.0
  %3981 = vmatpush.xpose.msra.mxu0 0.0
  %3982 = vmatpush.xpose.msra.mxu0 0.0
  %3983 = vmatpush.xpose.msra.mxu0 0.0
  %3984 = vmatpush.xpose.msra.mxu0 0.0
  %3985 = vmatpush.xpose.msra.mxu0 0.0
  %3986 = vmatpush.xpose.msra.mxu0 0.0
  %3987 = vmatpush.xpose.msra.mxu0 0.0
  %3988 = vmatpush.xpose.msra.mxu0 0.0
  %3989 = vmatpush.xpose.msra.mxu0 0.0
  %3990 = vmatpush.xpose.msra.mxu0 0.0
  %3991 = vmatpush.xpose.msra.mxu0 0.0
  %3992 = vmatpush.xpose.msra.mxu0 0.0
  %v3993 = vand.u32 %v3876, 4294901760
  %v3994 = vsub.f32 %v3876, %v3993
  %v3995 = vand.u32 %v3994, 4294901760
  %3996 = vmatpush.xpose.msra.mxu0 %v3995
  %v3997 = vand.u32 %v3874, 4294901760
  %3998 = vmatmul.f32.gmra.mxu0 %v3997
  %v3999 = vpop.f32.mrf.mxu0
  %v4000 = vadd.f32 %v3976, %v3999
  %4001 = vdwg.mxu0
  %4002 = vmatpush.xpose.msra.mxu0 0.0
  %4003 = vmatpush.xpose.msra.mxu0 0.0
  %4004 = vmatpush.xpose.msra.mxu0 0.0
  %4005 = vmatpush.xpose.msra.mxu0 0.0
  %4006 = vmatpush.xpose.msra.mxu0 0.0
  %4007 = vmatpush.xpose.msra.mxu0 0.0
  %4008 = vmatpush.xpose.msra.mxu0 0.0
  %4009 = vmatpush.xpose.msra.mxu0 0.0
  %4010 = vmatpush.xpose.msra.mxu0 0.0
  %4011 = vmatpush.xpose.msra.mxu0 0.0
  %4012 = vmatpush.xpose.msra.mxu0 0.0
  %4013 = vmatpush.xpose.msra.mxu0 0.0
  %4014 = vmatpush.xpose.msra.mxu0 0.0
  %4015 = vmatpush.xpose.msra.mxu0 0.0
  %4016 = vmatpush.xpose.msra.mxu0 0.0
  %v4017 = vand.u32 %v3876, 4294901760
  %4018 = vmatpush.xpose.msra.mxu0 %v4017
  %v4019 = vand.u32 %v3874, 4294901760
  %4020 = vmatmul.f32.gmra.mxu0 %v4019
  %v4021 = vpop.f32.mrf.mxu0
  %v4022 = vadd.f32 %v4000, %v4021
  %4023 = vdwg.mxu0
  %v4024 = vsel %vm1375, %v2944, -inf
  %v4025 = vsel %vm1375, %v3098, -inf
  %v4026 = vsel %vm1375, %v3252, -inf
  %v4027 = vsel %vm1375, %v3406, -inf
  %v4028 = vsel %vm1375, %v3560, -inf
  %v4029 = vsel %vm1375, %v3714, -inf
  %v4030 = vsel %vm1375, %v3868, -inf
  %v4031 = vsel %vm1375, %v4022, -inf
  %v4032 = vsel %vm152, %v4024, -inf
  %4033 = vmax.xlane.f32.xlu0 %v4032
  %v4034 = vpop.xlane.xlu0 %4033
  %v4035 = vsel %vm152, %v4025, -inf
  %4036 = vmax.xlane.f32.xlu0 %v4035
  %v4037 = vpop.xlane.xlu0 %4036
  %v4038 = vsel %vm152, %v4026, -inf
  %4039 = vmax.xlane.f32.xlu0 %v4038
  %v4040 = vpop.xlane.xlu0 %4039
  %v4041 = vsel %vm152, %v4027, -inf
  %4042 = vmax.xlane.f32.xlu0 %v4041
  %v4043 = vpop.xlane.xlu0 %4042
  %v4044 = vsel %vm152, %v4028, -inf
  %4045 = vmax.xlane.f32.xlu0 %v4044
  %v4046 = vpop.xlane.xlu0 %4045
  %v4047 = vsel %vm152, %v4029, -inf
  %4048 = vmax.xlane.f32.xlu0 %v4047
  %v4049 = vpop.xlane.xlu0 %4048
  %v4050 = vsel %vm152, %v4030, -inf
  %4051 = vmax.xlane.f32.xlu0 %v4050
  %v4052 = vpop.xlane.xlu0 %4051
  %v4053 = vsel %vm152, %v4031, -inf
  %4054 = vmax.xlane.f32.xlu0 %v4053
  %v4055 = vpop.xlane.xlu0 %4054
  %v4056 = vsub.f32 %v4024, %v4034
  %v4057 = vsub.f32 %v4025, %v4037
  %v4058 = vsub.f32 %v4026, %v4040
  %v4059 = vsub.f32 %v4027, %v4043
  %v4060 = vsub.f32 %v4028, %v4046
  %v4061 = vsub.f32 %v4029, %v4049
  %v4062 = vsub.f32 %v4030, %v4052
  %v4063 = vsub.f32 %v4031, %v4055
  %v4064 = vmul.f32 %v4056, 1.442695
  %v4065 = vpow.pop %v4064
  %v4066 = vmul.f32 %v4057, 1.442695
  %v4067 = vpow.pop %v4066
  %v4068 = vmul.f32 %v4058, 1.442695
  %v4069 = vpow.pop %v4068
  %v4070 = vmul.f32 %v4059, 1.442695
  %v4071 = vpow.pop %v4070
  %v4072 = vmul.f32 %v4060, 1.442695
  %v4073 = vpow.pop %v4072
  %v4074 = vmul.f32 %v4061, 1.442695
  %v4075 = vpow.pop %v4074
  %v4076 = vmul.f32 %v4062, 1.442695
  %v4077 = vpow.pop %v4076
  %v4078 = vmul.f32 %v4063, 1.442695
  %v4079 = vpow.pop %v4078
  %v4080 = vsel %vm152, %v4065, 0.0
  %4081 = vadd.xlane.f32.xlu0 %v4080
  %v4082 = vpop.xlane.xlu0 %4081
  %v4083 = vsel %vm152, %v4067, 0.0
  %4084 = vadd.xlane.f32.xlu0 %v4083
  %v4085 = vpop.xlane.xlu0 %4084
  %v4086 = vsel %vm152, %v4069, 0.0
  %4087 = vadd.xlane.f32.xlu0 %v4086
  %v4088 = vpop.xlane.xlu0 %4087
  %v4089 = vsel %vm152, %v4071, 0.0
  %4090 = vadd.xlane.f32.xlu0 %v4089
  %v4091 = vpop.xlane.xlu0 %4090
  %v4092 = vsel %vm152, %v4073, 0.0
  %4093 = vadd.xlane.f32.xlu0 %v4092
  %v4094 = vpop.xlane.xlu0 %4093
  %v4095 = vsel %vm152, %v4075, 0.0
  %4096 = vadd.xlane.f32.xlu0 %v4095
  %v4097 = vpop.xlane.xlu0 %4096
  %v4098 = vsel %vm152, %v4077, 0.0
  %4099 = vadd.xlane.f32.xlu0 %v4098
  %v4100 = vpop.xlane.xlu0 %4099
  %v4101 = vsel %vm152, %v4079, 0.0
  %4102 = vadd.xlane.f32.xlu0 %v4101
  %v4103 = vpop.xlane.xlu0 %4102
  %v4104 = vrcp.pop %v4082
  %v4105 = vmul.f32 %v4082, %v4104
  %v4106 = vsub.f32 1.0, %v4105
  %v4107 = vmul.f32 %v4104, %v4106
  %v4108 = vadd.f32 %v4104, %v4107
  %vm4109 = vweird.f32 %v4082
  %vm4110 = vweird.f32 %v4104
  %vm4111 = vmor %vm4109, %vm4110
  %v4112 = vsel %vm4111, %v4104, %v4108
  %v4113 = vand.u32 2147483647, %v4082
  %vm4114 = vcmp.eq.f32.partialorder %v4113, 8.507059e+37
  %v4115 = vand.u32 %v4082, 2147483648
  %v4116 = vor.u32 1.1754944e-38, %v4115
  %v4117 = vsel %vm4114, %v4116, %v4112
  %v4118 = vmul.f32 %v4065, %v4117
  %v4119 = vrcp.pop %v4085
  %v4120 = vmul.f32 %v4085, %v4119
  %v4121 = vsub.f32 1.0, %v4120
  %v4122 = vmul.f32 %v4119, %v4121
  %v4123 = vadd.f32 %v4119, %v4122
  %vm4124 = vweird.f32 %v4085
  %vm4125 = vweird.f32 %v4119
  %vm4126 = vmor %vm4124, %vm4125
  %v4127 = vsel %vm4126, %v4119, %v4123
  %v4128 = vand.u32 2147483647, %v4085
  %vm4129 = vcmp.eq.f32.partialorder %v4128, 8.507059e+37
  %v4130 = vand.u32 %v4085, 2147483648
  %v4131 = vor.u32 1.1754944e-38, %v4130
  %v4132 = vsel %vm4129, %v4131, %v4127
  %v4133 = vmul.f32 %v4067, %v4132
  %v4134 = vrcp.pop %v4088
  %v4135 = vmul.f32 %v4088, %v4134
  %v4136 = vsub.f32 1.0, %v4135
  %v4137 = vmul.f32 %v4134, %v4136
  %v4138 = vadd.f32 %v4134, %v4137
  %vm4139 = vweird.f32 %v4088
  %vm4140 = vweird.f32 %v4134
  %vm4141 = vmor %vm4139, %vm4140
  %v4142 = vsel %vm4141, %v4134, %v4138
  %v4143 = vand.u32 2147483647, %v4088
  %vm4144 = vcmp.eq.f32.partialorder %v4143, 8.507059e+37
  %v4145 = vand.u32 %v4088, 2147483648
  %v4146 = vor.u32 1.1754944e-38, %v4145
  %v4147 = vsel %vm4144, %v4146, %v4142
  %v4148 = vmul.f32 %v4069, %v4147
  %v4149 = vrcp.pop %v4091
  %v4150 = vmul.f32 %v4091, %v4149
  %v4151 = vsub.f32 1.0, %v4150
  %v4152 = vmul.f32 %v4149, %v4151
  %v4153 = vadd.f32 %v4149, %v4152
  %vm4154 = vweird.f32 %v4091
  %vm4155 = vweird.f32 %v4149
  %vm4156 = vmor %vm4154, %vm4155
  %v4157 = vsel %vm4156, %v4149, %v4153
  %v4158 = vand.u32 2147483647, %v4091
  %vm4159 = vcmp.eq.f32.partialorder %v4158, 8.507059e+37
  %v4160 = vand.u32 %v4091, 2147483648
  %v4161 = vor.u32 1.1754944e-38, %v4160
  %v4162 = vsel %vm4159, %v4161, %v4157
  %v4163 = vmul.f32 %v4071, %v4162
  %v4164 = vrcp.pop %v4094
  %v4165 = vmul.f32 %v4094, %v4164
  %v4166 = vsub.f32 1.0, %v4165
  %v4167 = vmul.f32 %v4164, %v4166
  %v4168 = vadd.f32 %v4164, %v4167
  %vm4169 = vweird.f32 %v4094
  %vm4170 = vweird.f32 %v4164
  %vm4171 = vmor %vm4169, %vm4170
  %v4172 = vsel %vm4171, %v4164, %v4168
  %v4173 = vand.u32 2147483647, %v4094
  %vm4174 = vcmp.eq.f32.partialorder %v4173, 8.507059e+37
  %v4175 = vand.u32 %v4094, 2147483648
  %v4176 = vor.u32 1.1754944e-38, %v4175
  %v4177 = vsel %vm4174, %v4176, %v4172
  %v4178 = vmul.f32 %v4073, %v4177
  %v4179 = vrcp.pop %v4097
  %v4180 = vmul.f32 %v4097, %v4179
  %v4181 = vsub.f32 1.0, %v4180
  %v4182 = vmul.f32 %v4179, %v4181
  %v4183 = vadd.f32 %v4179, %v4182
  %vm4184 = vweird.f32 %v4097
  %vm4185 = vweird.f32 %v4179
  %vm4186 = vmor %vm4184, %vm4185
  %v4187 = vsel %vm4186, %v4179, %v4183
  %v4188 = vand.u32 2147483647, %v4097
  %vm4189 = vcmp.eq.f32.partialorder %v4188, 8.507059e+37
  %v4190 = vand.u32 %v4097, 2147483648
  %v4191 = vor.u32 1.1754944e-38, %v4190
  %v4192 = vsel %vm4189, %v4191, %v4187
  %v4193 = vmul.f32 %v4075, %v4192
  %v4194 = vrcp.pop %v4100
  %v4195 = vmul.f32 %v4100, %v4194
  %v4196 = vsub.f32 1.0, %v4195
  %v4197 = vmul.f32 %v4194, %v4196
  %v4198 = vadd.f32 %v4194, %v4197
  %vm4199 = vweird.f32 %v4100
  %vm4200 = vweird.f32 %v4194
  %vm4201 = vmor %vm4199, %vm4200
  %v4202 = vsel %vm4201, %v4194, %v4198
  %v4203 = vand.u32 2147483647, %v4100
  %vm4204 = vcmp.eq.f32.partialorder %v4203, 8.507059e+37
  %v4205 = vand.u32 %v4100, 2147483648
  %v4206 = vor.u32 1.1754944e-38, %v4205
  %v4207 = vsel %vm4204, %v4206, %v4202
  %v4208 = vmul.f32 %v4077, %v4207
  %v4209 = vrcp.pop %v4103
  %v4210 = vmul.f32 %v4103, %v4209
  %v4211 = vsub.f32 1.0, %v4210
  %v4212 = vmul.f32 %v4209, %v4211
  %v4213 = vadd.f32 %v4209, %v4212
  %vm4214 = vweird.f32 %v4103
  %vm4215 = vweird.f32 %v4209
  %vm4216 = vmor %vm4214, %vm4215
  %v4217 = vsel %vm4216, %v4209, %v4213
  %v4218 = vand.u32 2147483647, %v4103
  %vm4219 = vcmp.eq.f32.partialorder %v4218, 8.507059e+37
  %v4220 = vand.u32 %v4103, 2147483648
  %v4221 = vor.u32 1.1754944e-38, %v4220
  %v4222 = vsel %vm4219, %v4221, %v4217
  %v4223 = vmul.f32 %v4079, %v4222
  %4224 = vrot.lane.b32.xlu0 %v136, 88
  %v4225 = vpop.permute.xlu0 %4224
  %v4228 = vsel %vm152, %v4118, 0
  %4230 = vmatpush.msra.mxu0 0.0
  %4231 = vmatpush.msra.mxu0 0.0
  %4232 = vmatpush.msra.mxu0 0.0
  %4233 = vmatpush.msra.mxu0 0.0
  %4234 = vmatpush.msra.mxu0 0.0
  %4235 = vmatpush.msra.mxu0 0.0
  %4236 = vmatpush.msra.mxu0 0.0
  %4237 = vmatpush.msra.mxu0 0.0
  %4238 = vmatpush.msra.mxu0 0.0
  %4239 = vmatpush.msra.mxu0 0.0
  %4240 = vmatpush.msra.mxu0 0.0
  %4241 = vmatpush.msra.mxu0 0.0
  %4242 = vmatpush.msra.mxu0 0.0
  %4243 = vmatpush.msra.mxu0 0.0
  %4244 = vmatpush.msra.mxu0 0.0
  %v4245 = vand.u32 %v4225, 4294901760
  %4246 = vmatpush.msra.mxu0 %v4245
  %v4247 = vand.u32 %v4228, 4294901760
  %v4248 = vsub.f32 %v4228, %v4247
  %v4249 = vand.u32 %v4248, 4294901760
  %v4250 = vsub.f32 %v4248, %v4249
  %v4251 = vand.u32 %v4250, 4294901760
  %4252 = vmatmul.f32.gmra.mxu0 %v4251
  %v4253 = vpop.f32.mrf.mxu0
  %v4254 = vadd.f32 0.0, %v4253
  %4255 = vdwg.mxu0
  %4256 = vmatpush.msra.mxu0 0.0
  %4257 = vmatpush.msra.mxu0 0.0
  %4258 = vmatpush.msra.mxu0 0.0
  %4259 = vmatpush.msra.mxu0 0.0
  %4260 = vmatpush.msra.mxu0 0.0
  %4261 = vmatpush.msra.mxu0 0.0
  %4262 = vmatpush.msra.mxu0 0.0
  %4263 = vmatpush.msra.mxu0 0.0
  %4264 = vmatpush.msra.mxu0 0.0
  %4265 = vmatpush.msra.mxu0 0.0
  %4266 = vmatpush.msra.mxu0 0.0
  %4267 = vmatpush.msra.mxu0 0.0
  %4268 = vmatpush.msra.mxu0 0.0
  %4269 = vmatpush.msra.mxu0 0.0
  %4270 = vmatpush.msra.mxu0 0.0
  %v4271 = vand.u32 %v4225, 4294901760
  %v4272 = vsub.f32 %v4225, %v4271
  %v4273 = vand.u32 %v4272, 4294901760
  %v4274 = vsub.f32 %v4272, %v4273
  %v4275 = vand.u32 %v4274, 4294901760
  %4276 = vmatpush.msra.mxu0 %v4275
  %v4277 = vand.u32 %v4228, 4294901760
  %4278 = vmatmul.f32.gmra.mxu0 %v4277
  %v4279 = vpop.f32.mrf.mxu0
  %v4280 = vadd.f32 %v4254, %v4279
  %4281 = vdwg.mxu0
  %4282 = vmatpush.msra.mxu0 0.0
  %4283 = vmatpush.msra.mxu0 0.0
  %4284 = vmatpush.msra.mxu0 0.0
  %4285 = vmatpush.msra.mxu0 0.0
  %4286 = vmatpush.msra.mxu0 0.0
  %4287 = vmatpush.msra.mxu0 0.0
  %4288 = vmatpush.msra.mxu0 0.0
  %4289 = vmatpush.msra.mxu0 0.0
  %4290 = vmatpush.msra.mxu0 0.0
  %4291 = vmatpush.msra.mxu0 0.0
  %4292 = vmatpush.msra.mxu0 0.0
  %4293 = vmatpush.msra.mxu0 0.0
  %4294 = vmatpush.msra.mxu0 0.0
  %4295 = vmatpush.msra.mxu0 0.0
  %4296 = vmatpush.msra.mxu0 0.0
  %v4297 = vand.u32 %v4225, 4294901760
  %v4298 = vsub.f32 %v4225, %v4297
  %4299 = vmatpush.msra.mxu0 %v4298
  %v4300 = vand.u32 %v4228, 4294901760
  %v4301 = vsub.f32 %v4228, %v4300
  %4302 = vmatmul.f32.gmra.mxu0 %v4301
  %v4303 = vpop.f32.mrf.mxu0
  %v4304 = vadd.f32 %v4280, %v4303
  %4305 = vdwg.mxu0
  %4306 = vmatpush.msra.mxu0 0.0
  %4307 = vmatpush.msra.mxu0 0.0
  %4308 = vmatpush.msra.mxu0 0.0
  %4309 = vmatpush.msra.mxu0 0.0
  %4310 = vmatpush.msra.mxu0 0.0
  %4311 = vmatpush.msra.mxu0 0.0
  %4312 = vmatpush.msra.mxu0 0.0
  %4313 = vmatpush.msra.mxu0 0.0
  %4314 = vmatpush.msra.mxu0 0.0
  %4315 = vmatpush.msra.mxu0 0.0
  %4316 = vmatpush.msra.mxu0 0.0
  %4317 = vmatpush.msra.mxu0 0.0
  %4318 = vmatpush.msra.mxu0 0.0
  %4319 = vmatpush.msra.mxu0 0.0
  %4320 = vmatpush.msra.mxu0 0.0
  %v4321 = vand.u32 %v4225, 4294901760
  %4322 = vmatpush.msra.mxu0 %v4321
  %v4323 = vand.u32 %v4228, 4294901760
  %v4324 = vsub.f32 %v4228, %v4323
  %v4325 = vand.u32 %v4324, 4294901760
  %4326 = vmatmul.f32.gmra.mxu0 %v4325
  %v4327 = vpop.f32.mrf.mxu0
  %v4328 = vadd.f32 %v4304, %v4327
  %4329 = vdwg.mxu0
  %4330 = vmatpush.msra.mxu0 0.0
  %4331 = vmatpush.msra.mxu0 0.0
  %4332 = vmatpush.msra.mxu0 0.0
  %4333 = vmatpush.msra.mxu0 0.0
  %4334 = vmatpush.msra.mxu0 0.0
  %4335 = vmatpush.msra.mxu0 0.0
  %4336 = vmatpush.msra.mxu0 0.0
  %4337 = vmatpush.msra.mxu0 0.0
  %4338 = vmatpush.msra.mxu0 0.0
  %4339 = vmatpush.msra.mxu0 0.0
  %4340 = vmatpush.msra.mxu0 0.0
  %4341 = vmatpush.msra.mxu0 0.0
  %4342 = vmatpush.msra.mxu0 0.0
  %4343 = vmatpush.msra.mxu0 0.0
  %4344 = vmatpush.msra.mxu0 0.0
  %v4345 = vand.u32 %v4225, 4294901760
  %v4346 = vsub.f32 %v4225, %v4345
  %v4347 = vand.u32 %v4346, 4294901760
  %4348 = vmatpush.msra.mxu0 %v4347
  %v4349 = vand.u32 %v4228, 4294901760
  %4350 = vmatmul.f32.gmra.mxu0 %v4349
  %v4351 = vpop.f32.mrf.mxu0
  %v4352 = vadd.f32 %v4328, %v4351
  %4353 = vdwg.mxu0
  %4354 = vmatpush.msra.mxu0 0.0
  %4355 = vmatpush.msra.mxu0 0.0
  %4356 = vmatpush.msra.mxu0 0.0
  %4357 = vmatpush.msra.mxu0 0.0
  %4358 = vmatpush.msra.mxu0 0.0
  %4359 = vmatpush.msra.mxu0 0.0
  %4360 = vmatpush.msra.mxu0 0.0
  %4361 = vmatpush.msra.mxu0 0.0
  %4362 = vmatpush.msra.mxu0 0.0
  %4363 = vmatpush.msra.mxu0 0.0
  %4364 = vmatpush.msra.mxu0 0.0
  %4365 = vmatpush.msra.mxu0 0.0
  %4366 = vmatpush.msra.mxu0 0.0
  %4367 = vmatpush.msra.mxu0 0.0
  %4368 = vmatpush.msra.mxu0 0.0
  %v4369 = vand.u32 %v4225, 4294901760
  %4370 = vmatpush.msra.mxu0 %v4369
  %v4371 = vand.u32 %v4228, 4294901760
  %4372 = vmatmul.f32.gmra.mxu0 %v4371
  %v4373 = vpop.f32.mrf.mxu0
  %v4374 = vadd.f32 %v4352, %v4373
  %4375 = vdwg.mxu0
  %4376 = vrot.lane.b32.xlu0 %v137, 88
  %v4377 = vpop.permute.xlu0 %4376
  %v4380 = vsel %vm152, %v4133, 0
  %4382 = vmatpush.msra.mxu0 0.0
  %4383 = vmatpush.msra.mxu0 0.0
  %4384 = vmatpush.msra.mxu0 0.0
  %4385 = vmatpush.msra.mxu0 0.0
  %4386 = vmatpush.msra.mxu0 0.0
  %4387 = vmatpush.msra.mxu0 0.0
  %4388 = vmatpush.msra.mxu0 0.0
  %4389 = vmatpush.msra.mxu0 0.0
  %4390 = vmatpush.msra.mxu0 0.0
  %4391 = vmatpush.msra.mxu0 0.0
  %4392 = vmatpush.msra.mxu0 0.0
  %4393 = vmatpush.msra.mxu0 0.0
  %4394 = vmatpush.msra.mxu0 0.0
  %4395 = vmatpush.msra.mxu0 0.0
  %4396 = vmatpush.msra.mxu0 0.0
  %v4397 = vand.u32 %v4377, 4294901760
  %4398 = vmatpush.msra.mxu0 %v4397
  %v4399 = vand.u32 %v4380, 4294901760
  %v4400 = vsub.f32 %v4380, %v4399
  %v4401 = vand.u32 %v4400, 4294901760
  %v4402 = vsub.f32 %v4400, %v4401
  %v4403 = vand.u32 %v4402, 4294901760
  %4404 = vmatmul.f32.gmra.mxu0 %v4403
  %v4405 = vpop.f32.mrf.mxu0
  %v4406 = vadd.f32 0.0, %v4405
  %4407 = vdwg.mxu0
  %4408 = vmatpush.msra.mxu0 0.0
  %4409 = vmatpush.msra.mxu0 0.0
  %4410 = vmatpush.msra.mxu0 0.0
  %4411 = vmatpush.msra.mxu0 0.0
  %4412 = vmatpush.msra.mxu0 0.0
  %4413 = vmatpush.msra.mxu0 0.0
  %4414 = vmatpush.msra.mxu0 0.0
  %4415 = vmatpush.msra.mxu0 0.0
  %4416 = vmatpush.msra.mxu0 0.0
  %4417 = vmatpush.msra.mxu0 0.0
  %4418 = vmatpush.msra.mxu0 0.0
  %4419 = vmatpush.msra.mxu0 0.0
  %4420 = vmatpush.msra.mxu0 0.0
  %4421 = vmatpush.msra.mxu0 0.0
  %4422 = vmatpush.msra.mxu0 0.0
  %v4423 = vand.u32 %v4377, 4294901760
  %v4424 = vsub.f32 %v4377, %v4423
  %v4425 = vand.u32 %v4424, 4294901760
  %v4426 = vsub.f32 %v4424, %v4425
  %v4427 = vand.u32 %v4426, 4294901760
  %4428 = vmatpush.msra.mxu0 %v4427
  %v4429 = vand.u32 %v4380, 4294901760
  %4430 = vmatmul.f32.gmra.mxu0 %v4429
  %v4431 = vpop.f32.mrf.mxu0
  %v4432 = vadd.f32 %v4406, %v4431
  %4433 = vdwg.mxu0
  %4434 = vmatpush.msra.mxu0 0.0
  %4435 = vmatpush.msra.mxu0 0.0
  %4436 = vmatpush.msra.mxu0 0.0
  %4437 = vmatpush.msra.mxu0 0.0
  %4438 = vmatpush.msra.mxu0 0.0
  %4439 = vmatpush.msra.mxu0 0.0
  %4440 = vmatpush.msra.mxu0 0.0
  %4441 = vmatpush.msra.mxu0 0.0
  %4442 = vmatpush.msra.mxu0 0.0
  %4443 = vmatpush.msra.mxu0 0.0
  %4444 = vmatpush.msra.mxu0 0.0
  %4445 = vmatpush.msra.mxu0 0.0
  %4446 = vmatpush.msra.mxu0 0.0
  %4447 = vmatpush.msra.mxu0 0.0
  %4448 = vmatpush.msra.mxu0 0.0
  %v4449 = vand.u32 %v4377, 4294901760
  %v4450 = vsub.f32 %v4377, %v4449
  %4451 = vmatpush.msra.mxu0 %v4450
  %v4452 = vand.u32 %v4380, 4294901760
  %v4453 = vsub.f32 %v4380, %v4452
  %4454 = vmatmul.f32.gmra.mxu0 %v4453
  %v4455 = vpop.f32.mrf.mxu0
  %v4456 = vadd.f32 %v4432, %v4455
  %4457 = vdwg.mxu0
  %4458 = vmatpush.msra.mxu0 0.0
  %4459 = vmatpush.msra.mxu0 0.0
  %4460 = vmatpush.msra.mxu0 0.0
  %4461 = vmatpush.msra.mxu0 0.0
  %4462 = vmatpush.msra.mxu0 0.0
  %4463 = vmatpush.msra.mxu0 0.0
  %4464 = vmatpush.msra.mxu0 0.0
  %4465 = vmatpush.msra.mxu0 0.0
  %4466 = vmatpush.msra.mxu0 0.0
  %4467 = vmatpush.msra.mxu0 0.0
  %4468 = vmatpush.msra.mxu0 0.0
  %4469 = vmatpush.msra.mxu0 0.0
  %4470 = vmatpush.msra.mxu0 0.0
  %4471 = vmatpush.msra.mxu0 0.0
  %4472 = vmatpush.msra.mxu0 0.0
  %v4473 = vand.u32 %v4377, 4294901760
  %4474 = vmatpush.msra.mxu0 %v4473
  %v4475 = vand.u32 %v4380, 4294901760
  %v4476 = vsub.f32 %v4380, %v4475
  %v4477 = vand.u32 %v4476, 4294901760
  %4478 = vmatmul.f32.gmra.mxu0 %v4477
  %v4479 = vpop.f32.mrf.mxu0
  %v4480 = vadd.f32 %v4456, %v4479
  %4481 = vdwg.mxu0
  %4482 = vmatpush.msra.mxu0 0.0
  %4483 = vmatpush.msra.mxu0 0.0
  %4484 = vmatpush.msra.mxu0 0.0
  %4485 = vmatpush.msra.mxu0 0.0
  %4486 = vmatpush.msra.mxu0 0.0
  %4487 = vmatpush.msra.mxu0 0.0
  %4488 = vmatpush.msra.mxu0 0.0
  %4489 = vmatpush.msra.mxu0 0.0
  %4490 = vmatpush.msra.mxu0 0.0
  %4491 = vmatpush.msra.mxu0 0.0
  %4492 = vmatpush.msra.mxu0 0.0
  %4493 = vmatpush.msra.mxu0 0.0
  %4494 = vmatpush.msra.mxu0 0.0
  %4495 = vmatpush.msra.mxu0 0.0
  %4496 = vmatpush.msra.mxu0 0.0
  %v4497 = vand.u32 %v4377, 4294901760
  %v4498 = vsub.f32 %v4377, %v4497
  %v4499 = vand.u32 %v4498, 4294901760
  %4500 = vmatpush.msra.mxu0 %v4499
  %v4501 = vand.u32 %v4380, 4294901760
  %4502 = vmatmul.f32.gmra.mxu0 %v4501
  %v4503 = vpop.f32.mrf.mxu0
  %v4504 = vadd.f32 %v4480, %v4503
  %4505 = vdwg.mxu0
  %4506 = vmatpush.msra.mxu0 0.0
  %4507 = vmatpush.msra.mxu0 0.0
  %4508 = vmatpush.msra.mxu0 0.0
  %4509 = vmatpush.msra.mxu0 0.0
  %4510 = vmatpush.msra.mxu0 0.0
  %4511 = vmatpush.msra.mxu0 0.0
  %4512 = vmatpush.msra.mxu0 0.0
  %4513 = vmatpush.msra.mxu0 0.0
  %4514 = vmatpush.msra.mxu0 0.0
  %4515 = vmatpush.msra.mxu0 0.0
  %4516 = vmatpush.msra.mxu0 0.0
  %4517 = vmatpush.msra.mxu0 0.0
  %4518 = vmatpush.msra.mxu0 0.0
  %4519 = vmatpush.msra.mxu0 0.0
  %4520 = vmatpush.msra.mxu0 0.0
  %v4521 = vand.u32 %v4377, 4294901760
  %4522 = vmatpush.msra.mxu0 %v4521
  %v4523 = vand.u32 %v4380, 4294901760
  %4524 = vmatmul.f32.gmra.mxu0 %v4523
  %v4525 = vpop.f32.mrf.mxu0
  %v4526 = vadd.f32 %v4504, %v4525
  %4527 = vdwg.mxu0
  %4528 = vrot.lane.b32.xlu0 %v138, 88
  %v4529 = vpop.permute.xlu0 %4528
  %v4532 = vsel %vm152, %v4148, 0
  %4534 = vmatpush.msra.mxu0 0.0
  %4535 = vmatpush.msra.mxu0 0.0
  %4536 = vmatpush.msra.mxu0 0.0
  %4537 = vmatpush.msra.mxu0 0.0
  %4538 = vmatpush.msra.mxu0 0.0
  %4539 = vmatpush.msra.mxu0 0.0
  %4540 = vmatpush.msra.mxu0 0.0
  %4541 = vmatpush.msra.mxu0 0.0
  %4542 = vmatpush.msra.mxu0 0.0
  %4543 = vmatpush.msra.mxu0 0.0
  %4544 = vmatpush.msra.mxu0 0.0
  %4545 = vmatpush.msra.mxu0 0.0
  %4546 = vmatpush.msra.mxu0 0.0
  %4547 = vmatpush.msra.mxu0 0.0
  %4548 = vmatpush.msra.mxu0 0.0
  %v4549 = vand.u32 %v4529, 4294901760
  %4550 = vmatpush.msra.mxu0 %v4549
  %v4551 = vand.u32 %v4532, 4294901760
  %v4552 = vsub.f32 %v4532, %v4551
  %v4553 = vand.u32 %v4552, 4294901760
  %v4554 = vsub.f32 %v4552, %v4553
  %v4555 = vand.u32 %v4554, 4294901760
  %4556 = vmatmul.f32.gmra.mxu0 %v4555
  %v4557 = vpop.f32.mrf.mxu0
  %v4558 = vadd.f32 0.0, %v4557
  %4559 = vdwg.mxu0
  %4560 = vmatpush.msra.mxu0 0.0
  %4561 = vmatpush.msra.mxu0 0.0
  %4562 = vmatpush.msra.mxu0 0.0
  %4563 = vmatpush.msra.mxu0 0.0
  %4564 = vmatpush.msra.mxu0 0.0
  %4565 = vmatpush.msra.mxu0 0.0
  %4566 = vmatpush.msra.mxu0 0.0
  %4567 = vmatpush.msra.mxu0 0.0
  %4568 = vmatpush.msra.mxu0 0.0
  %4569 = vmatpush.msra.mxu0 0.0
  %4570 = vmatpush.msra.mxu0 0.0
  %4571 = vmatpush.msra.mxu0 0.0
  %4572 = vmatpush.msra.mxu0 0.0
  %4573 = vmatpush.msra.mxu0 0.0
  %4574 = vmatpush.msra.mxu0 0.0
  %v4575 = vand.u32 %v4529, 4294901760
  %v4576 = vsub.f32 %v4529, %v4575
  %v4577 = vand.u32 %v4576, 4294901760
  %v4578 = vsub.f32 %v4576, %v4577
  %v4579 = vand.u32 %v4578, 4294901760
  %4580 = vmatpush.msra.mxu0 %v4579
  %v4581 = vand.u32 %v4532, 4294901760
  %4582 = vmatmul.f32.gmra.mxu0 %v4581
  %v4583 = vpop.f32.mrf.mxu0
  %v4584 = vadd.f32 %v4558, %v4583
  %4585 = vdwg.mxu0
  %4586 = vmatpush.msra.mxu0 0.0
  %4587 = vmatpush.msra.mxu0 0.0
  %4588 = vmatpush.msra.mxu0 0.0
  %4589 = vmatpush.msra.mxu0 0.0
  %4590 = vmatpush.msra.mxu0 0.0
  %4591 = vmatpush.msra.mxu0 0.0
  %4592 = vmatpush.msra.mxu0 0.0
  %4593 = vmatpush.msra.mxu0 0.0
  %4594 = vmatpush.msra.mxu0 0.0
  %4595 = vmatpush.msra.mxu0 0.0
  %4596 = vmatpush.msra.mxu0 0.0
  %4597 = vmatpush.msra.mxu0 0.0
  %4598 = vmatpush.msra.mxu0 0.0
  %4599 = vmatpush.msra.mxu0 0.0
  %4600 = vmatpush.msra.mxu0 0.0
  %v4601 = vand.u32 %v4529, 4294901760
  %v4602 = vsub.f32 %v4529, %v4601
  %4603 = vmatpush.msra.mxu0 %v4602
  %v4604 = vand.u32 %v4532, 4294901760
  %v4605 = vsub.f32 %v4532, %v4604
  %4606 = vmatmul.f32.gmra.mxu0 %v4605
  %v4607 = vpop.f32.mrf.mxu0
  %v4608 = vadd.f32 %v4584, %v4607
  %4609 = vdwg.mxu0
  %4610 = vmatpush.msra.mxu0 0.0
  %4611 = vmatpush.msra.mxu0 0.0
  %4612 = vmatpush.msra.mxu0 0.0
  %4613 = vmatpush.msra.mxu0 0.0
  %4614 = vmatpush.msra.mxu0 0.0
  %4615 = vmatpush.msra.mxu0 0.0
  %4616 = vmatpush.msra.mxu0 0.0
  %4617 = vmatpush.msra.mxu0 0.0
  %4618 = vmatpush.msra.mxu0 0.0
  %4619 = vmatpush.msra.mxu0 0.0
  %4620 = vmatpush.msra.mxu0 0.0
  %4621 = vmatpush.msra.mxu0 0.0
  %4622 = vmatpush.msra.mxu0 0.0
  %4623 = vmatpush.msra.mxu0 0.0
  %4624 = vmatpush.msra.mxu0 0.0
  %v4625 = vand.u32 %v4529, 4294901760
  %4626 = vmatpush.msra.mxu0 %v4625
  %v4627 = vand.u32 %v4532, 4294901760
  %v4628 = vsub.f32 %v4532, %v4627
  %v4629 = vand.u32 %v4628, 4294901760
  %4630 = vmatmul.f32.gmra.mxu0 %v4629
  %v4631 = vpop.f32.mrf.mxu0
  %v4632 = vadd.f32 %v4608, %v4631
  %4633 = vdwg.mxu0
  %4634 = vmatpush.msra.mxu0 0.0
  %4635 = vmatpush.msra.mxu0 0.0
  %4636 = vmatpush.msra.mxu0 0.0
  %4637 = vmatpush.msra.mxu0 0.0
  %4638 = vmatpush.msra.mxu0 0.0
  %4639 = vmatpush.msra.mxu0 0.0
  %4640 = vmatpush.msra.mxu0 0.0
  %4641 = vmatpush.msra.mxu0 0.0
  %4642 = vmatpush.msra.mxu0 0.0
  %4643 = vmatpush.msra.mxu0 0.0
  %4644 = vmatpush.msra.mxu0 0.0
  %4645 = vmatpush.msra.mxu0 0.0
  %4646 = vmatpush.msra.mxu0 0.0
  %4647 = vmatpush.msra.mxu0 0.0
  %4648 = vmatpush.msra.mxu0 0.0
  %v4649 = vand.u32 %v4529, 4294901760
  %v4650 = vsub.f32 %v4529, %v4649
  %v4651 = vand.u32 %v4650, 4294901760
  %4652 = vmatpush.msra.mxu0 %v4651
  %v4653 = vand.u32 %v4532, 4294901760
  %4654 = vmatmul.f32.gmra.mxu0 %v4653
  %v4655 = vpop.f32.mrf.mxu0
  %v4656 = vadd.f32 %v4632, %v4655
  %4657 = vdwg.mxu0
  %4658 = vmatpush.msra.mxu0 0.0
  %4659 = vmatpush.msra.mxu0 0.0
  %4660 = vmatpush.msra.mxu0 0.0
  %4661 = vmatpush.msra.mxu0 0.0
  %4662 = vmatpush.msra.mxu0 0.0
  %4663 = vmatpush.msra.mxu0 0.0
  %4664 = vmatpush.msra.mxu0 0.0
  %4665 = vmatpush.msra.mxu0 0.0
  %4666 = vmatpush.msra.mxu0 0.0
  %4667 = vmatpush.msra.mxu0 0.0
  %4668 = vmatpush.msra.mxu0 0.0
  %4669 = vmatpush.msra.mxu0 0.0
  %4670 = vmatpush.msra.mxu0 0.0
  %4671 = vmatpush.msra.mxu0 0.0
  %4672 = vmatpush.msra.mxu0 0.0
  %v4673 = vand.u32 %v4529, 4294901760
  %4674 = vmatpush.msra.mxu0 %v4673
  %v4675 = vand.u32 %v4532, 4294901760
  %4676 = vmatmul.f32.gmra.mxu0 %v4675
  %v4677 = vpop.f32.mrf.mxu0
  %v4678 = vadd.f32 %v4656, %v4677
  %4679 = vdwg.mxu0
  %4680 = vrot.lane.b32.xlu0 %v139, 88
  %v4681 = vpop.permute.xlu0 %4680
  %v4684 = vsel %vm152, %v4163, 0
  %4686 = vmatpush.msra.mxu0 0.0
  %4687 = vmatpush.msra.mxu0 0.0
  %4688 = vmatpush.msra.mxu0 0.0
  %4689 = vmatpush.msra.mxu0 0.0
  %4690 = vmatpush.msra.mxu0 0.0
  %4691 = vmatpush.msra.mxu0 0.0
  %4692 = vmatpush.msra.mxu0 0.0
  %4693 = vmatpush.msra.mxu0 0.0
  %4694 = vmatpush.msra.mxu0 0.0
  %4695 = vmatpush.msra.mxu0 0.0
  %4696 = vmatpush.msra.mxu0 0.0
  %4697 = vmatpush.msra.mxu0 0.0
  %4698 = vmatpush.msra.mxu0 0.0
  %4699 = vmatpush.msra.mxu0 0.0
  %4700 = vmatpush.msra.mxu0 0.0
  %v4701 = vand.u32 %v4681, 4294901760
  %4702 = vmatpush.msra.mxu0 %v4701
  %v4703 = vand.u32 %v4684, 4294901760
  %v4704 = vsub.f32 %v4684, %v4703
  %v4705 = vand.u32 %v4704, 4294901760
  %v4706 = vsub.f32 %v4704, %v4705
  %v4707 = vand.u32 %v4706, 4294901760
  %4708 = vmatmul.f32.gmra.mxu0 %v4707
  %v4709 = vpop.f32.mrf.mxu0
  %v4710 = vadd.f32 0.0, %v4709
  %4711 = vdwg.mxu0
  %4712 = vmatpush.msra.mxu0 0.0
  %4713 = vmatpush.msra.mxu0 0.0
  %4714 = vmatpush.msra.mxu0 0.0
  %4715 = vmatpush.msra.mxu0 0.0
  %4716 = vmatpush.msra.mxu0 0.0
  %4717 = vmatpush.msra.mxu0 0.0
  %4718 = vmatpush.msra.mxu0 0.0
  %4719 = vmatpush.msra.mxu0 0.0
  %4720 = vmatpush.msra.mxu0 0.0
  %4721 = vmatpush.msra.mxu0 0.0
  %4722 = vmatpush.msra.mxu0 0.0
  %4723 = vmatpush.msra.mxu0 0.0
  %4724 = vmatpush.msra.mxu0 0.0
  %4725 = vmatpush.msra.mxu0 0.0
  %4726 = vmatpush.msra.mxu0 0.0
  %v4727 = vand.u32 %v4681, 4294901760
  %v4728 = vsub.f32 %v4681, %v4727
  %v4729 = vand.u32 %v4728, 4294901760
  %v4730 = vsub.f32 %v4728, %v4729
  %v4731 = vand.u32 %v4730, 4294901760
  %4732 = vmatpush.msra.mxu0 %v4731
  %v4733 = vand.u32 %v4684, 4294901760
  %4734 = vmatmul.f32.gmra.mxu0 %v4733
  %v4735 = vpop.f32.mrf.mxu0
  %v4736 = vadd.f32 %v4710, %v4735
  %4737 = vdwg.mxu0
  %4738 = vmatpush.msra.mxu0 0.0
  %4739 = vmatpush.msra.mxu0 0.0
  %4740 = vmatpush.msra.mxu0 0.0
  %4741 = vmatpush.msra.mxu0 0.0
  %4742 = vmatpush.msra.mxu0 0.0
  %4743 = vmatpush.msra.mxu0 0.0
  %4744 = vmatpush.msra.mxu0 0.0
  %4745 = vmatpush.msra.mxu0 0.0
  %4746 = vmatpush.msra.mxu0 0.0
  %4747 = vmatpush.msra.mxu0 0.0
  %4748 = vmatpush.msra.mxu0 0.0
  %4749 = vmatpush.msra.mxu0 0.0
  %4750 = vmatpush.msra.mxu0 0.0
  %4751 = vmatpush.msra.mxu0 0.0
  %4752 = vmatpush.msra.mxu0 0.0
  %v4753 = vand.u32 %v4681, 4294901760
  %v4754 = vsub.f32 %v4681, %v4753
  %4755 = vmatpush.msra.mxu0 %v4754
  %v4756 = vand.u32 %v4684, 4294901760
  %v4757 = vsub.f32 %v4684, %v4756
  %4758 = vmatmul.f32.gmra.mxu0 %v4757
  %v4759 = vpop.f32.mrf.mxu0
  %v4760 = vadd.f32 %v4736, %v4759
  %4761 = vdwg.mxu0
  %4762 = vmatpush.msra.mxu0 0.0
  %4763 = vmatpush.msra.mxu0 0.0
  %4764 = vmatpush.msra.mxu0 0.0
  %4765 = vmatpush.msra.mxu0 0.0
  %4766 = vmatpush.msra.mxu0 0.0
  %4767 = vmatpush.msra.mxu0 0.0
  %4768 = vmatpush.msra.mxu0 0.0
  %4769 = vmatpush.msra.mxu0 0.0
  %4770 = vmatpush.msra.mxu0 0.0
  %4771 = vmatpush.msra.mxu0 0.0
  %4772 = vmatpush.msra.mxu0 0.0
  %4773 = vmatpush.msra.mxu0 0.0
  %4774 = vmatpush.msra.mxu0 0.0
  %4775 = vmatpush.msra.mxu0 0.0
  %4776 = vmatpush.msra.mxu0 0.0
  %v4777 = vand.u32 %v4681, 4294901760
  %4778 = vmatpush.msra.mxu0 %v4777
  %v4779 = vand.u32 %v4684, 4294901760
  %v4780 = vsub.f32 %v4684, %v4779
  %v4781 = vand.u32 %v4780, 4294901760
  %4782 = vmatmul.f32.gmra.mxu0 %v4781
  %v4783 = vpop.f32.mrf.mxu0
  %v4784 = vadd.f32 %v4760, %v4783
  %4785 = vdwg.mxu0
  %4786 = vmatpush.msra.mxu0 0.0
  %4787 = vmatpush.msra.mxu0 0.0
  %4788 = vmatpush.msra.mxu0 0.0
  %4789 = vmatpush.msra.mxu0 0.0
  %4790 = vmatpush.msra.mxu0 0.0
  %4791 = vmatpush.msra.mxu0 0.0
  %4792 = vmatpush.msra.mxu0 0.0
  %4793 = vmatpush.msra.mxu0 0.0
  %4794 = vmatpush.msra.mxu0 0.0
  %4795 = vmatpush.msra.mxu0 0.0
  %4796 = vmatpush.msra.mxu0 0.0
  %4797 = vmatpush.msra.mxu0 0.0
  %4798 = vmatpush.msra.mxu0 0.0
  %4799 = vmatpush.msra.mxu0 0.0
  %4800 = vmatpush.msra.mxu0 0.0
  %v4801 = vand.u32 %v4681, 4294901760
  %v4802 = vsub.f32 %v4681, %v4801
  %v4803 = vand.u32 %v4802, 4294901760
  %4804 = vmatpush.msra.mxu0 %v4803
  %v4805 = vand.u32 %v4684, 4294901760
  %4806 = vmatmul.f32.gmra.mxu0 %v4805
  %v4807 = vpop.f32.mrf.mxu0
  %v4808 = vadd.f32 %v4784, %v4807
  %4809 = vdwg.mxu0
  %4810 = vmatpush.msra.mxu0 0.0
  %4811 = vmatpush.msra.mxu0 0.0
  %4812 = vmatpush.msra.mxu0 0.0
  %4813 = vmatpush.msra.mxu0 0.0
  %4814 = vmatpush.msra.mxu0 0.0
  %4815 = vmatpush.msra.mxu0 0.0
  %4816 = vmatpush.msra.mxu0 0.0
  %4817 = vmatpush.msra.mxu0 0.0
  %4818 = vmatpush.msra.mxu0 0.0
  %4819 = vmatpush.msra.mxu0 0.0
  %4820 = vmatpush.msra.mxu0 0.0
  %4821 = vmatpush.msra.mxu0 0.0
  %4822 = vmatpush.msra.mxu0 0.0
  %4823 = vmatpush.msra.mxu0 0.0
  %4824 = vmatpush.msra.mxu0 0.0
  %v4825 = vand.u32 %v4681, 4294901760
  %4826 = vmatpush.msra.mxu0 %v4825
  %v4827 = vand.u32 %v4684, 4294901760
  %4828 = vmatmul.f32.gmra.mxu0 %v4827
  %v4829 = vpop.f32.mrf.mxu0
  %v4830 = vadd.f32 %v4808, %v4829
  %4831 = vdwg.mxu0
  %4832 = vrot.lane.b32.xlu0 %v140, 88
  %v4833 = vpop.permute.xlu0 %4832
  %v4836 = vsel %vm152, %v4178, 0
  %4838 = vmatpush.msra.mxu0 0.0
  %4839 = vmatpush.msra.mxu0 0.0
  %4840 = vmatpush.msra.mxu0 0.0
  %4841 = vmatpush.msra.mxu0 0.0
  %4842 = vmatpush.msra.mxu0 0.0
  %4843 = vmatpush.msra.mxu0 0.0
  %4844 = vmatpush.msra.mxu0 0.0
  %4845 = vmatpush.msra.mxu0 0.0
  %4846 = vmatpush.msra.mxu0 0.0
  %4847 = vmatpush.msra.mxu0 0.0
  %4848 = vmatpush.msra.mxu0 0.0
  %4849 = vmatpush.msra.mxu0 0.0
  %4850 = vmatpush.msra.mxu0 0.0
  %4851 = vmatpush.msra.mxu0 0.0
  %4852 = vmatpush.msra.mxu0 0.0
  %v4853 = vand.u32 %v4833, 4294901760
  %4854 = vmatpush.msra.mxu0 %v4853
  %v4855 = vand.u32 %v4836, 4294901760
  %v4856 = vsub.f32 %v4836, %v4855
  %v4857 = vand.u32 %v4856, 4294901760
  %v4858 = vsub.f32 %v4856, %v4857
  %v4859 = vand.u32 %v4858, 4294901760
  %4860 = vmatmul.f32.gmra.mxu0 %v4859
  %v4861 = vpop.f32.mrf.mxu0
  %v4862 = vadd.f32 0.0, %v4861
  %4863 = vdwg.mxu0
  %4864 = vmatpush.msra.mxu0 0.0
  %4865 = vmatpush.msra.mxu0 0.0
  %4866 = vmatpush.msra.mxu0 0.0
  %4867 = vmatpush.msra.mxu0 0.0
  %4868 = vmatpush.msra.mxu0 0.0
  %4869 = vmatpush.msra.mxu0 0.0
  %4870 = vmatpush.msra.mxu0 0.0
  %4871 = vmatpush.msra.mxu0 0.0
  %4872 = vmatpush.msra.mxu0 0.0
  %4873 = vmatpush.msra.mxu0 0.0
  %4874 = vmatpush.msra.mxu0 0.0
  %4875 = vmatpush.msra.mxu0 0.0
  %4876 = vmatpush.msra.mxu0 0.0
  %4877 = vmatpush.msra.mxu0 0.0
  %4878 = vmatpush.msra.mxu0 0.0
  %v4879 = vand.u32 %v4833, 4294901760
  %v4880 = vsub.f32 %v4833, %v4879
  %v4881 = vand.u32 %v4880, 4294901760
  %v4882 = vsub.f32 %v4880, %v4881
  %v4883 = vand.u32 %v4882, 4294901760
  %4884 = vmatpush.msra.mxu0 %v4883
  %v4885 = vand.u32 %v4836, 4294901760
  %4886 = vmatmul.f32.gmra.mxu0 %v4885
  %v4887 = vpop.f32.mrf.mxu0
  %v4888 = vadd.f32 %v4862, %v4887
  %4889 = vdwg.mxu0
  %4890 = vmatpush.msra.mxu0 0.0
  %4891 = vmatpush.msra.mxu0 0.0
  %4892 = vmatpush.msra.mxu0 0.0
  %4893 = vmatpush.msra.mxu0 0.0
  %4894 = vmatpush.msra.mxu0 0.0
  %4895 = vmatpush.msra.mxu0 0.0
  %4896 = vmatpush.msra.mxu0 0.0
  %4897 = vmatpush.msra.mxu0 0.0
  %4898 = vmatpush.msra.mxu0 0.0
  %4899 = vmatpush.msra.mxu0 0.0
  %4900 = vmatpush.msra.mxu0 0.0
  %4901 = vmatpush.msra.mxu0 0.0
  %4902 = vmatpush.msra.mxu0 0.0
  %4903 = vmatpush.msra.mxu0 0.0
  %4904 = vmatpush.msra.mxu0 0.0
  %v4905 = vand.u32 %v4833, 4294901760
  %v4906 = vsub.f32 %v4833, %v4905
  %4907 = vmatpush.msra.mxu0 %v4906
  %v4908 = vand.u32 %v4836, 4294901760
  %v4909 = vsub.f32 %v4836, %v4908
  %4910 = vmatmul.f32.gmra.mxu0 %v4909
  %v4911 = vpop.f32.mrf.mxu0
  %v4912 = vadd.f32 %v4888, %v4911
  %4913 = vdwg.mxu0
  %4914 = vmatpush.msra.mxu0 0.0
  %4915 = vmatpush.msra.mxu0 0.0
  %4916 = vmatpush.msra.mxu0 0.0
  %4917 = vmatpush.msra.mxu0 0.0
  %4918 = vmatpush.msra.mxu0 0.0
  %4919 = vmatpush.msra.mxu0 0.0
  %4920 = vmatpush.msra.mxu0 0.0
  %4921 = vmatpush.msra.mxu0 0.0
  %4922 = vmatpush.msra.mxu0 0.0
  %4923 = vmatpush.msra.mxu0 0.0
  %4924 = vmatpush.msra.mxu0 0.0
  %4925 = vmatpush.msra.mxu0 0.0
  %4926 = vmatpush.msra.mxu0 0.0
  %4927 = vmatpush.msra.mxu0 0.0
  %4928 = vmatpush.msra.mxu0 0.0
  %v4929 = vand.u32 %v4833, 4294901760
  %4930 = vmatpush.msra.mxu0 %v4929
  %v4931 = vand.u32 %v4836, 4294901760
  %v4932 = vsub.f32 %v4836, %v4931
  %v4933 = vand.u32 %v4932, 4294901760
  %4934 = vmatmul.f32.gmra.mxu0 %v4933
  %v4935 = vpop.f32.mrf.mxu0
  %v4936 = vadd.f32 %v4912, %v4935
  %4937 = vdwg.mxu0
  %4938 = vmatpush.msra.mxu0 0.0
  %4939 = vmatpush.msra.mxu0 0.0
  %4940 = vmatpush.msra.mxu0 0.0
  %4941 = vmatpush.msra.mxu0 0.0
  %4942 = vmatpush.msra.mxu0 0.0
  %4943 = vmatpush.msra.mxu0 0.0
  %4944 = vmatpush.msra.mxu0 0.0
  %4945 = vmatpush.msra.mxu0 0.0
  %4946 = vmatpush.msra.mxu0 0.0
  %4947 = vmatpush.msra.mxu0 0.0
  %4948 = vmatpush.msra.mxu0 0.0
  %4949 = vmatpush.msra.mxu0 0.0
  %4950 = vmatpush.msra.mxu0 0.0
  %4951 = vmatpush.msra.mxu0 0.0
  %4952 = vmatpush.msra.mxu0 0.0
  %v4953 = vand.u32 %v4833, 4294901760
  %v4954 = vsub.f32 %v4833, %v4953
  %v4955 = vand.u32 %v4954, 4294901760
  %4956 = vmatpush.msra.mxu0 %v4955
  %v4957 = vand.u32 %v4836, 4294901760
  %4958 = vmatmul.f32.gmra.mxu0 %v4957
  %v4959 = vpop.f32.mrf.mxu0
  %v4960 = vadd.f32 %v4936, %v4959
  %4961 = vdwg.mxu0
  %4962 = vmatpush.msra.mxu0 0.0
  %4963 = vmatpush.msra.mxu0 0.0
  %4964 = vmatpush.msra.mxu0 0.0
  %4965 = vmatpush.msra.mxu0 0.0
  %4966 = vmatpush.msra.mxu0 0.0
  %4967 = vmatpush.msra.mxu0 0.0
  %4968 = vmatpush.msra.mxu0 0.0
  %4969 = vmatpush.msra.mxu0 0.0
  %4970 = vmatpush.msra.mxu0 0.0
  %4971 = vmatpush.msra.mxu0 0.0
  %4972 = vmatpush.msra.mxu0 0.0
  %4973 = vmatpush.msra.mxu0 0.0
  %4974 = vmatpush.msra.mxu0 0.0
  %4975 = vmatpush.msra.mxu0 0.0
  %4976 = vmatpush.msra.mxu0 0.0
  %v4977 = vand.u32 %v4833, 4294901760
  %4978 = vmatpush.msra.mxu0 %v4977
  %v4979 = vand.u32 %v4836, 4294901760
  %4980 = vmatmul.f32.gmra.mxu0 %v4979
  %v4981 = vpop.f32.mrf.mxu0
  %v4982 = vadd.f32 %v4960, %v4981
  %4983 = vdwg.mxu0
  %4984 = vrot.lane.b32.xlu0 %v141, 88
  %v4985 = vpop.permute.xlu0 %4984
  %v4988 = vsel %vm152, %v4193, 0
  %4990 = vmatpush.msra.mxu0 0.0
  %4991 = vmatpush.msra.mxu0 0.0
  %4992 = vmatpush.msra.mxu0 0.0
  %4993 = vmatpush.msra.mxu0 0.0
  %4994 = vmatpush.msra.mxu0 0.0
  %4995 = vmatpush.msra.mxu0 0.0
  %4996 = vmatpush.msra.mxu0 0.0
  %4997 = vmatpush.msra.mxu0 0.0
  %4998 = vmatpush.msra.mxu0 0.0
  %4999 = vmatpush.msra.mxu0 0.0
  %5000 = vmatpush.msra.mxu0 0.0
  %5001 = vmatpush.msra.mxu0 0.0
  %5002 = vmatpush.msra.mxu0 0.0
  %5003 = vmatpush.msra.mxu0 0.0
  %5004 = vmatpush.msra.mxu0 0.0
  %v5005 = vand.u32 %v4985, 4294901760
  %5006 = vmatpush.msra.mxu0 %v5005
  %v5007 = vand.u32 %v4988, 4294901760
  %v5008 = vsub.f32 %v4988, %v5007
  %v5009 = vand.u32 %v5008, 4294901760
  %v5010 = vsub.f32 %v5008, %v5009
  %v5011 = vand.u32 %v5010, 4294901760
  %5012 = vmatmul.f32.gmra.mxu0 %v5011
  %v5013 = vpop.f32.mrf.mxu0
  %v5014 = vadd.f32 0.0, %v5013
  %5015 = vdwg.mxu0
  %5016 = vmatpush.msra.mxu0 0.0
  %5017 = vmatpush.msra.mxu0 0.0
  %5018 = vmatpush.msra.mxu0 0.0
  %5019 = vmatpush.msra.mxu0 0.0
  %5020 = vmatpush.msra.mxu0 0.0
  %5021 = vmatpush.msra.mxu0 0.0
  %5022 = vmatpush.msra.mxu0 0.0
  %5023 = vmatpush.msra.mxu0 0.0
  %5024 = vmatpush.msra.mxu0 0.0
  %5025 = vmatpush.msra.mxu0 0.0
  %5026 = vmatpush.msra.mxu0 0.0
  %5027 = vmatpush.msra.mxu0 0.0
  %5028 = vmatpush.msra.mxu0 0.0
  %5029 = vmatpush.msra.mxu0 0.0
  %5030 = vmatpush.msra.mxu0 0.0
  %v5031 = vand.u32 %v4985, 4294901760
  %v5032 = vsub.f32 %v4985, %v5031
  %v5033 = vand.u32 %v5032, 4294901760
  %v5034 = vsub.f32 %v5032, %v5033
  %v5035 = vand.u32 %v5034, 4294901760
  %5036 = vmatpush.msra.mxu0 %v5035
  %v5037 = vand.u32 %v4988, 4294901760
  %5038 = vmatmul.f32.gmra.mxu0 %v5037
  %v5039 = vpop.f32.mrf.mxu0
  %v5040 = vadd.f32 %v5014, %v5039
  %5041 = vdwg.mxu0
  %5042 = vmatpush.msra.mxu0 0.0
  %5043 = vmatpush.msra.mxu0 0.0
  %5044 = vmatpush.msra.mxu0 0.0
  %5045 = vmatpush.msra.mxu0 0.0
  %5046 = vmatpush.msra.mxu0 0.0
  %5047 = vmatpush.msra.mxu0 0.0
  %5048 = vmatpush.msra.mxu0 0.0
  %5049 = vmatpush.msra.mxu0 0.0
  %5050 = vmatpush.msra.mxu0 0.0
  %5051 = vmatpush.msra.mxu0 0.0
  %5052 = vmatpush.msra.mxu0 0.0
  %5053 = vmatpush.msra.mxu0 0.0
  %5054 = vmatpush.msra.mxu0 0.0
  %5055 = vmatpush.msra.mxu0 0.0
  %5056 = vmatpush.msra.mxu0 0.0
  %v5057 = vand.u32 %v4985, 4294901760
  %v5058 = vsub.f32 %v4985, %v5057
  %5059 = vmatpush.msra.mxu0 %v5058
  %v5060 = vand.u32 %v4988, 4294901760
  %v5061 = vsub.f32 %v4988, %v5060
  %5062 = vmatmul.f32.gmra.mxu0 %v5061
  %v5063 = vpop.f32.mrf.mxu0
  %v5064 = vadd.f32 %v5040, %v5063
  %5065 = vdwg.mxu0
  %5066 = vmatpush.msra.mxu0 0.0
  %5067 = vmatpush.msra.mxu0 0.0
  %5068 = vmatpush.msra.mxu0 0.0
  %5069 = vmatpush.msra.mxu0 0.0
  %5070 = vmatpush.msra.mxu0 0.0
  %5071 = vmatpush.msra.mxu0 0.0
  %5072 = vmatpush.msra.mxu0 0.0
  %5073 = vmatpush.msra.mxu0 0.0
  %5074 = vmatpush.msra.mxu0 0.0
  %5075 = vmatpush.msra.mxu0 0.0
  %5076 = vmatpush.msra.mxu0 0.0
  %5077 = vmatpush.msra.mxu0 0.0
  %5078 = vmatpush.msra.mxu0 0.0
  %5079 = vmatpush.msra.mxu0 0.0
  %5080 = vmatpush.msra.mxu0 0.0
  %v5081 = vand.u32 %v4985, 4294901760
  %5082 = vmatpush.msra.mxu0 %v5081
  %v5083 = vand.u32 %v4988, 4294901760
  %v5084 = vsub.f32 %v4988, %v5083
  %v5085 = vand.u32 %v5084, 4294901760
  %5086 = vmatmul.f32.gmra.mxu0 %v5085
  %v5087 = vpop.f32.mrf.mxu0
  %v5088 = vadd.f32 %v5064, %v5087
  %5089 = vdwg.mxu0
  %5090 = vmatpush.msra.mxu0 0.0
  %5091 = vmatpush.msra.mxu0 0.0
  %5092 = vmatpush.msra.mxu0 0.0
  %5093 = vmatpush.msra.mxu0 0.0
  %5094 = vmatpush.msra.mxu0 0.0
  %5095 = vmatpush.msra.mxu0 0.0
  %5096 = vmatpush.msra.mxu0 0.0
  %5097 = vmatpush.msra.mxu0 0.0
  %5098 = vmatpush.msra.mxu0 0.0
  %5099 = vmatpush.msra.mxu0 0.0
  %5100 = vmatpush.msra.mxu0 0.0
  %5101 = vmatpush.msra.mxu0 0.0
  %5102 = vmatpush.msra.mxu0 0.0
  %5103 = vmatpush.msra.mxu0 0.0
  %5104 = vmatpush.msra.mxu0 0.0
  %v5105 = vand.u32 %v4985, 4294901760
  %v5106 = vsub.f32 %v4985, %v5105
  %v5107 = vand.u32 %v5106, 4294901760
  %5108 = vmatpush.msra.mxu0 %v5107
  %v5109 = vand.u32 %v4988, 4294901760
  %5110 = vmatmul.f32.gmra.mxu0 %v5109
  %v5111 = vpop.f32.mrf.mxu0
  %v5112 = vadd.f32 %v5088, %v5111
  %5113 = vdwg.mxu0
  %5114 = vmatpush.msra.mxu0 0.0
  %5115 = vmatpush.msra.mxu0 0.0
  %5116 = vmatpush.msra.mxu0 0.0
  %5117 = vmatpush.msra.mxu0 0.0
  %5118 = vmatpush.msra.mxu0 0.0
  %5119 = vmatpush.msra.mxu0 0.0
  %5120 = vmatpush.msra.mxu0 0.0
  %5121 = vmatpush.msra.mxu0 0.0
  %5122 = vmatpush.msra.mxu0 0.0
  %5123 = vmatpush.msra.mxu0 0.0
  %5124 = vmatpush.msra.mxu0 0.0
  %5125 = vmatpush.msra.mxu0 0.0
  %5126 = vmatpush.msra.mxu0 0.0
  %5127 = vmatpush.msra.mxu0 0.0
  %5128 = vmatpush.msra.mxu0 0.0
  %v5129 = vand.u32 %v4985, 4294901760
  %5130 = vmatpush.msra.mxu0 %v5129
  %v5131 = vand.u32 %v4988, 4294901760
  %5132 = vmatmul.f32.gmra.mxu0 %v5131
  %v5133 = vpop.f32.mrf.mxu0
  %v5134 = vadd.f32 %v5112, %v5133
  %5135 = vdwg.mxu0
  %5136 = vrot.lane.b32.xlu0 %v142, 88
  %v5137 = vpop.permute.xlu0 %5136
  %v5140 = vsel %vm152, %v4208, 0
  %5142 = vmatpush.msra.mxu0 0.0
  %5143 = vmatpush.msra.mxu0 0.0
  %5144 = vmatpush.msra.mxu0 0.0
  %5145 = vmatpush.msra.mxu0 0.0
  %5146 = vmatpush.msra.mxu0 0.0
  %5147 = vmatpush.msra.mxu0 0.0
  %5148 = vmatpush.msra.mxu0 0.0
  %5149 = vmatpush.msra.mxu0 0.0
  %5150 = vmatpush.msra.mxu0 0.0
  %5151 = vmatpush.msra.mxu0 0.0
  %5152 = vmatpush.msra.mxu0 0.0
  %5153 = vmatpush.msra.mxu0 0.0
  %5154 = vmatpush.msra.mxu0 0.0
  %5155 = vmatpush.msra.mxu0 0.0
  %5156 = vmatpush.msra.mxu0 0.0
  %v5157 = vand.u32 %v5137, 4294901760
  %5158 = vmatpush.msra.mxu0 %v5157
  %v5159 = vand.u32 %v5140, 4294901760
  %v5160 = vsub.f32 %v5140, %v5159
  %v5161 = vand.u32 %v5160, 4294901760
  %v5162 = vsub.f32 %v5160, %v5161
  %v5163 = vand.u32 %v5162, 4294901760
  %5164 = vmatmul.f32.gmra.mxu0 %v5163
  %v5165 = vpop.f32.mrf.mxu0
  %v5166 = vadd.f32 0.0, %v5165
  %5167 = vdwg.mxu0
  %5168 = vmatpush.msra.mxu0 0.0
  %5169 = vmatpush.msra.mxu0 0.0
  %5170 = vmatpush.msra.mxu0 0.0
  %5171 = vmatpush.msra.mxu0 0.0
  %5172 = vmatpush.msra.mxu0 0.0
  %5173 = vmatpush.msra.mxu0 0.0
  %5174 = vmatpush.msra.mxu0 0.0
  %5175 = vmatpush.msra.mxu0 0.0
  %5176 = vmatpush.msra.mxu0 0.0
  %5177 = vmatpush.msra.mxu0 0.0
  %5178 = vmatpush.msra.mxu0 0.0
  %5179 = vmatpush.msra.mxu0 0.0
  %5180 = vmatpush.msra.mxu0 0.0
  %5181 = vmatpush.msra.mxu0 0.0
  %5182 = vmatpush.msra.mxu0 0.0
  %v5183 = vand.u32 %v5137, 4294901760
  %v5184 = vsub.f32 %v5137, %v5183
  %v5185 = vand.u32 %v5184, 4294901760
  %v5186 = vsub.f32 %v5184, %v5185
  %v5187 = vand.u32 %v5186, 4294901760
  %5188 = vmatpush.msra.mxu0 %v5187
  %v5189 = vand.u32 %v5140, 4294901760
  %5190 = vmatmul.f32.gmra.mxu0 %v5189
  %v5191 = vpop.f32.mrf.mxu0
  %v5192 = vadd.f32 %v5166, %v5191
  %5193 = vdwg.mxu0
  %5194 = vmatpush.msra.mxu0 0.0
  %5195 = vmatpush.msra.mxu0 0.0
  %5196 = vmatpush.msra.mxu0 0.0
  %5197 = vmatpush.msra.mxu0 0.0
  %5198 = vmatpush.msra.mxu0 0.0
  %5199 = vmatpush.msra.mxu0 0.0
  %5200 = vmatpush.msra.mxu0 0.0
  %5201 = vmatpush.msra.mxu0 0.0
  %5202 = vmatpush.msra.mxu0 0.0
  %5203 = vmatpush.msra.mxu0 0.0
  %5204 = vmatpush.msra.mxu0 0.0
  %5205 = vmatpush.msra.mxu0 0.0
  %5206 = vmatpush.msra.mxu0 0.0
  %5207 = vmatpush.msra.mxu0 0.0
  %5208 = vmatpush.msra.mxu0 0.0
  %v5209 = vand.u32 %v5137, 4294901760
  %v5210 = vsub.f32 %v5137, %v5209
  %5211 = vmatpush.msra.mxu0 %v5210
  %v5212 = vand.u32 %v5140, 4294901760
  %v5213 = vsub.f32 %v5140, %v5212
  %5214 = vmatmul.f32.gmra.mxu0 %v5213
  %v5215 = vpop.f32.mrf.mxu0
  %v5216 = vadd.f32 %v5192, %v5215
  %5217 = vdwg.mxu0
  %5218 = vmatpush.msra.mxu0 0.0
  %5219 = vmatpush.msra.mxu0 0.0
  %5220 = vmatpush.msra.mxu0 0.0
  %5221 = vmatpush.msra.mxu0 0.0
  %5222 = vmatpush.msra.mxu0 0.0
  %5223 = vmatpush.msra.mxu0 0.0
  %5224 = vmatpush.msra.mxu0 0.0
  %5225 = vmatpush.msra.mxu0 0.0
  %5226 = vmatpush.msra.mxu0 0.0
  %5227 = vmatpush.msra.mxu0 0.0
  %5228 = vmatpush.msra.mxu0 0.0
  %5229 = vmatpush.msra.mxu0 0.0
  %5230 = vmatpush.msra.mxu0 0.0
  %5231 = vmatpush.msra.mxu0 0.0
  %5232 = vmatpush.msra.mxu0 0.0
  %v5233 = vand.u32 %v5137, 4294901760
  %5234 = vmatpush.msra.mxu0 %v5233
  %v5235 = vand.u32 %v5140, 4294901760
  %v5236 = vsub.f32 %v5140, %v5235
  %v5237 = vand.u32 %v5236, 4294901760
  %5238 = vmatmul.f32.gmra.mxu0 %v5237
  %v5239 = vpop.f32.mrf.mxu0
  %v5240 = vadd.f32 %v5216, %v5239
  %5241 = vdwg.mxu0
  %5242 = vmatpush.msra.mxu0 0.0
  %5243 = vmatpush.msra.mxu0 0.0
  %5244 = vmatpush.msra.mxu0 0.0
  %5245 = vmatpush.msra.mxu0 0.0
  %5246 = vmatpush.msra.mxu0 0.0
  %5247 = vmatpush.msra.mxu0 0.0
  %5248 = vmatpush.msra.mxu0 0.0
  %5249 = vmatpush.msra.mxu0 0.0
  %5250 = vmatpush.msra.mxu0 0.0
  %5251 = vmatpush.msra.mxu0 0.0
  %5252 = vmatpush.msra.mxu0 0.0
  %5253 = vmatpush.msra.mxu0 0.0
  %5254 = vmatpush.msra.mxu0 0.0
  %5255 = vmatpush.msra.mxu0 0.0
  %5256 = vmatpush.msra.mxu0 0.0
  %v5257 = vand.u32 %v5137, 4294901760
  %v5258 = vsub.f32 %v5137, %v5257
  %v5259 = vand.u32 %v5258, 4294901760
  %5260 = vmatpush.msra.mxu0 %v5259
  %v5261 = vand.u32 %v5140, 4294901760
  %5262 = vmatmul.f32.gmra.mxu0 %v5261
  %v5263 = vpop.f32.mrf.mxu0
  %v5264 = vadd.f32 %v5240, %v5263
  %5265 = vdwg.mxu0
  %5266 = vmatpush.msra.mxu0 0.0
  %5267 = vmatpush.msra.mxu0 0.0
  %5268 = vmatpush.msra.mxu0 0.0
  %5269 = vmatpush.msra.mxu0 0.0
  %5270 = vmatpush.msra.mxu0 0.0
  %5271 = vmatpush.msra.mxu0 0.0
  %5272 = vmatpush.msra.mxu0 0.0
  %5273 = vmatpush.msra.mxu0 0.0
  %5274 = vmatpush.msra.mxu0 0.0
  %5275 = vmatpush.msra.mxu0 0.0
  %5276 = vmatpush.msra.mxu0 0.0
  %5277 = vmatpush.msra.mxu0 0.0
  %5278 = vmatpush.msra.mxu0 0.0
  %5279 = vmatpush.msra.mxu0 0.0
  %5280 = vmatpush.msra.mxu0 0.0
  %v5281 = vand.u32 %v5137, 4294901760
  %5282 = vmatpush.msra.mxu0 %v5281
  %v5283 = vand.u32 %v5140, 4294901760
  %5284 = vmatmul.f32.gmra.mxu0 %v5283
  %v5285 = vpop.f32.mrf.mxu0
  %v5286 = vadd.f32 %v5264, %v5285
  %5287 = vdwg.mxu0
  %5288 = vrot.lane.b32.xlu0 %v143, 88
  %v5289 = vpop.permute.xlu0 %5288
  %v5292 = vsel %vm152, %v4223, 0
  %5294 = vmatpush.msra.mxu0 0.0
  %5295 = vmatpush.msra.mxu0 0.0
  %5296 = vmatpush.msra.mxu0 0.0
  %5297 = vmatpush.msra.mxu0 0.0
  %5298 = vmatpush.msra.mxu0 0.0
  %5299 = vmatpush.msra.mxu0 0.0
  %5300 = vmatpush.msra.mxu0 0.0
  %5301 = vmatpush.msra.mxu0 0.0
  %5302 = vmatpush.msra.mxu0 0.0
  %5303 = vmatpush.msra.mxu0 0.0
  %5304 = vmatpush.msra.mxu0 0.0
  %5305 = vmatpush.msra.mxu0 0.0
  %5306 = vmatpush.msra.mxu0 0.0
  %5307 = vmatpush.msra.mxu0 0.0
  %5308 = vmatpush.msra.mxu0 0.0
  %v5309 = vand.u32 %v5289, 4294901760
  %5310 = vmatpush.msra.mxu0 %v5309
  %v5311 = vand.u32 %v5292, 4294901760
  %v5312 = vsub.f32 %v5292, %v5311
  %v5313 = vand.u32 %v5312, 4294901760
  %v5314 = vsub.f32 %v5312, %v5313
  %v5315 = vand.u32 %v5314, 4294901760
  %5316 = vmatmul.f32.gmra.mxu0 %v5315
  %v5317 = vpop.f32.mrf.mxu0
  %v5318 = vadd.f32 0.0, %v5317
  %5319 = vdwg.mxu0
  %5320 = vmatpush.msra.mxu0 0.0
  %5321 = vmatpush.msra.mxu0 0.0
  %5322 = vmatpush.msra.mxu0 0.0
  %5323 = vmatpush.msra.mxu0 0.0
  %5324 = vmatpush.msra.mxu0 0.0
  %5325 = vmatpush.msra.mxu0 0.0
  %5326 = vmatpush.msra.mxu0 0.0
  %5327 = vmatpush.msra.mxu0 0.0
  %5328 = vmatpush.msra.mxu0 0.0
  %5329 = vmatpush.msra.mxu0 0.0
  %5330 = vmatpush.msra.mxu0 0.0
  %5331 = vmatpush.msra.mxu0 0.0
  %5332 = vmatpush.msra.mxu0 0.0
  %5333 = vmatpush.msra.mxu0 0.0
  %5334 = vmatpush.msra.mxu0 0.0
  %v5335 = vand.u32 %v5289, 4294901760
  %v5336 = vsub.f32 %v5289, %v5335
  %v5337 = vand.u32 %v5336, 4294901760
  %v5338 = vsub.f32 %v5336, %v5337
  %v5339 = vand.u32 %v5338, 4294901760
  %5340 = vmatpush.msra.mxu0 %v5339
  %v5341 = vand.u32 %v5292, 4294901760
  %5342 = vmatmul.f32.gmra.mxu0 %v5341
  %v5343 = vpop.f32.mrf.mxu0
  %v5344 = vadd.f32 %v5318, %v5343
  %5345 = vdwg.mxu0
  %5346 = vmatpush.msra.mxu0 0.0
  %5347 = vmatpush.msra.mxu0 0.0
  %5348 = vmatpush.msra.mxu0 0.0
  %5349 = vmatpush.msra.mxu0 0.0
  %5350 = vmatpush.msra.mxu0 0.0
  %5351 = vmatpush.msra.mxu0 0.0
  %5352 = vmatpush.msra.mxu0 0.0
  %5353 = vmatpush.msra.mxu0 0.0
  %5354 = vmatpush.msra.mxu0 0.0
  %5355 = vmatpush.msra.mxu0 0.0
  %5356 = vmatpush.msra.mxu0 0.0
  %5357 = vmatpush.msra.mxu0 0.0
  %5358 = vmatpush.msra.mxu0 0.0
  %5359 = vmatpush.msra.mxu0 0.0
  %5360 = vmatpush.msra.mxu0 0.0
  %v5361 = vand.u32 %v5289, 4294901760
  %v5362 = vsub.f32 %v5289, %v5361
  %5363 = vmatpush.msra.mxu0 %v5362
  %v5364 = vand.u32 %v5292, 4294901760
  %v5365 = vsub.f32 %v5292, %v5364
  %5366 = vmatmul.f32.gmra.mxu0 %v5365
  %v5367 = vpop.f32.mrf.mxu0
  %v5368 = vadd.f32 %v5344, %v5367
  %5369 = vdwg.mxu0
  %5370 = vmatpush.msra.mxu0 0.0
  %5371 = vmatpush.msra.mxu0 0.0
  %5372 = vmatpush.msra.mxu0 0.0
  %5373 = vmatpush.msra.mxu0 0.0
  %5374 = vmatpush.msra.mxu0 0.0
  %5375 = vmatpush.msra.mxu0 0.0
  %5376 = vmatpush.msra.mxu0 0.0
  %5377 = vmatpush.msra.mxu0 0.0
  %5378 = vmatpush.msra.mxu0 0.0
  %5379 = vmatpush.msra.mxu0 0.0
  %5380 = vmatpush.msra.mxu0 0.0
  %5381 = vmatpush.msra.mxu0 0.0
  %5382 = vmatpush.msra.mxu0 0.0
  %5383 = vmatpush.msra.mxu0 0.0
  %5384 = vmatpush.msra.mxu0 0.0
  %v5385 = vand.u32 %v5289, 4294901760
  %5386 = vmatpush.msra.mxu0 %v5385
  %v5387 = vand.u32 %v5292, 4294901760
  %v5388 = vsub.f32 %v5292, %v5387
  %v5389 = vand.u32 %v5388, 4294901760
  %5390 = vmatmul.f32.gmra.mxu0 %v5389
  %v5391 = vpop.f32.mrf.mxu0
  %v5392 = vadd.f32 %v5368, %v5391
  %5393 = vdwg.mxu0
  %5394 = vmatpush.msra.mxu0 0.0
  %5395 = vmatpush.msra.mxu0 0.0
  %5396 = vmatpush.msra.mxu0 0.0
  %5397 = vmatpush.msra.mxu0 0.0
  %5398 = vmatpush.msra.mxu0 0.0
  %5399 = vmatpush.msra.mxu0 0.0
  %5400 = vmatpush.msra.mxu0 0.0
  %5401 = vmatpush.msra.mxu0 0.0
  %5402 = vmatpush.msra.mxu0 0.0
  %5403 = vmatpush.msra.mxu0 0.0
  %5404 = vmatpush.msra.mxu0 0.0
  %5405 = vmatpush.msra.mxu0 0.0
  %5406 = vmatpush.msra.mxu0 0.0
  %5407 = vmatpush.msra.mxu0 0.0
  %5408 = vmatpush.msra.mxu0 0.0
  %v5409 = vand.u32 %v5289, 4294901760
  %v5410 = vsub.f32 %v5289, %v5409
  %v5411 = vand.u32 %v5410, 4294901760
  %5412 = vmatpush.msra.mxu0 %v5411
  %v5413 = vand.u32 %v5292, 4294901760
  %5414 = vmatmul.f32.gmra.mxu0 %v5413
  %v5415 = vpop.f32.mrf.mxu0
  %v5416 = vadd.f32 %v5392, %v5415
  %5417 = vdwg.mxu0
  %5418 = vmatpush.msra.mxu0 0.0
  %5419 = vmatpush.msra.mxu0 0.0
  %5420 = vmatpush.msra.mxu0 0.0
  %5421 = vmatpush.msra.mxu0 0.0
  %5422 = vmatpush.msra.mxu0 0.0
  %5423 = vmatpush.msra.mxu0 0.0
  %5424 = vmatpush.msra.mxu0 0.0
  %5425 = vmatpush.msra.mxu0 0.0
  %5426 = vmatpush.msra.mxu0 0.0
  %5427 = vmatpush.msra.mxu0 0.0
  %5428 = vmatpush.msra.mxu0 0.0
  %5429 = vmatpush.msra.mxu0 0.0
  %5430 = vmatpush.msra.mxu0 0.0
  %5431 = vmatpush.msra.mxu0 0.0
  %5432 = vmatpush.msra.mxu0 0.0
  %v5433 = vand.u32 %v5289, 4294901760
  %5434 = vmatpush.msra.mxu0 %v5433
  %v5435 = vand.u32 %v5292, 4294901760
  %5436 = vmatmul.f32.gmra.mxu0 %v5435
  %v5437 = vpop.f32.mrf.mxu0
  %v5438 = vadd.f32 %v5416, %v5437
  %5439 = vdwg.mxu0
  %5448 = vrot.lane.b32.xlu0 %v4374, 8
  %v5449 = vpop.permute.xlu0 %5448
  %5450 = vrot.lane.b32.xlu0 %v4526, 8
  %v5451 = vpop.permute.xlu0 %5450
  %5452 = vrot.lane.b32.xlu0 %v4678, 8
  %v5453 = vpop.permute.xlu0 %5452
  %5454 = vrot.lane.b32.xlu0 %v4830, 8
  %v5455 = vpop.permute.xlu0 %5454
  %5456 = vrot.lane.b32.xlu0 %v4982, 8
  %v5457 = vpop.permute.xlu0 %5456
  %5458 = vrot.lane.b32.xlu0 %v5134, 8
  %v5459 = vpop.permute.xlu0 %5458
  %5460 = vrot.lane.b32.xlu0 %v5286, 8
  %v5461 = vpop.permute.xlu0 %5460
  %5462 = vrot.lane.b32.xlu0 %v5438, 8
  %v5463 = vpop.permute.xlu0 %5462
  %v5472 = vsel %vm152, %v1726, %v5449
  %v5473 = vsel %vm152, %v1878, %v5451
  %v5474 = vsel %vm152, %v2030, %v5453
  %v5475 = vsel %vm152, %v2182, %v5455
  %v5476 = vsel %vm152, %v2334, %v5457
  %v5477 = vsel %vm152, %v2486, %v5459
  %v5478 = vsel %vm152, %v2638, %v5461
  %v5479 = vsel %vm152, %v2790, %v5463
  %v5480 = vld [vmem:[%s3] sm:$0xff]
  %v5481 = vld [vmem:[%s3 + $0x8] sm:$0xff]
  %v5482 = vld [vmem:[%s3 + $0x10] sm:$0x1]
  %v5483 = vperm.slane %v5482, 0
  %vm5484 = vcmask 130048
  %v5486 = vsel %vm5484, %v5472, 0
  %v5489 = vsel %vm5484, %v5473, 0
  %v5492 = vsel %vm5484, %v5474, 0
  %v5495 = vsel %vm5484, %v5475, 0
  %v5498 = vsel %vm5484, %v5476, 0
  %v5501 = vsel %vm5484, %v5477, 0
  %v5504 = vsel %vm5484, %v5478, 0
  %v5507 = vsel %vm5484, %v5479, 0
  %5509 = vmatpush.msra.mxu0 0.0
  %5510 = vmatpush.msra.mxu0 0.0
  %5511 = vmatpush.msra.mxu0 0.0
  %5512 = vmatpush.msra.mxu0 0.0
  %5513 = vmatpush.msra.mxu0 0.0
  %5514 = vmatpush.msra.mxu0 0.0
  %5515 = vmatpush.msra.mxu0 0.0
  %5516 = vmatpush.msra.mxu0 0.0
  %5517 = vmatpush.msra.mxu0 0.0
  %5518 = vmatpush.msra.mxu0 0.0
  %5519 = vmatpush.msra.mxu0 0.0
  %5520 = vmatpush.msra.mxu0 0.0
  %5521 = vmatpush.msra.mxu0 0.0
  %5522 = vmatpush.msra.mxu0 0.0
  %v5523 = vand.u32 %v5481, 4294901760
  %5524 = vmatpush.msra.mxu0 %v5523
  %v5525 = vand.u32 %v5480, 4294901760
  %5526 = vmatpush.msra.mxu0 %v5525
  %v5527 = vand.u32 %v5486, 4294901760
  %v5528 = vsub.f32 %v5486, %v5527
  %v5529 = vand.u32 %v5528, 4294901760
  %v5530 = vsub.f32 %v5528, %v5529
  %v5531 = vand.u32 %v5530, 4294901760
  %5532 = vmatmul.f32.gmra.mxu0 %v5531
  %v5533 = vpop.f32.mrf.mxu0
  %v5534 = vadd.f32 %v5483, %v5533
  %v5535 = vand.u32 %v5489, 4294901760
  %v5536 = vsub.f32 %v5489, %v5535
  %v5537 = vand.u32 %v5536, 4294901760
  %v5538 = vsub.f32 %v5536, %v5537
  %v5539 = vand.u32 %v5538, 4294901760
  %5540 = vmatmul.f32.gmra.mxu0 %v5539
  %v5541 = vpop.f32.mrf.mxu0
  %v5542 = vadd.f32 %v5483, %v5541
  %v5543 = vand.u32 %v5492, 4294901760
  %v5544 = vsub.f32 %v5492, %v5543
  %v5545 = vand.u32 %v5544, 4294901760
  %v5546 = vsub.f32 %v5544, %v5545
  %v5547 = vand.u32 %v5546, 4294901760
  %5548 = vmatmul.f32.gmra.mxu0 %v5547
  %v5549 = vpop.f32.mrf.mxu0
  %v5550 = vadd.f32 %v5483, %v5549
  %v5551 = vand.u32 %v5495, 4294901760
  %v5552 = vsub.f32 %v5495, %v5551
  %v5553 = vand.u32 %v5552, 4294901760
  %v5554 = vsub.f32 %v5552, %v5553
  %v5555 = vand.u32 %v5554, 4294901760
  %5556 = vmatmul.f32.gmra.mxu0 %v5555
  %v5557 = vpop.f32.mrf.mxu0
  %v5558 = vadd.f32 %v5483, %v5557
  %v5559 = vand.u32 %v5498, 4294901760
  %v5560 = vsub.f32 %v5498, %v5559
  %v5561 = vand.u32 %v5560, 4294901760
  %v5562 = vsub.f32 %v5560, %v5561
  %v5563 = vand.u32 %v5562, 4294901760
  %5564 = vmatmul.f32.gmra.mxu0 %v5563
  %v5565 = vpop.f32.mrf.mxu0
  %v5566 = vadd.f32 %v5483, %v5565
  %v5567 = vand.u32 %v5501, 4294901760
  %v5568 = vsub.f32 %v5501, %v5567
  %v5569 = vand.u32 %v5568, 4294901760
  %v5570 = vsub.f32 %v5568, %v5569
  %v5571 = vand.u32 %v5570, 4294901760
  %5572 = vmatmul.f32.gmra.mxu0 %v5571
  %v5573 = vpop.f32.mrf.mxu0
  %v5574 = vadd.f32 %v5483, %v5573
  %v5575 = vand.u32 %v5504, 4294901760
  %v5576 = vsub.f32 %v5504, %v5575
  %v5577 = vand.u32 %v5576, 4294901760
  %v5578 = vsub.f32 %v5576, %v5577
  %v5579 = vand.u32 %v5578, 4294901760
  %5580 = vmatmul.f32.gmra.mxu0 %v5579
  %v5581 = vpop.f32.mrf.mxu0
  %v5582 = vadd.f32 %v5483, %v5581
  %v5583 = vand.u32 %v5507, 4294901760
  %v5584 = vsub.f32 %v5507, %v5583
  %v5585 = vand.u32 %v5584, 4294901760
  %v5586 = vsub.f32 %v5584, %v5585
  %v5587 = vand.u32 %v5586, 4294901760
  %5588 = vmatmul.f32.gmra.mxu0 %v5587
  %v5589 = vpop.f32.mrf.mxu0
  %v5590 = vadd.f32 %v5483, %v5589
  %5591 = vdwg.mxu0
  %5592 = vmatpush.msra.mxu0 0.0
  %5593 = vmatpush.msra.mxu0 0.0
  %5594 = vmatpush.msra.mxu0 0.0
  %5595 = vmatpush.msra.mxu0 0.0
  %5596 = vmatpush.msra.mxu0 0.0
  %5597 = vmatpush.msra.mxu0 0.0
  %5598 = vmatpush.msra.mxu0 0.0
  %5599 = vmatpush.msra.mxu0 0.0
  %5600 = vmatpush.msra.mxu0 0.0
  %5601 = vmatpush.msra.mxu0 0.0
  %5602 = vmatpush.msra.mxu0 0.0
  %5603 = vmatpush.msra.mxu0 0.0
  %5604 = vmatpush.msra.mxu0 0.0
  %5605 = vmatpush.msra.mxu0 0.0
  %v5606 = vand.u32 %v5481, 4294901760
  %v5607 = vsub.f32 %v5481, %v5606
  %v5608 = vand.u32 %v5607, 4294901760
  %v5609 = vsub.f32 %v5607, %v5608
  %v5610 = vand.u32 %v5609, 4294901760
  %5611 = vmatpush.msra.mxu0 %v5610
  %v5612 = vand.u32 %v5480, 4294901760
  %v5613 = vsub.f32 %v5480, %v5612
  %v5614 = vand.u32 %v5613, 4294901760
  %v5615 = vsub.f32 %v5613, %v5614
  %v5616 = vand.u32 %v5615, 4294901760
  %5617 = vmatpush.msra.mxu0 %v5616
  %v5618 = vand.u32 %v5486, 4294901760
  %5619 = vmatmul.f32.gmra.mxu0 %v5618
  %v5620 = vpop.f32.mrf.mxu0
  %v5621 = vadd.f32 %v5534, %v5620
  %v5622 = vand.u32 %v5489, 4294901760
  %5623 = vmatmul.f32.gmra.mxu0 %v5622
  %v5624 = vpop.f32.mrf.mxu0
  %v5625 = vadd.f32 %v5542, %v5624
  %v5626 = vand.u32 %v5492, 4294901760
  %5627 = vmatmul.f32.gmra.mxu0 %v5626
  %v5628 = vpop.f32.mrf.mxu0
  %v5629 = vadd.f32 %v5550, %v5628
  %v5630 = vand.u32 %v5495, 4294901760
  %5631 = vmatmul.f32.gmra.mxu0 %v5630
  %v5632 = vpop.f32.mrf.mxu0
  %v5633 = vadd.f32 %v5558, %v5632
  %v5634 = vand.u32 %v5498, 4294901760
  %5635 = vmatmul.f32.gmra.mxu0 %v5634
  %v5636 = vpop.f32.mrf.mxu0
  %v5637 = vadd.f32 %v5566, %v5636
  %v5638 = vand.u32 %v5501, 4294901760
  %5639 = vmatmul.f32.gmra.mxu0 %v5638
  %v5640 = vpop.f32.mrf.mxu0
  %v5641 = vadd.f32 %v5574, %v5640
  %v5642 = vand.u32 %v5504, 4294901760
  %5643 = vmatmul.f32.gmra.mxu0 %v5642
  %v5644 = vpop.f32.mrf.mxu0
  %v5645 = vadd.f32 %v5582, %v5644
  %v5646 = vand.u32 %v5507, 4294901760
  %5647 = vmatmul.f32.gmra.mxu0 %v5646
  %v5648 = vpop.f32.mrf.mxu0
  %v5649 = vadd.f32 %v5590, %v5648
  %5650 = vdwg.mxu0
  %5651 = vmatpush.msra.mxu0 0.0
  %5652 = vmatpush.msra.mxu0 0.0
  %5653 = vmatpush.msra.mxu0 0.0
  %5654 = vmatpush.msra.mxu0 0.0
  %5655 = vmatpush.msra.mxu0 0.0
  %5656 = vmatpush.msra.mxu0 0.0
  %5657 = vmatpush.msra.mxu0 0.0
  %5658 = vmatpush.msra.mxu0 0.0
  %5659 = vmatpush.msra.mxu0 0.0
  %5660 = vmatpush.msra.mxu0 0.0
  %5661 = vmatpush.msra.mxu0 0.0
  %5662 = vmatpush.msra.mxu0 0.0
  %5663 = vmatpush.msra.mxu0 0.0
  %5664 = vmatpush.msra.mxu0 0.0
  %v5665 = vand.u32 %v5481, 4294901760
  %v5666 = vsub.f32 %v5481, %v5665
  %5667 = vmatpush.msra.mxu0 %v5666
  %v5668 = vand.u32 %v5480, 4294901760
  %v5669 = vsub.f32 %v5480, %v5668
  %5670 = vmatpush.msra.mxu0 %v5669
  %v5671 = vand.u32 %v5486, 4294901760
  %v5672 = vsub.f32 %v5486, %v5671
  %5673 = vmatmul.f32.gmra.mxu0 %v5672
  %v5674 = vpop.f32.mrf.mxu0
  %v5675 = vadd.f32 %v5621, %v5674
  %v5676 = vand.u32 %v5489, 4294901760
  %v5677 = vsub.f32 %v5489, %v5676
  %5678 = vmatmul.f32.gmra.mxu0 %v5677
  %v5679 = vpop.f32.mrf.mxu0
  %v5680 = vadd.f32 %v5625, %v5679
  %v5681 = vand.u32 %v5492, 4294901760
  %v5682 = vsub.f32 %v5492, %v5681
  %5683 = vmatmul.f32.gmra.mxu0 %v5682
  %v5684 = vpop.f32.mrf.mxu0
  %v5685 = vadd.f32 %v5629, %v5684
  %v5686 = vand.u32 %v5495, 4294901760
  %v5687 = vsub.f32 %v5495, %v5686
  %5688 = vmatmul.f32.gmra.mxu0 %v5687
  %v5689 = vpop.f32.mrf.mxu0
  %v5690 = vadd.f32 %v5633, %v5689
  %v5691 = vand.u32 %v5498, 4294901760
  %v5692 = vsub.f32 %v5498, %v5691
  %5693 = vmatmul.f32.gmra.mxu0 %v5692
  %v5694 = vpop.f32.mrf.mxu0
  %v5695 = vadd.f32 %v5637, %v5694
  %v5696 = vand.u32 %v5501, 4294901760
  %v5697 = vsub.f32 %v5501, %v5696
  %5698 = vmatmul.f32.gmra.mxu0 %v5697
  %v5699 = vpop.f32.mrf.mxu0
  %v5700 = vadd.f32 %v5641, %v5699
  %v5701 = vand.u32 %v5504, 4294901760
  %v5702 = vsub.f32 %v5504, %v5701
  %5703 = vmatmul.f32.gmra.mxu0 %v5702
  %v5704 = vpop.f32.mrf.mxu0
  %v5705 = vadd.f32 %v5645, %v5704
  %v5706 = vand.u32 %v5507, 4294901760
  %v5707 = vsub.f32 %v5507, %v5706
  %5708 = vmatmul.f32.gmra.mxu0 %v5707
  %v5709 = vpop.f32.mrf.mxu0
  %v5710 = vadd.f32 %v5649, %v5709
  %5711 = vdwg.mxu0
  %5712 = vmatpush.msra.mxu0 0.0
  %5713 = vmatpush.msra.mxu0 0.0
  %5714 = vmatpush.msra.mxu0 0.0
  %5715 = vmatpush.msra.mxu0 0.0
  %5716 = vmatpush.msra.mxu0 0.0
  %5717 = vmatpush.msra.mxu0 0.0
  %5718 = vmatpush.msra.mxu0 0.0
  %5719 = vmatpush.msra.mxu0 0.0
  %5720 = vmatpush.msra.mxu0 0.0
  %5721 = vmatpush.msra.mxu0 0.0
  %5722 = vmatpush.msra.mxu0 0.0
  %5723 = vmatpush.msra.mxu0 0.0
  %5724 = vmatpush.msra.mxu0 0.0
  %5725 = vmatpush.msra.mxu0 0.0
  %v5726 = vand.u32 %v5481, 4294901760
  %5727 = vmatpush.msra.mxu0 %v5726
  %v5728 = vand.u32 %v5480, 4294901760
  %5729 = vmatpush.msra.mxu0 %v5728
  %v5730 = vand.u32 %v5486, 4294901760
  %v5731 = vsub.f32 %v5486, %v5730
  %v5732 = vand.u32 %v5731, 4294901760
  %5733 = vmatmul.f32.gmra.mxu0 %v5732
  %v5734 = vpop.f32.mrf.mxu0
  %v5735 = vadd.f32 %v5675, %v5734
  %v5736 = vand.u32 %v5489, 4294901760
  %v5737 = vsub.f32 %v5489, %v5736
  %v5738 = vand.u32 %v5737, 4294901760
  %5739 = vmatmul.f32.gmra.mxu0 %v5738
  %v5740 = vpop.f32.mrf.mxu0
  %v5741 = vadd.f32 %v5680, %v5740
  %v5742 = vand.u32 %v5492, 4294901760
  %v5743 = vsub.f32 %v5492, %v5742
  %v5744 = vand.u32 %v5743, 4294901760
  %5745 = vmatmul.f32.gmra.mxu0 %v5744
  %v5746 = vpop.f32.mrf.mxu0
  %v5747 = vadd.f32 %v5685, %v5746
  %v5748 = vand.u32 %v5495, 4294901760
  %v5749 = vsub.f32 %v5495, %v5748
  %v5750 = vand.u32 %v5749, 4294901760
  %5751 = vmatmul.f32.gmra.mxu0 %v5750
  %v5752 = vpop.f32.mrf.mxu0
  %v5753 = vadd.f32 %v5690, %v5752
  %v5754 = vand.u32 %v5498, 4294901760
  %v5755 = vsub.f32 %v5498, %v5754
  %v5756 = vand.u32 %v5755, 4294901760
  %5757 = vmatmul.f32.gmra.mxu0 %v5756
  %v5758 = vpop.f32.mrf.mxu0
  %v5759 = vadd.f32 %v5695, %v5758
  %v5760 = vand.u32 %v5501, 4294901760
  %v5761 = vsub.f32 %v5501, %v5760
  %v5762 = vand.u32 %v5761, 4294901760
  %5763 = vmatmul.f32.gmra.mxu0 %v5762
  %v5764 = vpop.f32.mrf.mxu0
  %v5765 = vadd.f32 %v5700, %v5764
  %v5766 = vand.u32 %v5504, 4294901760
  %v5767 = vsub.f32 %v5504, %v5766
  %v5768 = vand.u32 %v5767, 4294901760
  %5769 = vmatmul.f32.gmra.mxu0 %v5768
  %v5770 = vpop.f32.mrf.mxu0
  %v5771 = vadd.f32 %v5705, %v5770
  %v5772 = vand.u32 %v5507, 4294901760
  %v5773 = vsub.f32 %v5507, %v5772
  %v5774 = vand.u32 %v5773, 4294901760
  %5775 = vmatmul.f32.gmra.mxu0 %v5774
  %v5776 = vpop.f32.mrf.mxu0
  %v5777 = vadd.f32 %v5710, %v5776
  %5778 = vdwg.mxu0
  %5779 = vmatpush.msra.mxu0 0.0
  %5780 = vmatpush.msra.mxu0 0.0
  %5781 = vmatpush.msra.mxu0 0.0
  %5782 = vmatpush.msra.mxu0 0.0
  %5783 = vmatpush.msra.mxu0 0.0
  %5784 = vmatpush.msra.mxu0 0.0
  %5785 = vmatpush.msra.mxu0 0.0
  %5786 = vmatpush.msra.mxu0 0.0
  %5787 = vmatpush.msra.mxu0 0.0
  %5788 = vmatpush.msra.mxu0 0.0
  %5789 = vmatpush.msra.mxu0 0.0
  %5790 = vmatpush.msra.mxu0 0.0
  %5791 = vmatpush.msra.mxu0 0.0
  %5792 = vmatpush.msra.mxu0 0.0
  %v5793 = vand.u32 %v5481, 4294901760
  %v5794 = vsub.f32 %v5481, %v5793
  %v5795 = vand.u32 %v5794, 4294901760
  %5796 = vmatpush.msra.mxu0 %v5795
  %v5797 = vand.u32 %v5480, 4294901760
  %v5798 = vsub.f32 %v5480, %v5797
  %v5799 = vand.u32 %v5798, 4294901760
  %5800 = vmatpush.msra.mxu0 %v5799
  %v5801 = vand.u32 %v5486, 4294901760
  %5802 = vmatmul.f32.gmra.mxu0 %v5801
  %v5803 = vpop.f32.mrf.mxu0
  %v5804 = vadd.f32 %v5735, %v5803
  %v5805 = vand.u32 %v5489, 4294901760
  %5806 = vmatmul.f32.gmra.mxu0 %v5805
  %v5807 = vpop.f32.mrf.mxu0
  %v5808 = vadd.f32 %v5741, %v5807
  %v5809 = vand.u32 %v5492, 4294901760
  %5810 = vmatmul.f32.gmra.mxu0 %v5809
  %v5811 = vpop.f32.mrf.mxu0
  %v5812 = vadd.f32 %v5747, %v5811
  %v5813 = vand.u32 %v5495, 4294901760
  %5814 = vmatmul.f32.gmra.mxu0 %v5813
  %v5815 = vpop.f32.mrf.mxu0
  %v5816 = vadd.f32 %v5753, %v5815
  %v5817 = vand.u32 %v5498, 4294901760
  %5818 = vmatmul.f32.gmra.mxu0 %v5817
  %v5819 = vpop.f32.mrf.mxu0
  %v5820 = vadd.f32 %v5759, %v5819
  %v5821 = vand.u32 %v5501, 4294901760
  %5822 = vmatmul.f32.gmra.mxu0 %v5821
  %v5823 = vpop.f32.mrf.mxu0
  %v5824 = vadd.f32 %v5765, %v5823
  %v5825 = vand.u32 %v5504, 4294901760
  %5826 = vmatmul.f32.gmra.mxu0 %v5825
  %v5827 = vpop.f32.mrf.mxu0
  %v5828 = vadd.f32 %v5771, %v5827
  %v5829 = vand.u32 %v5507, 4294901760
  %5830 = vmatmul.f32.gmra.mxu0 %v5829
  %v5831 = vpop.f32.mrf.mxu0
  %v5832 = vadd.f32 %v5777, %v5831
  %5833 = vdwg.mxu0
  %5834 = vmatpush.msra.mxu0 0.0
  %5835 = vmatpush.msra.mxu0 0.0
  %5836 = vmatpush.msra.mxu0 0.0
  %5837 = vmatpush.msra.mxu0 0.0
  %5838 = vmatpush.msra.mxu0 0.0
  %5839 = vmatpush.msra.mxu0 0.0
  %5840 = vmatpush.msra.mxu0 0.0
  %5841 = vmatpush.msra.mxu0 0.0
  %5842 = vmatpush.msra.mxu0 0.0
  %5843 = vmatpush.msra.mxu0 0.0
  %5844 = vmatpush.msra.mxu0 0.0
  %5845 = vmatpush.msra.mxu0 0.0
  %5846 = vmatpush.msra.mxu0 0.0
  %5847 = vmatpush.msra.mxu0 0.0
  %v5848 = vand.u32 %v5481, 4294901760
  %5849 = vmatpush.msra.mxu0 %v5848
  %v5850 = vand.u32 %v5480, 4294901760
  %5851 = vmatpush.msra.mxu0 %v5850
  %v5852 = vand.u32 %v5486, 4294901760
  %5853 = vmatmul.f32.gmra.mxu0 %v5852
  %v5854 = vpop.f32.mrf.mxu0
  %v5855 = vadd.f32 %v5804, %v5854
  %v5856 = vand.u32 %v5489, 4294901760
  %5857 = vmatmul.f32.gmra.mxu0 %v5856
  %v5858 = vpop.f32.mrf.mxu0
  %v5859 = vadd.f32 %v5808, %v5858
  %v5860 = vand.u32 %v5492, 4294901760
  %5861 = vmatmul.f32.gmra.mxu0 %v5860
  %v5862 = vpop.f32.mrf.mxu0
  %v5863 = vadd.f32 %v5812, %v5862
  %v5864 = vand.u32 %v5495, 4294901760
  %5865 = vmatmul.f32.gmra.mxu0 %v5864
  %v5866 = vpop.f32.mrf.mxu0
  %v5867 = vadd.f32 %v5816, %v5866
  %v5868 = vand.u32 %v5498, 4294901760
  %5869 = vmatmul.f32.gmra.mxu0 %v5868
  %v5870 = vpop.f32.mrf.mxu0
  %v5871 = vadd.f32 %v5820, %v5870
  %v5872 = vand.u32 %v5501, 4294901760
  %5873 = vmatmul.f32.gmra.mxu0 %v5872
  %v5874 = vpop.f32.mrf.mxu0
  %v5875 = vadd.f32 %v5824, %v5874
  %v5876 = vand.u32 %v5504, 4294901760
  %5877 = vmatmul.f32.gmra.mxu0 %v5876
  %v5878 = vpop.f32.mrf.mxu0
  %v5879 = vadd.f32 %v5828, %v5878
  %v5880 = vand.u32 %v5507, 4294901760
  %5881 = vmatmul.f32.gmra.mxu0 %v5880
  %v5882 = vpop.f32.mrf.mxu0
  %v5883 = vadd.f32 %v5832, %v5882
  %5884 = vdwg.mxu0
  %vm5885 = vcmask 15360
  %5886 = vst.msk [vmem:[%s4] sm:$0xff] %vm5885, %v5855
  %5887 = vst.msk [vmem:[%s4 + $0x8] sm:$0xff] %vm5885, %v5859
  %5888 = vst.msk [vmem:[%s4 + $0x10] sm:$0xff] %vm5885, %v5863
  %5889 = vst.msk [vmem:[%s4 + $0x18] sm:$0xff] %vm5885, %v5867
  %5890 = vst.msk [vmem:[%s4 + $0x20] sm:$0xff] %vm5885, %v5871
  %5891 = vst.msk [vmem:[%s4 + $0x28] sm:$0xff] %vm5885, %v5875
  %5892 = vst.msk [vmem:[%s4 + $0x30] sm:$0xff] %vm5885, %v5879
  %5893 = vst.msk [vmem:[%s4 + $0x38] sm:$0xff] %vm5885, %v5883
  // Predicated region
  $region18: #{tpu_custom_call.1} parent=0 // pred_check
    _
  $region19: #{tpu_custom_call.1} parent=0 // pred_check_branch
    %5895 = sbr.rel (0) target = $region21
  $region20: #{tpu_custom_call.1} parent=0 // pred_region
    _
  $region21: #{tpu_custom_call.1} parent=0 // pred_fallthru
    _
  // Predicated region
  $region22: #{tpu_custom_call.1} parent=0 // pred_check
    _
  $region23: #{tpu_custom_call.1} parent=0 // pred_check_branch
    %5897 = sbr.rel (0) target = $region25
  $region24: #{tpu_custom_call.1} parent=0 // pred_region
    _
  $region25: #{tpu_custom_call.1} parent=0 // pred_fallthru
    _

</llo_original>
